<compile_context>
chip_gen: v5e
topology: v5e:2x2
jax: 0.10.0
libtpu: 0.0.40
codegen_flags: <defaults>
</compile_context>

<pallas_src>
import functools

import jax
import jax.numpy as jnp
from jax import lax
from jax.experimental import pallas as pl
from jax.experimental.pallas import tpu as pltpu

GROUPS = 32
EPS = 1e-5


def _silu(v):
    return v * jax.nn.sigmoid(v)


def resblock_shift_kernel(
    x_ref, emb_ref, embz_ref,
    gn1_g_ref, gn1_b_ref, grp1_ref,
    w1_ref, b1_ref,
    gn2_g_ref, gn2_b_ref, grp2_ref,
    wes_ref, bes_ref, weh_ref, beh_ref,
    wzs_ref, bzs_ref, wzh_ref, bzh_ref,
    w2_ref, b2_ref,
    o_ref,
    *, H, W,
):
    Bt, HW, _ = x_ref.shape
    HIGH = lax.Precision.HIGHEST

    x = x_ref[...].astype(jnp.float32)                        # (Bt, HW, Cin)

    def group_norm(h, grp_ref, g_ref, b_ref):
        # Two-pass GroupNorm over (H*W, channels-in-group), per image (f32 stats).
        inv_n = 1.0 / float(h.shape[1])
        cmean = jnp.sum(h, axis=1) * inv_n                    # (Bt, C) per-channel mean
        gmean = jnp.dot(cmean, grp_ref[...], precision=HIGH,
                        preferred_element_type=jnp.float32)   # group mean, bcast per channel
        d = h - gmean[:, None, :]
        cvar = jnp.sum(d * d, axis=1) * inv_n                 # (Bt, C)
        gvar = jnp.dot(cvar, grp_ref[...], precision=HIGH,
                       preferred_element_type=jnp.float32)
        inv = lax.rsqrt(gvar + EPS)                           # (Bt, C)
        return d * (g_ref[...] * inv)[:, None, :] + b_ref[...]

    def conv3x3(h, w_ref, b_ref):
        # h: (Bt, HW, C) f32 -> (Bt, HW, Cout) f32.
        # 3x3 SAME conv as a single im2col matmul: build (Bt*HW, 9*C) patches
        # (9 shifted copies of the zero-padded slab) and do one bf16 MXU dot
        # with f32 accumulation.
        C = h.shape[-1]
        hb = h.reshape(Bt, H, W, C)                           # f32, W=8 sublane-aligned
        zh = jnp.zeros((Bt, 1, W, C), jnp.float32)
        hp = jnp.concatenate([zh, hb, zh], axis=1)            # (Bt, H+2, W, C)
        zw = jnp.zeros((Bt, H + 2, 1, C), jnp.float32)
        hp = jnp.concatenate([zw, hp, zw], axis=2)            # (Bt, H+2, W+2, C)
        taps = [hp[:, dy:dy + H, dx:dx + W, :]
                for dy in range(3) for dx in range(3)]        # 9 x (Bt, H, W, C)
        patches = jnp.concatenate(taps, axis=-1)              # (Bt, H, W, 9C)
        patches = patches.reshape(Bt * HW, 9 * C).astype(jnp.bfloat16)
        out = jnp.dot(patches, w_ref[...],
                      preferred_element_type=jnp.float32)     # (Bt*HW, Cout)
        return out.reshape(Bt, HW, out.shape[-1]) + b_ref[...]

    # ---- in_layers: GroupNorm(32, Cin) -> SiLU -> Conv3x3 ----
    h = conv3x3(_silu(group_norm(x, grp1_ref, gn1_g_ref, gn1_b_ref)),
                w1_ref, b1_ref)                               # (Bt, HW, Cout)

    # ---- emb_layers / emb_z_layers: SiLU -> Linear (scale/shift halves) ----
    e = _silu(emb_ref[...].reshape(Bt, -1).astype(jnp.float32))    # (Bt, E)
    ez = _silu(embz_ref[...].reshape(Bt, -1).astype(jnp.float32))
    scale = jnp.dot(e, wes_ref[...], precision=HIGH,
                    preferred_element_type=jnp.float32) + bes_ref[...]
    shift = jnp.dot(e, weh_ref[...], precision=HIGH,
                    preferred_element_type=jnp.float32) + beh_ref[...]
    zscale = jnp.dot(ez, wzs_ref[...], precision=HIGH,
                     preferred_element_type=jnp.float32) + bzs_ref[...]
    zshift = jnp.dot(ez, wzh_ref[...], precision=HIGH,
                     preferred_element_type=jnp.float32) + bzh_ref[...]

    # ---- out_norm + FiLM: (1+z_scale)*(GN(h)*(1+scale)+shift)+z_shift ----
    hn = group_norm(h, grp2_ref, gn2_g_ref, gn2_b_ref)
    hm = ((1.0 + zscale)[:, None, :]
          * (hn * (1.0 + scale)[:, None, :] + shift[:, None, :])
          + zshift[:, None, :])

    # ---- out_rest: SiLU -> Dropout -> Conv3x3 ----
    # TODO(synk): Dropout is treated as identity (inference mode).
    h2 = conv3x3(_silu(hm), w2_ref, b2_ref)

    # ---- identity skip (out_channels == channels), one full-block store ----
    o_ref[...] = (x + h2).astype(o_ref.dtype)


def resblock_shift_forward(x_nhwc, emb, emb_z, params, block_b=8):
    B, H, W, Cin = x_nhwc.shape
    E = emb.shape[1]
    Cout = params["b1"].shape[1]
    assert Cout == Cin, "kernel implements the identity-skip path (out_channels == channels)"
    assert Cin % GROUPS == 0
    # TODO(synk): up/down (Upsample/Downsample) and conv-based skip branches of
    # ResBlockShift are not implemented; default config only.

    HW = H * W
    Bt = min(B, block_b)
    while B % Bt != 0:   # largest divisor of B that is <= block_b
        Bt -= 1

    x2 = x_nhwc.reshape(B, HW, Cin)      # free relayout-less reshape outside kernel
    emb3 = emb.reshape(B, 1, E)
    embz3 = emb_z.reshape(B, 1, E)

    p = params
    inputs = (x2, emb3, embz3,
              p["gn1_g"], p["gn1_b"], p["grp1"],
              p["w1"], p["b1"],
              p["gn2_g"], p["gn2_b"], p["grp2"],
              p["w_es"], p["b_es"], p["w_eh"], p["b_eh"],
              p["w_zs"], p["b_zs"], p["w_zh"], p["b_zh"],
              p["w2"], p["b2"])

    def rep_spec(a):
        zeros = (0,) * a.ndim
        return pl.BlockSpec(a.shape, lambda b, _z=zeros: _z)

    in_specs = [
        pl.BlockSpec((Bt, HW, Cin), lambda b: (b, 0, 0)),
        pl.BlockSpec((Bt, 1, E), lambda b: (b, 0, 0)),
        pl.BlockSpec((Bt, 1, E), lambda b: (b, 0, 0)),
    ] + [rep_spec(a) for a in inputs[3:]]

    grid_spec = pltpu.PrefetchScalarGridSpec(
        num_scalar_prefetch=0,
        grid=(B // Bt,),
        in_specs=in_specs,
        out_specs=pl.BlockSpec((Bt, HW, Cout), lambda b: (b, 0, 0)),
    )

    out = pl.pallas_call(
        functools.partial(resblock_shift_kernel, H=H, W=W),
        out_shape=jax.ShapeDtypeStruct((B, HW, Cout), jnp.float32),
        grid_spec=grid_spec,
        compiler_params=pltpu.CompilerParams(
            dimension_semantics=("parallel",)),   # batch axis is independent -> 2x on v7x megacore
    )(*inputs)
    return out.reshape(B, H, W, Cout)


# ---------------- parameter init (deterministic, synthetic) ----------------
def init_params(key, cin, cout, emb_ch, groups=GROUPS):
    ks = jax.random.split(key, 12)

    def grp_mat(c):
        cpg = c // groups
        gid = jnp.arange(c) // cpg
        return (gid[:, None] == gid[None, :]).astype(jnp.float32) / cpg

    def bf16_round(w):   # kernel uses bf16 conv weights; share rounding with the reference
        return w.astype(jnp.bfloat16).astype(jnp.float32)

    w1_hwio = bf16_round(0.1 * jax.random.normal(ks[0], (3, 3, cin, cout), jnp.float32))
    # NOTE: PyTorch zero_module() zeroes the final conv at init; we use small
    # nonzero deterministic weights so the kernel path is numerically exercised.
    w2_hwio = bf16_round(0.05 * jax.random.normal(ks[1], (3, 3, cout, cout), jnp.float32))
    we = 0.1 * jax.random.normal(ks[2], (emb_ch, 2 * cout), jnp.float32)
    wz = 0.1 * jax.random.normal(ks[3], (emb_ch, 2 * cout), jnp.float32)
    be = 0.1 * jax.random.normal(ks[4], (2 * cout,), jnp.float32)
    bz = 0.1 * jax.random.normal(ks[5], (2 * cout,), jnp.float32)

    params = dict(
        gn1_g=1.0 + 0.1 * jax.random.normal(ks[6], (1, cin), jnp.float32),
        gn1_b=0.1 * jax.random.normal(ks[7], (1, cin), jnp.float32),
        grp1=grp_mat(cin),
        w1=w1_hwio.reshape(9 * cin, cout).astype(jnp.bfloat16),
        b1=0.1 * jax.random.normal(ks[8], (1, cout), jnp.float32),
        gn2_g=1.0 + 0.1 * jax.random.normal(ks[9], (1, cout), jnp.float32),
        gn2_b=0.1 * jax.random.normal(ks[10], (1, cout), jnp.float32),
        grp2=grp_mat(cout),
        w_es=we[:, :cout], b_es=be[:cout].reshape(1, cout),
        w_eh=we[:, cout:], b_eh=be[cout:].reshape(1, cout),
        w_zs=wz[:, :cout], b_zs=bz[:cout].reshape(1, cout),
        w_zh=wz[:, cout:], b_zh=bz[cout:].reshape(1, cout),
        w2=w2_hwio.reshape(9 * cout, cout).astype(jnp.bfloat16),
        b2=0.05 * jax.random.normal(ks[11], (1, cout), jnp.float32),
        _w1_hwio=w1_hwio,
        _w2_hwio=w2_hwio,
    )
    return params


# ---------------- pure-JAX reference (for correctness check) ----------------
def _groupnorm_nhwc(h, gamma, beta, groups, eps=EPS):
    B, H, W, C = h.shape
    cpg = C // groups
    hg = h.reshape(B, H, W, groups, cpg)
    mean = jnp.mean(hg, axis=(1, 2, 4), keepdims=True)
    var = jnp.mean((hg - mean) ** 2, axis=(1, 2, 4), keepdims=True)
    hn = ((hg - mean) * lax.rsqrt(var + eps)).reshape(B, H, W, C)
    return hn * gamma.reshape(1, 1, 1, C) + beta.reshape(1, 1, 1, C)


def _conv3x3_same(h, w_hwio, b):
    out = lax.conv_general_dilated(h, w_hwio, (1, 1), "SAME",
                                   dimension_numbers=("NHWC", "HWIO", "NHWC"),
                                   precision=lax.Precision.HIGHEST)
    return out + b.reshape(1, 1, 1, -1)


def reference_forward(x, emb, emb_z, p):
    HIGH = lax.Precision.HIGHEST
    h = _conv3x3_same(_silu(_groupnorm_nhwc(x, p["gn1_g"], p["gn1_b"], GROUPS)),
                      p["_w1_hwio"], p["b1"])
    e = _silu(emb)
    scale = jnp.dot(e, p["w_es"], precision=HIGH) + p["b_es"]
    shift = jnp.dot(e, p["w_eh"], precision=HIGH) + p["b_eh"]
    ez = _silu(emb_z)
    zscale = jnp.dot(ez, p["w_zs"], precision=HIGH) + p["b_zs"]
    zshift = jnp.dot(ez, p["w_zh"], precision=HIGH) + p["b_zh"]
    hn = _groupnorm_nhwc(h, p["gn2_g"], p["gn2_b"], GROUPS)
    h = ((1.0 + zscale[:, None, None, :]) *
         (hn * (1.0 + scale[:, None, None, :]) + shift[:, None, None, :])
         + zshift[:, None, None, :])
    h = _conv3x3_same(_silu(h), p["_w2_hwio"], p["b2"])
    return x + h


if __name__ == "__main__":
    B, H, W, C, E = 2, 8, 8, 64, 32   # channels must be divisible by 32 (GroupNorm(32, C))
    key = jax.random.PRNGKey(0)
    kx, ke, kz, kp = jax.random.split(key, 4)
    x = jax.random.normal(kx, (B, H, W, C), jnp.float32)       # NHWC
    emb = jax.random.normal(ke, (B, E), jnp.float32)
    emb_z = jax.random.normal(kz, (B, E), jnp.float32)
    params = init_params(kp, C, C, E)

    out = jax.block_until_ready(resblock_shift_forward(x, emb, emb_z, params))
    ref = jax.block_until_ready(reference_forward(x, emb, emb_z, params))

    assert out.shape == (B, H, W, C)
    err = float(jnp.max(jnp.abs(out - ref)))
    assert err < 5e-2, f"max abs err {err}"   # bf16 conv operands vs f32 reference
    print("KERNEL_OK")
</pallas_src>

<mosaic_0001>
module attributes {stable_mosaic.version = 11 : i64} {
  func.func @resblock_shift_kernel(%arg0: i32, %arg1: memref<2x64x64xf32, #tpu.memory_space<vmem>>, %arg2: memref<2x1x32xf32, #tpu.memory_space<vmem>>, %arg3: memref<2x1x32xf32, #tpu.memory_space<vmem>>, %arg4: memref<1x64xf32, #tpu.memory_space<vmem>>, %arg5: memref<1x64xf32, #tpu.memory_space<vmem>>, %arg6: memref<64x64xf32, #tpu.memory_space<vmem>>, %arg7: memref<576x64xbf16, #tpu.memory_space<vmem>>, %arg8: memref<1x64xf32, #tpu.memory_space<vmem>>, %arg9: memref<1x64xf32, #tpu.memory_space<vmem>>, %arg10: memref<1x64xf32, #tpu.memory_space<vmem>>, %arg11: memref<64x64xf32, #tpu.memory_space<vmem>>, %arg12: memref<32x64xf32, #tpu.memory_space<vmem>>, %arg13: memref<1x64xf32, #tpu.memory_space<vmem>>, %arg14: memref<32x64xf32, #tpu.memory_space<vmem>>, %arg15: memref<1x64xf32, #tpu.memory_space<vmem>>, %arg16: memref<32x64xf32, #tpu.memory_space<vmem>>, %arg17: memref<1x64xf32, #tpu.memory_space<vmem>>, %arg18: memref<32x64xf32, #tpu.memory_space<vmem>>, %arg19: memref<1x64xf32, #tpu.memory_space<vmem>>, %arg20: memref<576x64xbf16, #tpu.memory_space<vmem>>, %arg21: memref<1x64xf32, #tpu.memory_space<vmem>>, %arg22: memref<2x64x64xf32, #tpu.memory_space<vmem>>) attributes {dimension_semantics = [#tpu.dimension_semantics<parallel>], iteration_bounds = array<i64: 1>, scalar_prefetch = 0 : i64, scratch_operands = 0 : i64, tpu.core_type = #tpu.core_type<tc>, window_params = [{transform_indices = @transform_0, window_bounds = array<i64: 2, 64, 64>}, {transform_indices = @transform_1, window_bounds = array<i64: 2, 1, 32>}, {transform_indices = @transform_2, window_bounds = array<i64: 2, 1, 32>}, {pipeline_mode = #tpu.pipeline_mode<synchronous>, transform_indices = @transform_3, window_bounds = array<i64: 1, 64>}, {pipeline_mode = #tpu.pipeline_mode<synchronous>, transform_indices = @transform_4, window_bounds = array<i64: 1, 64>}, {pipeline_mode = #tpu.pipeline_mode<synchronous>, transform_indices = @transform_5, window_bounds = array<i64: 64, 64>}, {pipeline_mode = #tpu.pipeline_mode<synchronous>, transform_indices = @transform_6, window_bounds = array<i64: 576, 64>}, {pipeline_mode = #tpu.pipeline_mode<synchronous>, transform_indices = @transform_7, window_bounds = array<i64: 1, 64>}, {pipeline_mode = #tpu.pipeline_mode<synchronous>, transform_indices = @transform_8, window_bounds = array<i64: 1, 64>}, {pipeline_mode = #tpu.pipeline_mode<synchronous>, transform_indices = @transform_9, window_bounds = array<i64: 1, 64>}, {pipeline_mode = #tpu.pipeline_mode<synchronous>, transform_indices = @transform_10, window_bounds = array<i64: 64, 64>}, {pipeline_mode = #tpu.pipeline_mode<synchronous>, transform_indices = @transform_11, window_bounds = array<i64: 32, 64>}, {pipeline_mode = #tpu.pipeline_mode<synchronous>, transform_indices = @transform_12, window_bounds = array<i64: 1, 64>}, {pipeline_mode = #tpu.pipeline_mode<synchronous>, transform_indices = @transform_13, window_bounds = array<i64: 32, 64>}, {pipeline_mode = #tpu.pipeline_mode<synchronous>, transform_indices = @transform_14, window_bounds = array<i64: 1, 64>}, {pipeline_mode = #tpu.pipeline_mode<synchronous>, transform_indices = @transform_15, window_bounds = array<i64: 32, 64>}, {pipeline_mode = #tpu.pipeline_mode<synchronous>, transform_indices = @transform_16, window_bounds = array<i64: 1, 64>}, {pipeline_mode = #tpu.pipeline_mode<synchronous>, transform_indices = @transform_17, window_bounds = array<i64: 32, 64>}, {pipeline_mode = #tpu.pipeline_mode<synchronous>, transform_indices = @transform_18, window_bounds = array<i64: 1, 64>}, {pipeline_mode = #tpu.pipeline_mode<synchronous>, transform_indices = @transform_19, window_bounds = array<i64: 576, 64>}, {pipeline_mode = #tpu.pipeline_mode<synchronous>, transform_indices = @transform_20, window_bounds = array<i64: 1, 64>}, {transform_indices = @transform_21, window_bounds = array<i64: 2, 64, 64>}]} {
    %c0 = arith.constant 0 : index
    %c0_0 = arith.constant 0 : index
    %c0_1 = arith.constant 0 : index
    %0 = vector.load %arg1[%c0, %c0_0, %c0_1] : memref<2x64x64xf32, #tpu.memory_space<vmem>>, vector<2x64x64xf32>
    %cst = arith.constant dense<0.000000e+00> : vector<2x64xf32>
    %1 = vector.multi_reduction <add>, %0, %cst [1] : vector<2x64x64xf32> to vector<2x64xf32>
    %cst_2 = arith.constant 1.562500e-02 : f32
    %2 = vector.broadcast %cst_2 : f32 to vector<2x64xf32>
    %3 = arith.mulf %1, %2 : vector<2x64xf32>
    %c0_3 = arith.constant 0 : index
    %c0_4 = arith.constant 0 : index
    %4 = vector.load %arg6[%c0_3, %c0_4] : memref<64x64xf32, #tpu.memory_space<vmem>>, vector<64x64xf32>
    %cst_5 = arith.constant dense<0.000000e+00> : vector<2x64xf32>
    %5 = tpu.matmul %3, %4, %cst_5 {dimension_numbers = #tpu.dot_dimension_numbers<[1], [0], [0], [1], [0, 0, 1, 1], [], []>, precision = #tpu.contract_precision<fp32>} : vector<2x64xf32>, vector<64x64xf32>, vector<2x64xf32> -> vector<2x64xf32>
    %6 = vector.shape_cast %5 : vector<2x64xf32> to vector<2x1x64xf32>
    %7 = vector.broadcast %6 : vector<2x1x64xf32> to vector<2x64x64xf32>
    %8 = arith.subf %0, %7 : vector<2x64x64xf32>
    %9 = arith.mulf %8, %8 : vector<2x64x64xf32>
    %cst_6 = arith.constant dense<0.000000e+00> : vector<2x64xf32>
    %10 = vector.multi_reduction <add>, %9, %cst_6 [1] : vector<2x64x64xf32> to vector<2x64xf32>
    %cst_7 = arith.constant 1.562500e-02 : f32
    %11 = vector.broadcast %cst_7 : f32 to vector<2x64xf32>
    %12 = arith.mulf %10, %11 : vector<2x64xf32>
    %c0_8 = arith.constant 0 : index
    %c0_9 = arith.constant 0 : index
    %13 = vector.load %arg6[%c0_8, %c0_9] : memref<64x64xf32, #tpu.memory_space<vmem>>, vector<64x64xf32>
    %cst_10 = arith.constant dense<0.000000e+00> : vector<2x64xf32>
    %14 = tpu.matmul %12, %13, %cst_10 {dimension_numbers = #tpu.dot_dimension_numbers<[1], [0], [0], [1], [0, 0, 1, 1], [], []>, precision = #tpu.contract_precision<fp32>} : vector<2x64xf32>, vector<64x64xf32>, vector<2x64xf32> -> vector<2x64xf32>
    %cst_11 = arith.constant 9.99999974E-6 : f32
    %15 = vector.broadcast %cst_11 : f32 to vector<2x64xf32>
    %16 = arith.addf %14, %15 : vector<2x64xf32>
    %17 = math.rsqrt %16 : vector<2x64xf32>
    %c0_12 = arith.constant 0 : index
    %c0_13 = arith.constant 0 : index
    %18 = vector.load %arg4[%c0_12, %c0_13] : memref<1x64xf32, #tpu.memory_space<vmem>>, vector<1x64xf32>
    %19 = vector.broadcast %18 : vector<1x64xf32> to vector<2x64xf32>
    %20 = arith.mulf %19, %17 : vector<2x64xf32>
    %21 = vector.shape_cast %20 : vector<2x64xf32> to vector<2x1x64xf32>
    %22 = vector.broadcast %21 : vector<2x1x64xf32> to vector<2x64x64xf32>
    %23 = arith.mulf %8, %22 : vector<2x64x64xf32>
    %c0_14 = arith.constant 0 : index
    %c0_15 = arith.constant 0 : index
    %24 = vector.load %arg5[%c0_14, %c0_15] : memref<1x64xf32, #tpu.memory_space<vmem>>, vector<1x64xf32>
    %25 = vector.shape_cast %24 : vector<1x64xf32> to vector<1x1x64xf32>
    %26 = vector.broadcast %25 : vector<1x1x64xf32> to vector<2x64x64xf32>
    %27 = arith.addf %23, %26 : vector<2x64x64xf32>
    %28 = arith.negf %27 : vector<2x64x64xf32>
    %29 = math.exp %28 : vector<2x64x64xf32>
    %cst_16 = arith.constant 1.000000e+00 : f32
    %30 = vector.broadcast %cst_16 : f32 to vector<2x64x64xf32>
    %31 = arith.addf %30, %29 : vector<2x64x64xf32>
    %32 = arith.divf %30, %31 : vector<2x64x64xf32>
    %33 = arith.mulf %27, %32 : vector<2x64x64xf32>
    %34 = vector.shape_cast %33 : vector<2x64x64xf32> to vector<2x8x8x64xf32>
    %cst_17 = arith.constant 0.000000e+00 : f32
    %35 = vector.broadcast %cst_17 : f32 to vector<2x1x8x64xf32>
    %36 = tpu.concatenate %35, %34, %35 in 1 : vector<2x1x8x64xf32>, vector<2x8x8x64xf32>, vector<2x1x8x64xf32> -> vector<2x10x8x64xf32>
    %cst_18 = arith.constant 0.000000e+00 : f32
    %37 = vector.broadcast %cst_18 : f32 to vector<2x10x1x64xf32>
    %38 = tpu.concatenate %37, %36, %37 in 2 : vector<2x10x1x64xf32>, vector<2x10x8x64xf32>, vector<2x10x1x64xf32> -> vector<2x10x10x64xf32>
    %39 = vector.extract_strided_slice %38 {offsets = [0, 0, 0, 0], sizes = [2, 8, 8, 64], strides = [1, 1, 1, 1]} : vector<2x10x10x64xf32> to vector<2x8x8x64xf32>
    %40 = vector.extract_strided_slice %38 {offsets = [0, 0, 1, 0], sizes = [2, 8, 8, 64], strides = [1, 1, 1, 1]} : vector<2x10x10x64xf32> to vector<2x8x8x64xf32>
    %41 = vector.extract_strided_slice %38 {offsets = [0, 0, 2, 0], sizes = [2, 8, 8, 64], strides = [1, 1, 1, 1]} : vector<2x10x10x64xf32> to vector<2x8x8x64xf32>
    %42 = vector.extract_strided_slice %38 {offsets = [0, 1, 0, 0], sizes = [2, 8, 8, 64], strides = [1, 1, 1, 1]} : vector<2x10x10x64xf32> to vector<2x8x8x64xf32>
    %43 = vector.extract_strided_slice %38 {offsets = [0, 1, 1, 0], sizes = [2, 8, 8, 64], strides = [1, 1, 1, 1]} : vector<2x10x10x64xf32> to vector<2x8x8x64xf32>
    %44 = vector.extract_strided_slice %38 {offsets = [0, 1, 2, 0], sizes = [2, 8, 8, 64], strides = [1, 1, 1, 1]} : vector<2x10x10x64xf32> to vector<2x8x8x64xf32>
    %45 = vector.extract_strided_slice %38 {offsets = [0, 2, 0, 0], sizes = [2, 8, 8, 64], strides = [1, 1, 1, 1]} : vector<2x10x10x64xf32> to vector<2x8x8x64xf32>
    %46 = vector.extract_strided_slice %38 {offsets = [0, 2, 1, 0], sizes = [2, 8, 8, 64], strides = [1, 1, 1, 1]} : vector<2x10x10x64xf32> to vector<2x8x8x64xf32>
    %47 = vector.extract_strided_slice %38 {offsets = [0, 2, 2, 0], sizes = [2, 8, 8, 64], strides = [1, 1, 1, 1]} : vector<2x10x10x64xf32> to vector<2x8x8x64xf32>
    %48 = tpu.concatenate %39, %40, %41, %42, %43, %44, %45, %46, %47 in 3 : vector<2x8x8x64xf32>, vector<2x8x8x64xf32>, vector<2x8x8x64xf32>, vector<2x8x8x64xf32>, vector<2x8x8x64xf32>, vector<2x8x8x64xf32>, vector<2x8x8x64xf32>, vector<2x8x8x64xf32>, vector<2x8x8x64xf32> -> vector<2x8x8x576xf32>
    %49 = vector.shape_cast %48 : vector<2x8x8x576xf32> to vector<128x576xf32>
    %50 = arith.truncf %49 : vector<128x576xf32> to vector<128x576xbf16>
    %c0_19 = arith.constant 0 : index
    %c0_20 = arith.constant 0 : index
    %51 = vector.load %arg7[%c0_19, %c0_20] : memref<576x64xbf16, #tpu.memory_space<vmem>>, vector<576x64xbf16>
    %cst_21 = arith.constant dense<0.000000e+00> : vector<128x64xf32>
    %52 = tpu.matmul %50, %51, %cst_21 {dimension_numbers = #tpu.dot_dimension_numbers<[1], [0], [0], [1], [0, 0, 1, 1], [], []>} : vector<128x576xbf16>, vector<576x64xbf16>, vector<128x64xf32> -> vector<128x64xf32>
    %53 = vector.shape_cast %52 : vector<128x64xf32> to vector<2x64x64xf32>
    %c0_22 = arith.constant 0 : index
    %c0_23 = arith.constant 0 : index
    %54 = vector.load %arg8[%c0_22, %c0_23] : memref<1x64xf32, #tpu.memory_space<vmem>>, vector<1x64xf32>
    %55 = vector.shape_cast %54 : vector<1x64xf32> to vector<1x1x64xf32>
    %56 = vector.broadcast %55 : vector<1x1x64xf32> to vector<2x64x64xf32>
    %57 = arith.addf %53, %56 : vector<2x64x64xf32>
    %c0_24 = arith.constant 0 : index
    %c0_25 = arith.constant 0 : index
    %c0_26 = arith.constant 0 : index
    %58 = vector.load %arg2[%c0_24, %c0_25, %c0_26] : memref<2x1x32xf32, #tpu.memory_space<vmem>>, vector<2x1x32xf32>
    %59 = vector.shape_cast %58 : vector<2x1x32xf32> to vector<2x32xf32>
    %60 = arith.negf %59 : vector<2x32xf32>
    %61 = math.exp %60 : vector<2x32xf32>
    %cst_27 = arith.constant 1.000000e+00 : f32
    %62 = vector.broadcast %cst_27 : f32 to vector<2x32xf32>
    %63 = arith.addf %62, %61 : vector<2x32xf32>
    %64 = arith.divf %62, %63 : vector<2x32xf32>
    %65 = arith.mulf %59, %64 : vector<2x32xf32>
    %c0_28 = arith.constant 0 : index
    %c0_29 = arith.constant 0 : index
    %c0_30 = arith.constant 0 : index
    %66 = vector.load %arg3[%c0_28, %c0_29, %c0_30] : memref<2x1x32xf32, #tpu.memory_space<vmem>>, vector<2x1x32xf32>
    %67 = vector.shape_cast %66 : vector<2x1x32xf32> to vector<2x32xf32>
    %68 = arith.negf %67 : vector<2x32xf32>
    %69 = math.exp %68 : vector<2x32xf32>
    %cst_31 = arith.constant 1.000000e+00 : f32
    %70 = vector.broadcast %cst_31 : f32 to vector<2x32xf32>
    %71 = arith.addf %70, %69 : vector<2x32xf32>
    %72 = arith.divf %70, %71 : vector<2x32xf32>
    %73 = arith.mulf %67, %72 : vector<2x32xf32>
    %c0_32 = arith.constant 0 : index
    %c0_33 = arith.constant 0 : index
    %74 = vector.load %arg12[%c0_32, %c0_33] : memref<32x64xf32, #tpu.memory_space<vmem>>, vector<32x64xf32>
    %cst_34 = arith.constant dense<0.000000e+00> : vector<2x64xf32>
    %75 = tpu.matmul %65, %74, %cst_34 {dimension_numbers = #tpu.dot_dimension_numbers<[1], [0], [0], [1], [0, 0, 1, 1], [], []>, precision = #tpu.contract_precision<fp32>} : vector<2x32xf32>, vector<32x64xf32>, vector<2x64xf32> -> vector<2x64xf32>
    %c0_35 = arith.constant 0 : index
    %c0_36 = arith.constant 0 : index
    %76 = vector.load %arg13[%c0_35, %c0_36] : memref<1x64xf32, #tpu.memory_space<vmem>>, vector<1x64xf32>
    %77 = vector.broadcast %76 : vector<1x64xf32> to vector<2x64xf32>
    %78 = arith.addf %75, %77 : vector<2x64xf32>
    %c0_37 = arith.constant 0 : index
    %c0_38 = arith.constant 0 : index
    %79 = vector.load %arg14[%c0_37, %c0_38] : memref<32x64xf32, #tpu.memory_space<vmem>>, vector<32x64xf32>
    %cst_39 = arith.constant dense<0.000000e+00> : vector<2x64xf32>
    %80 = tpu.matmul %65, %79, %cst_39 {dimension_numbers = #tpu.dot_dimension_numbers<[1], [0], [0], [1], [0, 0, 1, 1], [], []>, precision = #tpu.contract_precision<fp32>} : vector<2x32xf32>, vector<32x64xf32>, vector<2x64xf32> -> vector<2x64xf32>
    %c0_40 = arith.constant 0 : index
    %c0_41 = arith.constant 0 : index
    %81 = vector.load %arg15[%c0_40, %c0_41] : memref<1x64xf32, #tpu.memory_space<vmem>>, vector<1x64xf32>
    %82 = vector.broadcast %81 : vector<1x64xf32> to vector<2x64xf32>
    %83 = arith.addf %80, %82 : vector<2x64xf32>
    %c0_42 = arith.constant 0 : index
    %c0_43 = arith.constant 0 : index
    %84 = vector.load %arg16[%c0_42, %c0_43] : memref<32x64xf32, #tpu.memory_space<vmem>>, vector<32x64xf32>
    %cst_44 = arith.constant dense<0.000000e+00> : vector<2x64xf32>
    %85 = tpu.matmul %73, %84, %cst_44 {dimension_numbers = #tpu.dot_dimension_numbers<[1], [0], [0], [1], [0, 0, 1, 1], [], []>, precision = #tpu.contract_precision<fp32>} : vector<2x32xf32>, vector<32x64xf32>, vector<2x64xf32> -> vector<2x64xf32>
    %c0_45 = arith.constant 0 : index
    %c0_46 = arith.constant 0 : index
    %86 = vector.load %arg17[%c0_45, %c0_46] : memref<1x64xf32, #tpu.memory_space<vmem>>, vector<1x64xf32>
    %87 = vector.broadcast %86 : vector<1x64xf32> to vector<2x64xf32>
    %88 = arith.addf %85, %87 : vector<2x64xf32>
    %c0_47 = arith.constant 0 : index
    %c0_48 = arith.constant 0 : index
    %89 = vector.load %arg18[%c0_47, %c0_48] : memref<32x64xf32, #tpu.memory_space<vmem>>, vector<32x64xf32>
    %cst_49 = arith.constant dense<0.000000e+00> : vector<2x64xf32>
    %90 = tpu.matmul %73, %89, %cst_49 {dimension_numbers = #tpu.dot_dimension_numbers<[1], [0], [0], [1], [0, 0, 1, 1], [], []>, precision = #tpu.contract_precision<fp32>} : vector<2x32xf32>, vector<32x64xf32>, vector<2x64xf32> -> vector<2x64xf32>
    %c0_50 = arith.constant 0 : index
    %c0_51 = arith.constant 0 : index
    %91 = vector.load %arg19[%c0_50, %c0_51] : memref<1x64xf32, #tpu.memory_space<vmem>>, vector<1x64xf32>
    %92 = vector.broadcast %91 : vector<1x64xf32> to vector<2x64xf32>
    %93 = arith.addf %90, %92 : vector<2x64xf32>
    %cst_52 = arith.constant dense<0.000000e+00> : vector<2x64xf32>
    %94 = vector.multi_reduction <add>, %57, %cst_52 [1] : vector<2x64x64xf32> to vector<2x64xf32>
    %cst_53 = arith.constant 1.562500e-02 : f32
    %95 = vector.broadcast %cst_53 : f32 to vector<2x64xf32>
    %96 = arith.mulf %94, %95 : vector<2x64xf32>
    %c0_54 = arith.constant 0 : index
    %c0_55 = arith.constant 0 : index
    %97 = vector.load %arg11[%c0_54, %c0_55] : memref<64x64xf32, #tpu.memory_space<vmem>>, vector<64x64xf32>
    %cst_56 = arith.constant dense<0.000000e+00> : vector<2x64xf32>
    %98 = tpu.matmul %96, %97, %cst_56 {dimension_numbers = #tpu.dot_dimension_numbers<[1], [0], [0], [1], [0, 0, 1, 1], [], []>, precision = #tpu.contract_precision<fp32>} : vector<2x64xf32>, vector<64x64xf32>, vector<2x64xf32> -> vector<2x64xf32>
    %99 = vector.shape_cast %98 : vector<2x64xf32> to vector<2x1x64xf32>
    %100 = vector.broadcast %99 : vector<2x1x64xf32> to vector<2x64x64xf32>
    %101 = arith.subf %57, %100 : vector<2x64x64xf32>
    %102 = arith.mulf %101, %101 : vector<2x64x64xf32>
    %cst_57 = arith.constant dense<0.000000e+00> : vector<2x64xf32>
    %103 = vector.multi_reduction <add>, %102, %cst_57 [1] : vector<2x64x64xf32> to vector<2x64xf32>
    %cst_58 = arith.constant 1.562500e-02 : f32
    %104 = vector.broadcast %cst_58 : f32 to vector<2x64xf32>
    %105 = arith.mulf %103, %104 : vector<2x64xf32>
    %c0_59 = arith.constant 0 : index
    %c0_60 = arith.constant 0 : index
    %106 = vector.load %arg11[%c0_59, %c0_60] : memref<64x64xf32, #tpu.memory_space<vmem>>, vector<64x64xf32>
    %cst_61 = arith.constant dense<0.000000e+00> : vector<2x64xf32>
    %107 = tpu.matmul %105, %106, %cst_61 {dimension_numbers = #tpu.dot_dimension_numbers<[1], [0], [0], [1], [0, 0, 1, 1], [], []>, precision = #tpu.contract_precision<fp32>} : vector<2x64xf32>, vector<64x64xf32>, vector<2x64xf32> -> vector<2x64xf32>
    %cst_62 = arith.constant 9.99999974E-6 : f32
    %108 = vector.broadcast %cst_62 : f32 to vector<2x64xf32>
    %109 = arith.addf %107, %108 : vector<2x64xf32>
    %110 = math.rsqrt %109 : vector<2x64xf32>
    %c0_63 = arith.constant 0 : index
    %c0_64 = arith.constant 0 : index
    %111 = vector.load %arg9[%c0_63, %c0_64] : memref<1x64xf32, #tpu.memory_space<vmem>>, vector<1x64xf32>
    %112 = vector.broadcast %111 : vector<1x64xf32> to vector<2x64xf32>
    %113 = arith.mulf %112, %110 : vector<2x64xf32>
    %114 = vector.shape_cast %113 : vector<2x64xf32> to vector<2x1x64xf32>
    %115 = vector.broadcast %114 : vector<2x1x64xf32> to vector<2x64x64xf32>
    %116 = arith.mulf %101, %115 : vector<2x64x64xf32>
    %c0_65 = arith.constant 0 : index
    %c0_66 = arith.constant 0 : index
    %117 = vector.load %arg10[%c0_65, %c0_66] : memref<1x64xf32, #tpu.memory_space<vmem>>, vector<1x64xf32>
    %118 = vector.shape_cast %117 : vector<1x64xf32> to vector<1x1x64xf32>
    %119 = vector.broadcast %118 : vector<1x1x64xf32> to vector<2x64x64xf32>
    %120 = arith.addf %116, %119 : vector<2x64x64xf32>
    %cst_67 = arith.constant 1.000000e+00 : f32
    %121 = vector.broadcast %cst_67 : f32 to vector<2x64xf32>
    %122 = arith.addf %121, %88 : vector<2x64xf32>
    %123 = vector.shape_cast %122 : vector<2x64xf32> to vector<2x1x64xf32>
    %cst_68 = arith.constant 1.000000e+00 : f32
    %124 = vector.broadcast %cst_68 : f32 to vector<2x64xf32>
    %125 = arith.addf %124, %78 : vector<2x64xf32>
    %126 = vector.shape_cast %125 : vector<2x64xf32> to vector<2x1x64xf32>
    %127 = vector.broadcast %126 : vector<2x1x64xf32> to vector<2x64x64xf32>
    %128 = arith.mulf %120, %127 : vector<2x64x64xf32>
    %129 = vector.shape_cast %83 : vector<2x64xf32> to vector<2x1x64xf32>
    %130 = vector.broadcast %129 : vector<2x1x64xf32> to vector<2x64x64xf32>
    %131 = arith.addf %128, %130 : vector<2x64x64xf32>
    %132 = vector.broadcast %123 : vector<2x1x64xf32> to vector<2x64x64xf32>
    %133 = arith.mulf %132, %131 : vector<2x64x64xf32>
    %134 = vector.shape_cast %93 : vector<2x64xf32> to vector<2x1x64xf32>
    %135 = vector.broadcast %134 : vector<2x1x64xf32> to vector<2x64x64xf32>
    %136 = arith.addf %133, %135 : vector<2x64x64xf32>
    %137 = arith.negf %136 : vector<2x64x64xf32>
    %138 = math.exp %137 : vector<2x64x64xf32>
    %cst_69 = arith.constant 1.000000e+00 : f32
    %139 = vector.broadcast %cst_69 : f32 to vector<2x64x64xf32>
    %140 = arith.addf %139, %138 : vector<2x64x64xf32>
    %141 = arith.divf %139, %140 : vector<2x64x64xf32>
    %142 = arith.mulf %136, %141 : vector<2x64x64xf32>
    %143 = vector.shape_cast %142 : vector<2x64x64xf32> to vector<2x8x8x64xf32>
    %cst_70 = arith.constant 0.000000e+00 : f32
    %144 = vector.broadcast %cst_70 : f32 to vector<2x1x8x64xf32>
    %145 = tpu.concatenate %144, %143, %144 in 1 : vector<2x1x8x64xf32>, vector<2x8x8x64xf32>, vector<2x1x8x64xf32> -> vector<2x10x8x64xf32>
    %cst_71 = arith.constant 0.000000e+00 : f32
    %146 = vector.broadcast %cst_71 : f32 to vector<2x10x1x64xf32>
    %147 = tpu.concatenate %146, %145, %146 in 2 : vector<2x10x1x64xf32>, vector<2x10x8x64xf32>, vector<2x10x1x64xf32> -> vector<2x10x10x64xf32>
    %148 = vector.extract_strided_slice %147 {offsets = [0, 0, 0, 0], sizes = [2, 8, 8, 64], strides = [1, 1, 1, 1]} : vector<2x10x10x64xf32> to vector<2x8x8x64xf32>
    %149 = vector.extract_strided_slice %147 {offsets = [0, 0, 1, 0], sizes = [2, 8, 8, 64], strides = [1, 1, 1, 1]} : vector<2x10x10x64xf32> to vector<2x8x8x64xf32>
    %150 = vector.extract_strided_slice %147 {offsets = [0, 0, 2, 0], sizes = [2, 8, 8, 64], strides = [1, 1, 1, 1]} : vector<2x10x10x64xf32> to vector<2x8x8x64xf32>
    %151 = vector.extract_strided_slice %147 {offsets = [0, 1, 0, 0], sizes = [2, 8, 8, 64], strides = [1, 1, 1, 1]} : vector<2x10x10x64xf32> to vector<2x8x8x64xf32>
    %152 = vector.extract_strided_slice %147 {offsets = [0, 1, 1, 0], sizes = [2, 8, 8, 64], strides = [1, 1, 1, 1]} : vector<2x10x10x64xf32> to vector<2x8x8x64xf32>
    %153 = vector.extract_strided_slice %147 {offsets = [0, 1, 2, 0], sizes = [2, 8, 8, 64], strides = [1, 1, 1, 1]} : vector<2x10x10x64xf32> to vector<2x8x8x64xf32>
    %154 = vector.extract_strided_slice %147 {offsets = [0, 2, 0, 0], sizes = [2, 8, 8, 64], strides = [1, 1, 1, 1]} : vector<2x10x10x64xf32> to vector<2x8x8x64xf32>
    %155 = vector.extract_strided_slice %147 {offsets = [0, 2, 1, 0], sizes = [2, 8, 8, 64], strides = [1, 1, 1, 1]} : vector<2x10x10x64xf32> to vector<2x8x8x64xf32>
    %156 = vector.extract_strided_slice %147 {offsets = [0, 2, 2, 0], sizes = [2, 8, 8, 64], strides = [1, 1, 1, 1]} : vector<2x10x10x64xf32> to vector<2x8x8x64xf32>
    %157 = tpu.concatenate %148, %149, %150, %151, %152, %153, %154, %155, %156 in 3 : vector<2x8x8x64xf32>, vector<2x8x8x64xf32>, vector<2x8x8x64xf32>, vector<2x8x8x64xf32>, vector<2x8x8x64xf32>, vector<2x8x8x64xf32>, vector<2x8x8x64xf32>, vector<2x8x8x64xf32>, vector<2x8x8x64xf32> -> vector<2x8x8x576xf32>
    %158 = vector.shape_cast %157 : vector<2x8x8x576xf32> to vector<128x576xf32>
    %159 = arith.truncf %158 : vector<128x576xf32> to vector<128x576xbf16>
    %c0_72 = arith.constant 0 : index
    %c0_73 = arith.constant 0 : index
    %160 = vector.load %arg20[%c0_72, %c0_73] : memref<576x64xbf16, #tpu.memory_space<vmem>>, vector<576x64xbf16>
    %cst_74 = arith.constant dense<0.000000e+00> : vector<128x64xf32>
    %161 = tpu.matmul %159, %160, %cst_74 {dimension_numbers = #tpu.dot_dimension_numbers<[1], [0], [0], [1], [0, 0, 1, 1], [], []>} : vector<128x576xbf16>, vector<576x64xbf16>, vector<128x64xf32> -> vector<128x64xf32>
    %162 = vector.shape_cast %161 : vector<128x64xf32> to vector<2x64x64xf32>
    %c0_75 = arith.constant 0 : index
    %c0_76 = arith.constant 0 : index
    %163 = vector.load %arg21[%c0_75, %c0_76] : memref<1x64xf32, #tpu.memory_space<vmem>>, vector<1x64xf32>
    %164 = vector.shape_cast %163 : vector<1x64xf32> to vector<1x1x64xf32>
    %165 = vector.broadcast %164 : vector<1x1x64xf32> to vector<2x64x64xf32>
    %166 = arith.addf %162, %165 : vector<2x64x64xf32>
    %167 = arith.addf %0, %166 : vector<2x64x64xf32>
    %c0_77 = arith.constant 0 : index
    %c0_78 = arith.constant 0 : index
    %c0_79 = arith.constant 0 : index
    %168 = vector.load %arg22[%c0_77, %c0_78, %c0_79] : memref<2x64x64xf32, #tpu.memory_space<vmem>>, vector<2x64x64xf32>
    tpu.vector_store %arg22[%c0_77, %c0_78, %c0_79], %167 {strides = array<i32>} : memref<2x64x64xf32, #tpu.memory_space<vmem>>, vector<2x64x64xf32>,
    return
  }
  func.func @transform_0(%arg0: i32) -> (i32, i32, i32) {
    %c0_i32 = arith.constant 0 : i32
    %c0_i32_0 = arith.constant 0 : i32
    %c0_i32_1 = arith.constant 0 : i32
    return %arg0, %c0_i32, %c0_i32_0 : i32, i32, i32
  }
  func.func @transform_1(%arg0: i32) -> (i32, i32, i32) {
    %c0_i32 = arith.constant 0 : i32
    %c0_i32_0 = arith.constant 0 : i32
    %c0_i32_1 = arith.constant 0 : i32
    return %arg0, %c0_i32, %c0_i32_0 : i32, i32, i32
  }
  func.func @transform_2(%arg0: i32) -> (i32, i32, i32) {
    %c0_i32 = arith.constant 0 : i32
    %c0_i32_0 = arith.constant 0 : i32
    %c0_i32_1 = arith.constant 0 : i32
    return %arg0, %c0_i32, %c0_i32_0 : i32, i32, i32
  }
  func.func @transform_3(%arg0: i32) -> (i32, i32) {
    %c0_i32 = arith.constant 0 : i32
    %c0_i32_0 = arith.constant 0 : i32
    %c0_i32_1 = arith.constant 0 : i32
    return %c0_i32, %c0_i32_0 : i32, i32
  }
  func.func @transform_4(%arg0: i32) -> (i32, i32) {
    %c0_i32 = arith.constant 0 : i32
    %c0_i32_0 = arith.constant 0 : i32
    %c0_i32_1 = arith.constant 0 : i32
    return %c0_i32, %c0_i32_0 : i32, i32
  }
  func.func @transform_5(%arg0: i32) -> (i32, i32) {
    %c0_i32 = arith.constant 0 : i32
    %c0_i32_0 = arith.constant 0 : i32
    %c0_i32_1 = arith.constant 0 : i32
    return %c0_i32, %c0_i32_0 : i32, i32
  }
  func.func @transform_6(%arg0: i32) -> (i32, i32) {
    %c0_i32 = arith.constant 0 : i32
    %c0_i32_0 = arith.constant 0 : i32
    %c0_i32_1 = arith.constant 0 : i32
    return %c0_i32, %c0_i32_0 : i32, i32
  }
  func.func @transform_7(%arg0: i32) -> (i32, i32) {
    %c0_i32 = arith.constant 0 : i32
    %c0_i32_0 = arith.constant 0 : i32
    %c0_i32_1 = arith.constant 0 : i32
    return %c0_i32, %c0_i32_0 : i32, i32
  }
  func.func @transform_8(%arg0: i32) -> (i32, i32) {
    %c0_i32 = arith.constant 0 : i32
    %c0_i32_0 = arith.constant 0 : i32
    %c0_i32_1 = arith.constant 0 : i32
    return %c0_i32, %c0_i32_0 : i32, i32
  }
  func.func @transform_9(%arg0: i32) -> (i32, i32) {
    %c0_i32 = arith.constant 0 : i32
    %c0_i32_0 = arith.constant 0 : i32
    %c0_i32_1 = arith.constant 0 : i32
    return %c0_i32, %c0_i32_0 : i32, i32
  }
  func.func @transform_10(%arg0: i32) -> (i32, i32) {
    %c0_i32 = arith.constant 0 : i32
    %c0_i32_0 = arith.constant 0 : i32
    %c0_i32_1 = arith.constant 0 : i32
    return %c0_i32, %c0_i32_0 : i32, i32
  }
  func.func @transform_11(%arg0: i32) -> (i32, i32) {
    %c0_i32 = arith.constant 0 : i32
    %c0_i32_0 = arith.constant 0 : i32
    %c0_i32_1 = arith.constant 0 : i32
    return %c0_i32, %c0_i32_0 : i32, i32
  }
  func.func @transform_12(%arg0: i32) -> (i32, i32) {
    %c0_i32 = arith.constant 0 : i32
    %c0_i32_0 = arith.constant 0 : i32
    %c0_i32_1 = arith.constant 0 : i32
    return %c0_i32, %c0_i32_0 : i32, i32
  }
  func.func @transform_13(%arg0: i32) -> (i32, i32) {
    %c0_i32 = arith.constant 0 : i32
    %c0_i32_0 = arith.constant 0 : i32
    %c0_i32_1 = arith.constant 0 : i32
    return %c0_i32, %c0_i32_0 : i32, i32
  }
  func.func @transform_14(%arg0: i32) -> (i32, i32) {
    %c0_i32 = arith.constant 0 : i32
    %c0_i32_0 = arith.constant 0 : i32
    %c0_i32_1 = arith.constant 0 : i32
    return %c0_i32, %c0_i32_0 : i32, i32
  }
  func.func @transform_15(%arg0: i32) -> (i32, i32) {
    %c0_i32 = arith.constant 0 : i32
    %c0_i32_0 = arith.constant 0 : i32
    %c0_i32_1 = arith.constant 0 : i32
    return %c0_i32, %c0_i32_0 : i32, i32
  }
  func.func @transform_16(%arg0: i32) -> (i32, i32) {
    %c0_i32 = arith.constant 0 : i32
    %c0_i32_0 = arith.constant 0 : i32
    %c0_i32_1 = arith.constant 0 : i32
    return %c0_i32, %c0_i32_0 : i32, i32
  }
  func.func @transform_17(%arg0: i32) -> (i32, i32) {
    %c0_i32 = arith.constant 0 : i32
    %c0_i32_0 = arith.constant 0 : i32
    %c0_i32_1 = arith.constant 0 : i32
    return %c0_i32, %c0_i32_0 : i32, i32
  }
  func.func @transform_18(%arg0: i32) -> (i32, i32) {
    %c0_i32 = arith.constant 0 : i32
    %c0_i32_0 = arith.constant 0 : i32
    %c0_i32_1 = arith.constant 0 : i32
    return %c0_i32, %c0_i32_0 : i32, i32
  }
  func.func @transform_19(%arg0: i32) -> (i32, i32) {
    %c0_i32 = arith.constant 0 : i32
    %c0_i32_0 = arith.constant 0 : i32
    %c0_i32_1 = arith.constant 0 : i32
    return %c0_i32, %c0_i32_0 : i32, i32
  }
  func.func @transform_20(%arg0: i32) -> (i32, i32) {
    %c0_i32 = arith.constant 0 : i32
    %c0_i32_0 = arith.constant 0 : i32
    %c0_i32_1 = arith.constant 0 : i32
    return %c0_i32, %c0_i32_0 : i32, i32
  }
  func.func @transform_21(%arg0: i32) -> (i32, i32, i32) {
    %c0_i32 = arith.constant 0 : i32
    %c0_i32_0 = arith.constant 0 : i32
    %c0_i32_1 = arith.constant 0 : i32
    return %arg0, %c0_i32, %c0_i32_0 : i32, i32, i32
  }
}

</mosaic_0001>

<llo_original>
// kernel: tpu_custom_call.1
$region0: #{tpu_custom_call.1}
  #allocation0 [shape = 'u32[]', space=smem, size = 0x4, offset = 0x4, fixed_abs, tag = 'smem constant byte address 0x4 - core index']
  #allocation1 [shape = 'u32[72,128]{1,0:T(1,128)}', space=vmem, size = 0x9000, scoped, tag = 'internal scratch']
  %s0 = inlined_call_operand.vmem [shape: f32[2,64,64], index: 0, kind: input, shape index: {}]
  %s1 = inlined_call_operand.vmem [shape: f32[2,1,32], index: 1, kind: input, shape index: {}]
  %s2 = inlined_call_operand.vmem [shape: f32[2,1,32], index: 2, kind: input, shape index: {}]
  %s3 = inlined_call_operand.vmem [shape: f32[1,64], index: 3, kind: input, shape index: {}]
  %s4 = inlined_call_operand.vmem [shape: f32[1,64], index: 4, kind: input, shape index: {}]
  %s5 = inlined_call_operand.vmem [shape: f32[64,64], index: 5, kind: input, shape index: {}]
  %s6 = inlined_call_operand.vmem [shape: bf16[576,64], index: 6, kind: input, shape index: {}]
  %s7 = inlined_call_operand.vmem [shape: f32[1,64], index: 7, kind: input, shape index: {}]
  %s8 = inlined_call_operand.vmem [shape: f32[1,64], index: 8, kind: input, shape index: {}]
  %s9 = inlined_call_operand.vmem [shape: f32[1,64], index: 9, kind: input, shape index: {}]
  %s10 = inlined_call_operand.vmem [shape: f32[64,64], index: 10, kind: input, shape index: {}]
  %s11 = inlined_call_operand.vmem [shape: f32[32,64], index: 11, kind: input, shape index: {}]
  %s12 = inlined_call_operand.vmem [shape: f32[1,64], index: 12, kind: input, shape index: {}]
  %s13 = inlined_call_operand.vmem [shape: f32[32,64], index: 13, kind: input, shape index: {}]
  %s14 = inlined_call_operand.vmem [shape: f32[1,64], index: 14, kind: input, shape index: {}]
  %s15 = inlined_call_operand.vmem [shape: f32[32,64], index: 15, kind: input, shape index: {}]
  %s16 = inlined_call_operand.vmem [shape: f32[1,64], index: 16, kind: input, shape index: {}]
  %s17 = inlined_call_operand.vmem [shape: f32[32,64], index: 17, kind: input, shape index: {}]
  %s18 = inlined_call_operand.vmem [shape: f32[1,64], index: 18, kind: input, shape index: {}]
  %s19 = inlined_call_operand.vmem [shape: bf16[576,64], index: 19, kind: input, shape index: {}]
  %s20 = inlined_call_operand.vmem [shape: f32[1,64], index: 20, kind: input, shape index: {}]
  %s21 = inlined_call_operand.hbm [shape: f32[2,64,64], index: 21, kind: output, shape index: {}]
  %s22 = sld [smem:[#allocation0]]
  $region94: #{tpu_custom_call.1} parent=0
    _
  %s24 = ssub.s32 1, %s22
  %s25 = scalar_select 0, %s24, %s22
  $region1: #{tpu_custom_call.1} parent=0
    #allocation2 [shape = 'u8[65536]{0}', space=vmem, size = 0x10000, scoped, tag = 'output window, operand 0, single buffered']
    #allocation3 [shape = 's32[1]{0}', space=sflag, size = 0x4, scoped, tag = 'scoped memory for tpu_custom_call.1']
    %26 = vsyncpa [#allocation3], 0
    // Predicated region
    $region2: #{tpu_custom_call.1} parent=1 // pred_check
      _
    $region3: #{tpu_custom_call.1} parent=1 // pred_check_branch
      %28 = sbr.rel (0) target = $region5
    $region4: #{tpu_custom_call.1} parent=1 // pred_region
      _
    $region5: #{tpu_custom_call.1} parent=1 // pred_fallthru
      _
    // Predicated region
    $region6: #{tpu_custom_call.1} parent=1 // pred_check
      _
    $region7: #{tpu_custom_call.1} parent=1 // pred_check_branch
      %30 = sbr.rel (0) target = $region9
    $region8: #{tpu_custom_call.1} parent=1 // pred_region
      _
    $region9: #{tpu_custom_call.1} parent=1 // pred_fallthru
      _
    // Predicated region
    $region10: #{tpu_custom_call.1} parent=1 // pred_check
      _
    $region11: #{tpu_custom_call.1} parent=1 // pred_check_branch
      %32 = sbr.rel (0) target = $region13
    $region12: #{tpu_custom_call.1} parent=1 // pred_region
      _
    $region13: #{tpu_custom_call.1} parent=1 // pred_fallthru
      _
    // Predicated region
    $region14: #{tpu_custom_call.1} parent=1 // pred_check
      _
    $region15: #{tpu_custom_call.1} parent=1 // pred_check_branch
      %34 = sbr.rel (0) target = $region17
    $region16: #{tpu_custom_call.1} parent=1 // pred_region
      _
    $region17: #{tpu_custom_call.1} parent=1 // pred_fallthru
      _
    // Predicated region
    $region18: #{tpu_custom_call.1} parent=1 // pred_check
      _
    $region19: #{tpu_custom_call.1} parent=1 // pred_check_branch
      %36 = sbr.rel (0) target = $region21
    $region20: #{tpu_custom_call.1} parent=1 // pred_region
      _
    $region21: #{tpu_custom_call.1} parent=1 // pred_fallthru
      _
    // Predicated region
    $region22: #{tpu_custom_call.1} parent=1 // pred_check
      _
    $region23: #{tpu_custom_call.1} parent=1 // pred_check_branch
      %38 = sbr.rel (0) target = $region25
    $region24: #{tpu_custom_call.1} parent=1 // pred_region
      _
    $region25: #{tpu_custom_call.1} parent=1 // pred_fallthru
      _
    // Predicated region
    $region26: #{tpu_custom_call.1} parent=1 // pred_check
      _
    $region27: #{tpu_custom_call.1} parent=1 // pred_check_branch
      %40 = sbr.rel (0) target = $region29
    $region28: #{tpu_custom_call.1} parent=1 // pred_region
      _
    $region29: #{tpu_custom_call.1} parent=1 // pred_fallthru
      _
    // Predicated region
    $region30: #{tpu_custom_call.1} parent=1 // pred_check
      _
    $region31: #{tpu_custom_call.1} parent=1 // pred_check_branch
      %42 = sbr.rel (0) target = $region33
    $region32: #{tpu_custom_call.1} parent=1 // pred_region
      _
    $region33: #{tpu_custom_call.1} parent=1 // pred_fallthru
      _
    // Predicated region
    $region34: #{tpu_custom_call.1} parent=1 // pred_check
      _
    $region35: #{tpu_custom_call.1} parent=1 // pred_check_branch
      %44 = sbr.rel (0) target = $region37
    $region36: #{tpu_custom_call.1} parent=1 // pred_region
      _
    $region37: #{tpu_custom_call.1} parent=1 // pred_fallthru
      _
    // Predicated region
    $region38: #{tpu_custom_call.1} parent=1 // pred_check
      _
    $region39: #{tpu_custom_call.1} parent=1 // pred_check_branch
      %46 = sbr.rel (0) target = $region41
    $region40: #{tpu_custom_call.1} parent=1 // pred_region
      _
    $region41: #{tpu_custom_call.1} parent=1 // pred_fallthru
      _
    // Predicated region
    $region42: #{tpu_custom_call.1} parent=1 // pred_check
      _
    $region43: #{tpu_custom_call.1} parent=1 // pred_check_branch
      %48 = sbr.rel (0) target = $region45
    $region44: #{tpu_custom_call.1} parent=1 // pred_region
      _
    $region45: #{tpu_custom_call.1} parent=1 // pred_fallthru
      _
    // Predicated region
    $region46: #{tpu_custom_call.1} parent=1 // pred_check
      _
    $region47: #{tpu_custom_call.1} parent=1 // pred_check_branch
      %50 = sbr.rel (0) target = $region49
    $region48: #{tpu_custom_call.1} parent=1 // pred_region
      _
    $region49: #{tpu_custom_call.1} parent=1 // pred_fallthru
      _
    // Predicated region
    $region50: #{tpu_custom_call.1} parent=1 // pred_check
      _
    $region51: #{tpu_custom_call.1} parent=1 // pred_check_branch
      %52 = sbr.rel (0) target = $region53
    $region52: #{tpu_custom_call.1} parent=1 // pred_region
      _
    $region53: #{tpu_custom_call.1} parent=1 // pred_fallthru
      _
    // Predicated region
    $region54: #{tpu_custom_call.1} parent=1 // pred_check
      _
    $region55: #{tpu_custom_call.1} parent=1 // pred_check_branch
      %54 = sbr.rel (0) target = $region57
    $region56: #{tpu_custom_call.1} parent=1 // pred_region
      _
    $region57: #{tpu_custom_call.1} parent=1 // pred_fallthru
      _
    // Predicated region
    $region58: #{tpu_custom_call.1} parent=1 // pred_check
      _
    $region59: #{tpu_custom_call.1} parent=1 // pred_check_branch
      %56 = sbr.rel (0) target = $region61
    $region60: #{tpu_custom_call.1} parent=1 // pred_region
      _
    $region61: #{tpu_custom_call.1} parent=1 // pred_fallthru
      _
    // Predicated region
    $region62: #{tpu_custom_call.1} parent=1 // pred_check
      _
    $region63: #{tpu_custom_call.1} parent=1 // pred_check_branch
      %58 = sbr.rel (0) target = $region65
    $region64: #{tpu_custom_call.1} parent=1 // pred_region
      _
    $region65: #{tpu_custom_call.1} parent=1 // pred_fallthru
      _
    // Predicated region
    $region66: #{tpu_custom_call.1} parent=1 // pred_check
      _
    $region67: #{tpu_custom_call.1} parent=1 // pred_check_branch
      %60 = sbr.rel (0) target = $region69
    $region68: #{tpu_custom_call.1} parent=1 // pred_region
      _
    $region69: #{tpu_custom_call.1} parent=1 // pred_fallthru
      _
    // Predicated region
    $region70: #{tpu_custom_call.1} parent=1 // pred_check
      _
    $region71: #{tpu_custom_call.1} parent=1 // pred_check_branch
      %62 = sbr.rel (0) target = $region73
    $region72: #{tpu_custom_call.1} parent=1 // pred_region
      _
    $region73: #{tpu_custom_call.1} parent=1 // pred_fallthru
      _
    // Predicated region
    $region74: #{tpu_custom_call.1} parent=1 // pred_check
      _
    $region75: #{tpu_custom_call.1} parent=1 // pred_check_branch
      %64 = sbr.rel (0) target = $region77
    $region76: #{tpu_custom_call.1} parent=1 // pred_region
      _
    $region77: #{tpu_custom_call.1} parent=1 // pred_fallthru
      _
    // Predicated region
    $region78: #{tpu_custom_call.1} parent=1 // pred_check
      _
    $region79: #{tpu_custom_call.1} parent=1 // pred_check_branch
      %66 = sbr.rel (0) target = $region81
    $region80: #{tpu_custom_call.1} parent=1 // pred_region
      _
    $region81: #{tpu_custom_call.1} parent=1 // pred_fallthru
      _
    // Predicated region
    $region82: #{tpu_custom_call.1} parent=1 // pred_check
      _
    $region83: #{tpu_custom_call.1} parent=1 // pred_check_branch
      %68 = sbr.rel (0) target = $region85
    $region84: #{tpu_custom_call.1} parent=1 // pred_region
      _
    $region85: #{tpu_custom_call.1} parent=1 // pred_fallthru
      _
    %v70 = vld [vmem:[%s0] sm:$0xff]
    %v71 = vld [vmem:[%s0 + $0x8] sm:$0xff]
    %v72 = vld [vmem:[%s0 + $0x10] sm:$0xff]
    %v73 = vld [vmem:[%s0 + $0x18] sm:$0xff]
    %v74 = vld [vmem:[%s0 + $0x20] sm:$0xff]
    %v75 = vld [vmem:[%s0 + $0x28] sm:$0xff]
    %v76 = vld [vmem:[%s0 + $0x30] sm:$0xff]
    %v77 = vld [vmem:[%s0 + $0x38] sm:$0xff]
    %v78 = vld [vmem:[%s0 + $0x40] sm:$0xff]
    %v79 = vld [vmem:[%s0 + $0x48] sm:$0xff]
    %v80 = vld [vmem:[%s0 + $0x50] sm:$0xff]
    %v81 = vld [vmem:[%s0 + $0x58] sm:$0xff]
    %v82 = vld [vmem:[%s0 + $0x60] sm:$0xff]
    %v83 = vld [vmem:[%s0 + $0x68] sm:$0xff]
    %v84 = vld [vmem:[%s0 + $0x70] sm:$0xff]
    %v85 = vld [vmem:[%s0 + $0x78] sm:$0xff]
    %vm86 = vcmask 523264
    %v87 = vsel %vm86, %v70, 0.0
    %v88 = vsel %vm86, %v71, 0.0
    %v89 = vadd.f32 %v87, %v88
    %v90 = vsel %vm86, %v72, 0.0
    %v91 = vadd.f32 %v89, %v90
    %v92 = vsel %vm86, %v73, 0.0
    %v93 = vadd.f32 %v91, %v92
    %v94 = vsel %vm86, %v74, 0.0
    %v95 = vadd.f32 %v93, %v94
    %v96 = vsel %vm86, %v75, 0.0
    %v97 = vadd.f32 %v95, %v96
    %v98 = vsel %vm86, %v76, 0.0
    %v99 = vadd.f32 %v97, %v98
    %v100 = vsel %vm86, %v77, 0.0
    %v101 = vadd.f32 %v99, %v100
    %v102 = vrot.slane %v101, 4
    %v103 = vadd.f32 %v101, %v102
    %v104 = vrot.slane %v103, 2
    %v105 = vadd.f32 %v103, %v104
    %v106 = vrot.slane %v105, 1
    %v107 = vadd.f32 %v105, %v106
    %v108 = vsel %vm86, %v78, 0.0
    %v109 = vsel %vm86, %v79, 0.0
    %v110 = vadd.f32 %v108, %v109
    %v111 = vsel %vm86, %v80, 0.0
    %v112 = vadd.f32 %v110, %v111
    %v113 = vsel %vm86, %v81, 0.0
    %v114 = vadd.f32 %v112, %v113
    %v115 = vsel %vm86, %v82, 0.0
    %v116 = vadd.f32 %v114, %v115
    %v117 = vsel %vm86, %v83, 0.0
    %v118 = vadd.f32 %v116, %v117
    %v119 = vsel %vm86, %v84, 0.0
    %v120 = vadd.f32 %v118, %v119
    %v121 = vsel %vm86, %v85, 0.0
    %v122 = vadd.f32 %v120, %v121
    %v123 = vrot.slane %v122, 4
    %v124 = vadd.f32 %v122, %v123
    %v125 = vrot.slane %v124, 2
    %v126 = vadd.f32 %v124, %v125
    %v127 = vrot.slane %v126, 1
    %v128 = vadd.f32 %v126, %v127
    %v129 = vmul.f32 %v107, 0.015625
    %v130 = vmul.f32 %v128, 0.015625
    %v131 = vld [vmem:[%s5] sm:$0xff]
    %v132 = vld [vmem:[%s5 + $0x8] sm:$0xff]
    %v133 = vld [vmem:[%s5 + $0x10] sm:$0xff]
    %v134 = vld [vmem:[%s5 + $0x18] sm:$0xff]
    %v135 = vld [vmem:[%s5 + $0x20] sm:$0xff]
    %v136 = vld [vmem:[%s5 + $0x28] sm:$0xff]
    %v137 = vld [vmem:[%s5 + $0x30] sm:$0xff]
    %v138 = vld [vmem:[%s5 + $0x38] sm:$0xff]
    %vm141 = vcmask 1041409
    %v142 = vsel %vm141, %v130, %v129
    %v143 = vsel %vm86, %v142, 0
    %145 = vmatpush.msra.mxu0 0.0
    %146 = vmatpush.msra.mxu0 0.0
    %147 = vmatpush.msra.mxu0 0.0
    %148 = vmatpush.msra.mxu0 0.0
    %149 = vmatpush.msra.mxu0 0.0
    %150 = vmatpush.msra.mxu0 0.0
    %151 = vmatpush.msra.mxu0 0.0
    %152 = vmatpush.msra.mxu0 0.0
    %v153 = vand.u32 %v138, 4294901760
    %154 = vmatpush.msra.mxu0 %v153
    %v155 = vand.u32 %v137, 4294901760
    %156 = vmatpush.msra.mxu0 %v155
    %v157 = vand.u32 %v136, 4294901760
    %158 = vmatpush.msra.mxu0 %v157
    %v159 = vand.u32 %v135, 4294901760
    %160 = vmatpush.msra.mxu0 %v159
    %v161 = vand.u32 %v134, 4294901760
    %162 = vmatpush.msra.mxu0 %v161
    %v163 = vand.u32 %v133, 4294901760
    %164 = vmatpush.msra.mxu0 %v163
    %v165 = vand.u32 %v132, 4294901760
    %166 = vmatpush.msra.mxu0 %v165
    %v167 = vand.u32 %v131, 4294901760
    %168 = vmatpush.msra.mxu0 %v167
    %v169 = vand.u32 %v143, 4294901760
    %v170 = vsub.f32 %v143, %v169
    %v171 = vand.u32 %v170, 4294901760
    %v172 = vsub.f32 %v170, %v171
    %v173 = vand.u32 %v172, 4294901760
    %174 = vmatmul.f32.gmra.mxu0 %v173
    %v175 = vpop.f32.mrf.mxu0
    %v176 = vadd.f32 0.0, %v175
    %177 = vdwg.mxu0
    %178 = vmatpush.msra.mxu0 0.0
    %179 = vmatpush.msra.mxu0 0.0
    %180 = vmatpush.msra.mxu0 0.0
    %181 = vmatpush.msra.mxu0 0.0
    %182 = vmatpush.msra.mxu0 0.0
    %183 = vmatpush.msra.mxu0 0.0
    %184 = vmatpush.msra.mxu0 0.0
    %185 = vmatpush.msra.mxu0 0.0
    %v186 = vand.u32 %v138, 4294901760
    %v187 = vsub.f32 %v138, %v186
    %v188 = vand.u32 %v187, 4294901760
    %v189 = vsub.f32 %v187, %v188
    %v190 = vand.u32 %v189, 4294901760
    %191 = vmatpush.msra.mxu0 %v190
    %v192 = vand.u32 %v137, 4294901760
    %v193 = vsub.f32 %v137, %v192
    %v194 = vand.u32 %v193, 4294901760
    %v195 = vsub.f32 %v193, %v194
    %v196 = vand.u32 %v195, 4294901760
    %197 = vmatpush.msra.mxu0 %v196
    %v198 = vand.u32 %v136, 4294901760
    %v199 = vsub.f32 %v136, %v198
    %v200 = vand.u32 %v199, 4294901760
    %v201 = vsub.f32 %v199, %v200
    %v202 = vand.u32 %v201, 4294901760
    %203 = vmatpush.msra.mxu0 %v202
    %v204 = vand.u32 %v135, 4294901760
    %v205 = vsub.f32 %v135, %v204
    %v206 = vand.u32 %v205, 4294901760
    %v207 = vsub.f32 %v205, %v206
    %v208 = vand.u32 %v207, 4294901760
    %209 = vmatpush.msra.mxu0 %v208
    %v210 = vand.u32 %v134, 4294901760
    %v211 = vsub.f32 %v134, %v210
    %v212 = vand.u32 %v211, 4294901760
    %v213 = vsub.f32 %v211, %v212
    %v214 = vand.u32 %v213, 4294901760
    %215 = vmatpush.msra.mxu0 %v214
    %v216 = vand.u32 %v133, 4294901760
    %v217 = vsub.f32 %v133, %v216
    %v218 = vand.u32 %v217, 4294901760
    %v219 = vsub.f32 %v217, %v218
    %v220 = vand.u32 %v219, 4294901760
    %221 = vmatpush.msra.mxu0 %v220
    %v222 = vand.u32 %v132, 4294901760
    %v223 = vsub.f32 %v132, %v222
    %v224 = vand.u32 %v223, 4294901760
    %v225 = vsub.f32 %v223, %v224
    %v226 = vand.u32 %v225, 4294901760
    %227 = vmatpush.msra.mxu0 %v226
    %v228 = vand.u32 %v131, 4294901760
    %v229 = vsub.f32 %v131, %v228
    %v230 = vand.u32 %v229, 4294901760
    %v231 = vsub.f32 %v229, %v230
    %v232 = vand.u32 %v231, 4294901760
    %233 = vmatpush.msra.mxu0 %v232
    %v234 = vand.u32 %v143, 4294901760
    %235 = vmatmul.f32.gmra.mxu0 %v234
    %v236 = vpop.f32.mrf.mxu0
    %v237 = vadd.f32 %v176, %v236
    %238 = vdwg.mxu0
    %239 = vmatpush.msra.mxu0 0.0
    %240 = vmatpush.msra.mxu0 0.0
    %241 = vmatpush.msra.mxu0 0.0
    %242 = vmatpush.msra.mxu0 0.0
    %243 = vmatpush.msra.mxu0 0.0
    %244 = vmatpush.msra.mxu0 0.0
    %245 = vmatpush.msra.mxu0 0.0
    %246 = vmatpush.msra.mxu0 0.0
    %v247 = vand.u32 %v138, 4294901760
    %v248 = vsub.f32 %v138, %v247
    %249 = vmatpush.msra.mxu0 %v248
    %v250 = vand.u32 %v137, 4294901760
    %v251 = vsub.f32 %v137, %v250
    %252 = vmatpush.msra.mxu0 %v251
    %v253 = vand.u32 %v136, 4294901760
    %v254 = vsub.f32 %v136, %v253
    %255 = vmatpush.msra.mxu0 %v254
    %v256 = vand.u32 %v135, 4294901760
    %v257 = vsub.f32 %v135, %v256
    %258 = vmatpush.msra.mxu0 %v257
    %v259 = vand.u32 %v134, 4294901760
    %v260 = vsub.f32 %v134, %v259
    %261 = vmatpush.msra.mxu0 %v260
    %v262 = vand.u32 %v133, 4294901760
    %v263 = vsub.f32 %v133, %v262
    %264 = vmatpush.msra.mxu0 %v263
    %v265 = vand.u32 %v132, 4294901760
    %v266 = vsub.f32 %v132, %v265
    %267 = vmatpush.msra.mxu0 %v266
    %v268 = vand.u32 %v131, 4294901760
    %v269 = vsub.f32 %v131, %v268
    %270 = vmatpush.msra.mxu0 %v269
    %v271 = vand.u32 %v143, 4294901760
    %v272 = vsub.f32 %v143, %v271
    %273 = vmatmul.f32.gmra.mxu0 %v272
    %v274 = vpop.f32.mrf.mxu0
    %v275 = vadd.f32 %v237, %v274
    %276 = vdwg.mxu0
    %277 = vmatpush.msra.mxu0 0.0
    %278 = vmatpush.msra.mxu0 0.0
    %279 = vmatpush.msra.mxu0 0.0
    %280 = vmatpush.msra.mxu0 0.0
    %281 = vmatpush.msra.mxu0 0.0
    %282 = vmatpush.msra.mxu0 0.0
    %283 = vmatpush.msra.mxu0 0.0
    %284 = vmatpush.msra.mxu0 0.0
    %v285 = vand.u32 %v138, 4294901760
    %286 = vmatpush.msra.mxu0 %v285
    %v287 = vand.u32 %v137, 4294901760
    %288 = vmatpush.msra.mxu0 %v287
    %v289 = vand.u32 %v136, 4294901760
    %290 = vmatpush.msra.mxu0 %v289
    %v291 = vand.u32 %v135, 4294901760
    %292 = vmatpush.msra.mxu0 %v291
    %v293 = vand.u32 %v134, 4294901760
    %294 = vmatpush.msra.mxu0 %v293
    %v295 = vand.u32 %v133, 4294901760
    %296 = vmatpush.msra.mxu0 %v295
    %v297 = vand.u32 %v132, 4294901760
    %298 = vmatpush.msra.mxu0 %v297
    %v299 = vand.u32 %v131, 4294901760
    %300 = vmatpush.msra.mxu0 %v299
    %v301 = vand.u32 %v143, 4294901760
    %v302 = vsub.f32 %v143, %v301
    %v303 = vand.u32 %v302, 4294901760
    %304 = vmatmul.f32.gmra.mxu0 %v303
    %v305 = vpop.f32.mrf.mxu0
    %v306 = vadd.f32 %v275, %v305
    %307 = vdwg.mxu0
    %308 = vmatpush.msra.mxu0 0.0
    %309 = vmatpush.msra.mxu0 0.0
    %310 = vmatpush.msra.mxu0 0.0
    %311 = vmatpush.msra.mxu0 0.0
    %312 = vmatpush.msra.mxu0 0.0
    %313 = vmatpush.msra.mxu0 0.0
    %314 = vmatpush.msra.mxu0 0.0
    %315 = vmatpush.msra.mxu0 0.0
    %v316 = vand.u32 %v138, 4294901760
    %v317 = vsub.f32 %v138, %v316
    %v318 = vand.u32 %v317, 4294901760
    %319 = vmatpush.msra.mxu0 %v318
    %v320 = vand.u32 %v137, 4294901760
    %v321 = vsub.f32 %v137, %v320
    %v322 = vand.u32 %v321, 4294901760
    %323 = vmatpush.msra.mxu0 %v322
    %v324 = vand.u32 %v136, 4294901760
    %v325 = vsub.f32 %v136, %v324
    %v326 = vand.u32 %v325, 4294901760
    %327 = vmatpush.msra.mxu0 %v326
    %v328 = vand.u32 %v135, 4294901760
    %v329 = vsub.f32 %v135, %v328
    %v330 = vand.u32 %v329, 4294901760
    %331 = vmatpush.msra.mxu0 %v330
    %v332 = vand.u32 %v134, 4294901760
    %v333 = vsub.f32 %v134, %v332
    %v334 = vand.u32 %v333, 4294901760
    %335 = vmatpush.msra.mxu0 %v334
    %v336 = vand.u32 %v133, 4294901760
    %v337 = vsub.f32 %v133, %v336
    %v338 = vand.u32 %v337, 4294901760
    %339 = vmatpush.msra.mxu0 %v338
    %v340 = vand.u32 %v132, 4294901760
    %v341 = vsub.f32 %v132, %v340
    %v342 = vand.u32 %v341, 4294901760
    %343 = vmatpush.msra.mxu0 %v342
    %v344 = vand.u32 %v131, 4294901760
    %v345 = vsub.f32 %v131, %v344
    %v346 = vand.u32 %v345, 4294901760
    %347 = vmatpush.msra.mxu0 %v346
    %v348 = vand.u32 %v143, 4294901760
    %349 = vmatmul.f32.gmra.mxu0 %v348
    %v350 = vpop.f32.mrf.mxu0
    %v351 = vadd.f32 %v306, %v350
    %352 = vdwg.mxu0
    %353 = vmatpush.msra.mxu0 0.0
    %354 = vmatpush.msra.mxu0 0.0
    %355 = vmatpush.msra.mxu0 0.0
    %356 = vmatpush.msra.mxu0 0.0
    %357 = vmatpush.msra.mxu0 0.0
    %358 = vmatpush.msra.mxu0 0.0
    %359 = vmatpush.msra.mxu0 0.0
    %360 = vmatpush.msra.mxu0 0.0
    %v361 = vand.u32 %v138, 4294901760
    %362 = vmatpush.msra.mxu0 %v361
    %v363 = vand.u32 %v137, 4294901760
    %364 = vmatpush.msra.mxu0 %v363
    %v365 = vand.u32 %v136, 4294901760
    %366 = vmatpush.msra.mxu0 %v365
    %v367 = vand.u32 %v135, 4294901760
    %368 = vmatpush.msra.mxu0 %v367
    %v369 = vand.u32 %v134, 4294901760
    %370 = vmatpush.msra.mxu0 %v369
    %v371 = vand.u32 %v133, 4294901760
    %372 = vmatpush.msra.mxu0 %v371
    %v373 = vand.u32 %v132, 4294901760
    %374 = vmatpush.msra.mxu0 %v373
    %v375 = vand.u32 %v131, 4294901760
    %376 = vmatpush.msra.mxu0 %v375
    %v377 = vand.u32 %v143, 4294901760
    %378 = vmatmul.f32.gmra.mxu0 %v377
    %v379 = vpop.f32.mrf.mxu0
    %v380 = vadd.f32 %v351, %v379
    %381 = vdwg.mxu0
    %v383 = vrot.slane %v380, 1
    %v384 = vperm.slane %v380, 0
    %v385 = vperm.slane %v383, 0
    %v388 = vsub.f32 %v70, %v384
    %v389 = vsub.f32 %v71, %v384
    %v390 = vsub.f32 %v72, %v384
    %v391 = vsub.f32 %v73, %v384
    %v392 = vsub.f32 %v74, %v384
    %v393 = vsub.f32 %v75, %v384
    %v394 = vsub.f32 %v76, %v384
    %v395 = vsub.f32 %v77, %v384
    %v396 = vsub.f32 %v78, %v385
    %v397 = vsub.f32 %v79, %v385
    %v398 = vsub.f32 %v80, %v385
    %v399 = vsub.f32 %v81, %v385
    %v400 = vsub.f32 %v82, %v385
    %v401 = vsub.f32 %v83, %v385
    %v402 = vsub.f32 %v84, %v385
    %v403 = vsub.f32 %v85, %v385
    %v404 = vmul.f32 %v388, %v388
    %v405 = vmul.f32 %v389, %v389
    %v406 = vmul.f32 %v390, %v390
    %v407 = vmul.f32 %v391, %v391
    %v408 = vmul.f32 %v392, %v392
    %v409 = vmul.f32 %v393, %v393
    %v410 = vmul.f32 %v394, %v394
    %v411 = vmul.f32 %v395, %v395
    %v412 = vmul.f32 %v396, %v396
    %v413 = vmul.f32 %v397, %v397
    %v414 = vmul.f32 %v398, %v398
    %v415 = vmul.f32 %v399, %v399
    %v416 = vmul.f32 %v400, %v400
    %v417 = vmul.f32 %v401, %v401
    %v418 = vmul.f32 %v402, %v402
    %v419 = vmul.f32 %v403, %v403
    %v420 = vsel %vm86, %v404, 0.0
    %v421 = vsel %vm86, %v405, 0.0
    %v422 = vadd.f32 %v420, %v421
    %v423 = vsel %vm86, %v406, 0.0
    %v424 = vadd.f32 %v422, %v423
    %v425 = vsel %vm86, %v407, 0.0
    %v426 = vadd.f32 %v424, %v425
    %v427 = vsel %vm86, %v408, 0.0
    %v428 = vadd.f32 %v426, %v427
    %v429 = vsel %vm86, %v409, 0.0
    %v430 = vadd.f32 %v428, %v429
    %v431 = vsel %vm86, %v410, 0.0
    %v432 = vadd.f32 %v430, %v431
    %v433 = vsel %vm86, %v411, 0.0
    %v434 = vadd.f32 %v432, %v433
    %v435 = vrot.slane %v434, 4
    %v436 = vadd.f32 %v434, %v435
    %v437 = vrot.slane %v436, 2
    %v438 = vadd.f32 %v436, %v437
    %v439 = vrot.slane %v438, 1
    %v440 = vadd.f32 %v438, %v439
    %v441 = vsel %vm86, %v412, 0.0
    %v442 = vsel %vm86, %v413, 0.0
    %v443 = vadd.f32 %v441, %v442
    %v444 = vsel %vm86, %v414, 0.0
    %v445 = vadd.f32 %v443, %v444
    %v446 = vsel %vm86, %v415, 0.0
    %v447 = vadd.f32 %v445, %v446
    %v448 = vsel %vm86, %v416, 0.0
    %v449 = vadd.f32 %v447, %v448
    %v450 = vsel %vm86, %v417, 0.0
    %v451 = vadd.f32 %v449, %v450
    %v452 = vsel %vm86, %v418, 0.0
    %v453 = vadd.f32 %v451, %v452
    %v454 = vsel %vm86, %v419, 0.0
    %v455 = vadd.f32 %v453, %v454
    %v456 = vrot.slane %v455, 4
    %v457 = vadd.f32 %v455, %v456
    %v458 = vrot.slane %v457, 2
    %v459 = vadd.f32 %v457, %v458
    %v460 = vrot.slane %v459, 1
    %v461 = vadd.f32 %v459, %v460
    %v462 = vmul.f32 %v440, 0.015625
    %v463 = vmul.f32 %v461, 0.015625
    %v466 = vsel %vm141, %v463, %v462
    %v467 = vsel %vm86, %v466, 0
    %469 = vmatpush.msra.mxu0 0.0
    %470 = vmatpush.msra.mxu0 0.0
    %471 = vmatpush.msra.mxu0 0.0
    %472 = vmatpush.msra.mxu0 0.0
    %473 = vmatpush.msra.mxu0 0.0
    %474 = vmatpush.msra.mxu0 0.0
    %475 = vmatpush.msra.mxu0 0.0
    %476 = vmatpush.msra.mxu0 0.0
    %v477 = vand.u32 %v138, 4294901760
    %478 = vmatpush.msra.mxu0 %v477
    %v479 = vand.u32 %v137, 4294901760
    %480 = vmatpush.msra.mxu0 %v479
    %v481 = vand.u32 %v136, 4294901760
    %482 = vmatpush.msra.mxu0 %v481
    %v483 = vand.u32 %v135, 4294901760
    %484 = vmatpush.msra.mxu0 %v483
    %v485 = vand.u32 %v134, 4294901760
    %486 = vmatpush.msra.mxu0 %v485
    %v487 = vand.u32 %v133, 4294901760
    %488 = vmatpush.msra.mxu0 %v487
    %v489 = vand.u32 %v132, 4294901760
    %490 = vmatpush.msra.mxu0 %v489
    %v491 = vand.u32 %v131, 4294901760
    %492 = vmatpush.msra.mxu0 %v491
    %v493 = vand.u32 %v467, 4294901760
    %v494 = vsub.f32 %v467, %v493
    %v495 = vand.u32 %v494, 4294901760
    %v496 = vsub.f32 %v494, %v495
    %v497 = vand.u32 %v496, 4294901760
    %498 = vmatmul.f32.gmra.mxu0 %v497
    %v499 = vpop.f32.mrf.mxu0
    %v500 = vadd.f32 1e-05, %v499
    %501 = vdwg.mxu0
    %502 = vmatpush.msra.mxu0 0.0
    %503 = vmatpush.msra.mxu0 0.0
    %504 = vmatpush.msra.mxu0 0.0
    %505 = vmatpush.msra.mxu0 0.0
    %506 = vmatpush.msra.mxu0 0.0
    %507 = vmatpush.msra.mxu0 0.0
    %508 = vmatpush.msra.mxu0 0.0
    %509 = vmatpush.msra.mxu0 0.0
    %v510 = vand.u32 %v138, 4294901760
    %v511 = vsub.f32 %v138, %v510
    %v512 = vand.u32 %v511, 4294901760
    %v513 = vsub.f32 %v511, %v512
    %v514 = vand.u32 %v513, 4294901760
    %515 = vmatpush.msra.mxu0 %v514
    %v516 = vand.u32 %v137, 4294901760
    %v517 = vsub.f32 %v137, %v516
    %v518 = vand.u32 %v517, 4294901760
    %v519 = vsub.f32 %v517, %v518
    %v520 = vand.u32 %v519, 4294901760
    %521 = vmatpush.msra.mxu0 %v520
    %v522 = vand.u32 %v136, 4294901760
    %v523 = vsub.f32 %v136, %v522
    %v524 = vand.u32 %v523, 4294901760
    %v525 = vsub.f32 %v523, %v524
    %v526 = vand.u32 %v525, 4294901760
    %527 = vmatpush.msra.mxu0 %v526
    %v528 = vand.u32 %v135, 4294901760
    %v529 = vsub.f32 %v135, %v528
    %v530 = vand.u32 %v529, 4294901760
    %v531 = vsub.f32 %v529, %v530
    %v532 = vand.u32 %v531, 4294901760
    %533 = vmatpush.msra.mxu0 %v532
    %v534 = vand.u32 %v134, 4294901760
    %v535 = vsub.f32 %v134, %v534
    %v536 = vand.u32 %v535, 4294901760
    %v537 = vsub.f32 %v535, %v536
    %v538 = vand.u32 %v537, 4294901760
    %539 = vmatpush.msra.mxu0 %v538
    %v540 = vand.u32 %v133, 4294901760
    %v541 = vsub.f32 %v133, %v540
    %v542 = vand.u32 %v541, 4294901760
    %v543 = vsub.f32 %v541, %v542
    %v544 = vand.u32 %v543, 4294901760
    %545 = vmatpush.msra.mxu0 %v544
    %v546 = vand.u32 %v132, 4294901760
    %v547 = vsub.f32 %v132, %v546
    %v548 = vand.u32 %v547, 4294901760
    %v549 = vsub.f32 %v547, %v548
    %v550 = vand.u32 %v549, 4294901760
    %551 = vmatpush.msra.mxu0 %v550
    %v552 = vand.u32 %v131, 4294901760
    %v553 = vsub.f32 %v131, %v552
    %v554 = vand.u32 %v553, 4294901760
    %v555 = vsub.f32 %v553, %v554
    %v556 = vand.u32 %v555, 4294901760
    %557 = vmatpush.msra.mxu0 %v556
    %v558 = vand.u32 %v467, 4294901760
    %559 = vmatmul.f32.gmra.mxu0 %v558
    %v560 = vpop.f32.mrf.mxu0
    %v561 = vadd.f32 %v500, %v560
    %562 = vdwg.mxu0
    %563 = vmatpush.msra.mxu0 0.0
    %564 = vmatpush.msra.mxu0 0.0
    %565 = vmatpush.msra.mxu0 0.0
    %566 = vmatpush.msra.mxu0 0.0
    %567 = vmatpush.msra.mxu0 0.0
    %568 = vmatpush.msra.mxu0 0.0
    %569 = vmatpush.msra.mxu0 0.0
    %570 = vmatpush.msra.mxu0 0.0
    %v571 = vand.u32 %v138, 4294901760
    %v572 = vsub.f32 %v138, %v571
    %573 = vmatpush.msra.mxu0 %v572
    %v574 = vand.u32 %v137, 4294901760
    %v575 = vsub.f32 %v137, %v574
    %576 = vmatpush.msra.mxu0 %v575
    %v577 = vand.u32 %v136, 4294901760
    %v578 = vsub.f32 %v136, %v577
    %579 = vmatpush.msra.mxu0 %v578
    %v580 = vand.u32 %v135, 4294901760
    %v581 = vsub.f32 %v135, %v580
    %582 = vmatpush.msra.mxu0 %v581
    %v583 = vand.u32 %v134, 4294901760
    %v584 = vsub.f32 %v134, %v583
    %585 = vmatpush.msra.mxu0 %v584
    %v586 = vand.u32 %v133, 4294901760
    %v587 = vsub.f32 %v133, %v586
    %588 = vmatpush.msra.mxu0 %v587
    %v589 = vand.u32 %v132, 4294901760
    %v590 = vsub.f32 %v132, %v589
    %591 = vmatpush.msra.mxu0 %v590
    %v592 = vand.u32 %v131, 4294901760
    %v593 = vsub.f32 %v131, %v592
    %594 = vmatpush.msra.mxu0 %v593
    %v595 = vand.u32 %v467, 4294901760
    %v596 = vsub.f32 %v467, %v595
    %597 = vmatmul.f32.gmra.mxu0 %v596
    %v598 = vpop.f32.mrf.mxu0
    %v599 = vadd.f32 %v561, %v598
    %600 = vdwg.mxu0
    %601 = vmatpush.msra.mxu0 0.0
    %602 = vmatpush.msra.mxu0 0.0
    %603 = vmatpush.msra.mxu0 0.0
    %604 = vmatpush.msra.mxu0 0.0
    %605 = vmatpush.msra.mxu0 0.0
    %606 = vmatpush.msra.mxu0 0.0
    %607 = vmatpush.msra.mxu0 0.0
    %608 = vmatpush.msra.mxu0 0.0
    %v609 = vand.u32 %v138, 4294901760
    %610 = vmatpush.msra.mxu0 %v609
    %v611 = vand.u32 %v137, 4294901760
    %612 = vmatpush.msra.mxu0 %v611
    %v613 = vand.u32 %v136, 4294901760
    %614 = vmatpush.msra.mxu0 %v613
    %v615 = vand.u32 %v135, 4294901760
    %616 = vmatpush.msra.mxu0 %v615
    %v617 = vand.u32 %v134, 4294901760
    %618 = vmatpush.msra.mxu0 %v617
    %v619 = vand.u32 %v133, 4294901760
    %620 = vmatpush.msra.mxu0 %v619
    %v621 = vand.u32 %v132, 4294901760
    %622 = vmatpush.msra.mxu0 %v621
    %v623 = vand.u32 %v131, 4294901760
    %624 = vmatpush.msra.mxu0 %v623
    %v625 = vand.u32 %v467, 4294901760
    %v626 = vsub.f32 %v467, %v625
    %v627 = vand.u32 %v626, 4294901760
    %628 = vmatmul.f32.gmra.mxu0 %v627
    %v629 = vpop.f32.mrf.mxu0
    %v630 = vadd.f32 %v599, %v629
    %631 = vdwg.mxu0
    %632 = vmatpush.msra.mxu0 0.0
    %633 = vmatpush.msra.mxu0 0.0
    %634 = vmatpush.msra.mxu0 0.0
    %635 = vmatpush.msra.mxu0 0.0
    %636 = vmatpush.msra.mxu0 0.0
    %637 = vmatpush.msra.mxu0 0.0
    %638 = vmatpush.msra.mxu0 0.0
    %639 = vmatpush.msra.mxu0 0.0
    %v640 = vand.u32 %v138, 4294901760
    %v641 = vsub.f32 %v138, %v640
    %v642 = vand.u32 %v641, 4294901760
    %643 = vmatpush.msra.mxu0 %v642
    %v644 = vand.u32 %v137, 4294901760
    %v645 = vsub.f32 %v137, %v644
    %v646 = vand.u32 %v645, 4294901760
    %647 = vmatpush.msra.mxu0 %v646
    %v648 = vand.u32 %v136, 4294901760
    %v649 = vsub.f32 %v136, %v648
    %v650 = vand.u32 %v649, 4294901760
    %651 = vmatpush.msra.mxu0 %v650
    %v652 = vand.u32 %v135, 4294901760
    %v653 = vsub.f32 %v135, %v652
    %v654 = vand.u32 %v653, 4294901760
    %655 = vmatpush.msra.mxu0 %v654
    %v656 = vand.u32 %v134, 4294901760
    %v657 = vsub.f32 %v134, %v656
    %v658 = vand.u32 %v657, 4294901760
    %659 = vmatpush.msra.mxu0 %v658
    %v660 = vand.u32 %v133, 4294901760
    %v661 = vsub.f32 %v133, %v660
    %v662 = vand.u32 %v661, 4294901760
    %663 = vmatpush.msra.mxu0 %v662
    %v664 = vand.u32 %v132, 4294901760
    %v665 = vsub.f32 %v132, %v664
    %v666 = vand.u32 %v665, 4294901760
    %667 = vmatpush.msra.mxu0 %v666
    %v668 = vand.u32 %v131, 4294901760
    %v669 = vsub.f32 %v131, %v668
    %v670 = vand.u32 %v669, 4294901760
    %671 = vmatpush.msra.mxu0 %v670
    %v672 = vand.u32 %v467, 4294901760
    %673 = vmatmul.f32.gmra.mxu0 %v672
    %v674 = vpop.f32.mrf.mxu0
    %v675 = vadd.f32 %v630, %v674
    %676 = vdwg.mxu0
    %677 = vmatpush.msra.mxu0 0.0
    %678 = vmatpush.msra.mxu0 0.0
    %679 = vmatpush.msra.mxu0 0.0
    %680 = vmatpush.msra.mxu0 0.0
    %681 = vmatpush.msra.mxu0 0.0
    %682 = vmatpush.msra.mxu0 0.0
    %683 = vmatpush.msra.mxu0 0.0
    %684 = vmatpush.msra.mxu0 0.0
    %v685 = vand.u32 %v138, 4294901760
    %686 = vmatpush.msra.mxu0 %v685
    %v687 = vand.u32 %v137, 4294901760
    %688 = vmatpush.msra.mxu0 %v687
    %v689 = vand.u32 %v136, 4294901760
    %690 = vmatpush.msra.mxu0 %v689
    %v691 = vand.u32 %v135, 4294901760
    %692 = vmatpush.msra.mxu0 %v691
    %v693 = vand.u32 %v134, 4294901760
    %694 = vmatpush.msra.mxu0 %v693
    %v695 = vand.u32 %v133, 4294901760
    %696 = vmatpush.msra.mxu0 %v695
    %v697 = vand.u32 %v132, 4294901760
    %698 = vmatpush.msra.mxu0 %v697
    %v699 = vand.u32 %v131, 4294901760
    %700 = vmatpush.msra.mxu0 %v699
    %v701 = vand.u32 %v467, 4294901760
    %702 = vmatmul.f32.gmra.mxu0 %v701
    %v703 = vpop.f32.mrf.mxu0
    %v704 = vadd.f32 %v675, %v703
    %705 = vdwg.mxu0
    %v706 = vrsqrt.pop %v704
    %v707 = vmul.f32 %v706, %v704
    %v708 = vmul.f32 %v707, %v706
    %v709 = vmul.f32 0.5, %v708
    %v710 = vsub.f32 1.5, %v709
    %v711 = vmul.f32 %v706, %v710
    %vm712 = vweird.f32 %v704
    %vm713 = vweird.f32 %v706
    %vm714 = vmor %vm712, %vm713
    %v715 = vsel %vm714, %v706, %v711
    %v716 = vld [vmem:[%s3] sm:$0x1]
    %v718 = vperm.slane %v716, 0
    %v720 = vmul.f32 %v718, %v715
    %v722 = vrot.slane %v720, 1
    %v723 = vperm.slane %v720, 0
    %v724 = vperm.slane %v722, 0
    %v727 = vmul.f32 %v388, %v723
    %v728 = vmul.f32 %v389, %v723
    %v729 = vmul.f32 %v390, %v723
    %v730 = vmul.f32 %v391, %v723
    %v731 = vmul.f32 %v392, %v723
    %v732 = vmul.f32 %v393, %v723
    %v733 = vmul.f32 %v394, %v723
    %v734 = vmul.f32 %v395, %v723
    %v735 = vmul.f32 %v396, %v724
    %v736 = vmul.f32 %v397, %v724
    %v737 = vmul.f32 %v398, %v724
    %v738 = vmul.f32 %v399, %v724
    %v739 = vmul.f32 %v400, %v724
    %v740 = vmul.f32 %v401, %v724
    %v741 = vmul.f32 %v402, %v724
    %v742 = vmul.f32 %v403, %v724
    %v743 = vld [vmem:[%s4] sm:$0x1]
    %v745 = vperm.slane %v743, 0
    %v747 = vadd.f32 %v727, %v745
    %v748 = vadd.f32 %v728, %v745
    %v749 = vadd.f32 %v729, %v745
    %v750 = vadd.f32 %v730, %v745
    %v751 = vadd.f32 %v731, %v745
    %v752 = vadd.f32 %v732, %v745
    %v753 = vadd.f32 %v733, %v745
    %v754 = vadd.f32 %v734, %v745
    %v755 = vadd.f32 %v735, %v745
    %v756 = vadd.f32 %v736, %v745
    %v757 = vadd.f32 %v737, %v745
    %v758 = vadd.f32 %v738, %v745
    %v759 = vadd.f32 %v739, %v745
    %v760 = vadd.f32 %v740, %v745
    %v761 = vadd.f32 %v741, %v745
    %v762 = vadd.f32 %v742, %v745
    %v763 = vxor.u32 %v747, 2147483648
    %v764 = vxor.u32 %v748, 2147483648
    %v765 = vxor.u32 %v749, 2147483648
    %v766 = vxor.u32 %v750, 2147483648
    %v767 = vxor.u32 %v751, 2147483648
    %v768 = vxor.u32 %v752, 2147483648
    %v769 = vxor.u32 %v753, 2147483648
    %v770 = vxor.u32 %v754, 2147483648
    %v771 = vxor.u32 %v755, 2147483648
    %v772 = vxor.u32 %v756, 2147483648
    %v773 = vxor.u32 %v757, 2147483648
    %v774 = vxor.u32 %v758, 2147483648
    %v775 = vxor.u32 %v759, 2147483648
    %v776 = vxor.u32 %v760, 2147483648
    %v777 = vxor.u32 %v761, 2147483648
    %v778 = vxor.u32 %v762, 2147483648
    %v779 = vmul.f32 %v763, 1.442695
    %v780 = vpow.pop %v779
    %v781 = vmul.f32 %v764, 1.442695
    %v782 = vpow.pop %v781
    %v783 = vmul.f32 %v765, 1.442695
    %v784 = vpow.pop %v783
    %v785 = vmul.f32 %v766, 1.442695
    %v786 = vpow.pop %v785
    %v787 = vmul.f32 %v767, 1.442695
    %v788 = vpow.pop %v787
    %v789 = vmul.f32 %v768, 1.442695
    %v790 = vpow.pop %v789
    %v791 = vmul.f32 %v769, 1.442695
    %v792 = vpow.pop %v791
    %v793 = vmul.f32 %v770, 1.442695
    %v794 = vpow.pop %v793
    %v795 = vmul.f32 %v771, 1.442695
    %v796 = vpow.pop %v795
    %v797 = vmul.f32 %v772, 1.442695
    %v798 = vpow.pop %v797
    %v799 = vmul.f32 %v773, 1.442695
    %v800 = vpow.pop %v799
    %v801 = vmul.f32 %v774, 1.442695
    %v802 = vpow.pop %v801
    %v803 = vmul.f32 %v775, 1.442695
    %v804 = vpow.pop %v803
    %v805 = vmul.f32 %v776, 1.442695
    %v806 = vpow.pop %v805
    %v807 = vmul.f32 %v777, 1.442695
    %v808 = vpow.pop %v807
    %v809 = vmul.f32 %v778, 1.442695
    %v810 = vpow.pop %v809
    %v811 = vadd.f32 %v780, 1.0
    %v812 = vadd.f32 %v782, 1.0
    %v813 = vadd.f32 %v784, 1.0
    %v814 = vadd.f32 %v786, 1.0
    %v815 = vadd.f32 %v788, 1.0
    %v816 = vadd.f32 %v790, 1.0
    %v817 = vadd.f32 %v792, 1.0
    %v818 = vadd.f32 %v794, 1.0
    %v819 = vadd.f32 %v796, 1.0
    %v820 = vadd.f32 %v798, 1.0
    %v821 = vadd.f32 %v800, 1.0
    %v822 = vadd.f32 %v802, 1.0
    %v823 = vadd.f32 %v804, 1.0
    %v824 = vadd.f32 %v806, 1.0
    %v825 = vadd.f32 %v808, 1.0
    %v826 = vadd.f32 %v810, 1.0
    %v827 = vrcp.pop %v811
    %v828 = vmul.f32 %v811, %v827
    %v829 = vsub.f32 1.0, %v828
    %v830 = vmul.f32 %v827, %v829
    %v831 = vadd.f32 %v827, %v830
    %vm832 = vweird.f32 %v811
    %vm833 = vweird.f32 %v827
    %vm834 = vmor %vm832, %vm833
    %v835 = vsel %vm834, %v827, %v831
    %v836 = vand.u32 2147483647, %v811
    %vm837 = vcmp.eq.f32.partialorder %v836, 8.507059e+37
    %v838 = vand.u32 %v811, 2147483648
    %v839 = vor.u32 1.1754944e-38, %v838
    %v840 = vsel %vm837, %v839, %v835
    %v841 = vmul.f32 1.0, %v840
    %v842 = vrcp.pop %v812
    %v843 = vmul.f32 %v812, %v842
    %v844 = vsub.f32 1.0, %v843
    %v845 = vmul.f32 %v842, %v844
    %v846 = vadd.f32 %v842, %v845
    %vm847 = vweird.f32 %v812
    %vm848 = vweird.f32 %v842
    %vm849 = vmor %vm847, %vm848
    %v850 = vsel %vm849, %v842, %v846
    %v851 = vand.u32 2147483647, %v812
    %vm852 = vcmp.eq.f32.partialorder %v851, 8.507059e+37
    %v853 = vand.u32 %v812, 2147483648
    %v854 = vor.u32 1.1754944e-38, %v853
    %v855 = vsel %vm852, %v854, %v850
    %v856 = vmul.f32 1.0, %v855
    %v857 = vrcp.pop %v813
    %v858 = vmul.f32 %v813, %v857
    %v859 = vsub.f32 1.0, %v858
    %v860 = vmul.f32 %v857, %v859
    %v861 = vadd.f32 %v857, %v860
    %vm862 = vweird.f32 %v813
    %vm863 = vweird.f32 %v857
    %vm864 = vmor %vm862, %vm863
    %v865 = vsel %vm864, %v857, %v861
    %v866 = vand.u32 2147483647, %v813
    %vm867 = vcmp.eq.f32.partialorder %v866, 8.507059e+37
    %v868 = vand.u32 %v813, 2147483648
    %v869 = vor.u32 1.1754944e-38, %v868
    %v870 = vsel %vm867, %v869, %v865
    %v871 = vmul.f32 1.0, %v870
    %v872 = vrcp.pop %v814
    %v873 = vmul.f32 %v814, %v872
    %v874 = vsub.f32 1.0, %v873
    %v875 = vmul.f32 %v872, %v874
    %v876 = vadd.f32 %v872, %v875
    %vm877 = vweird.f32 %v814
    %vm878 = vweird.f32 %v872
    %vm879 = vmor %vm877, %vm878
    %v880 = vsel %vm879, %v872, %v876
    %v881 = vand.u32 2147483647, %v814
    %vm882 = vcmp.eq.f32.partialorder %v881, 8.507059e+37
    %v883 = vand.u32 %v814, 2147483648
    %v884 = vor.u32 1.1754944e-38, %v883
    %v885 = vsel %vm882, %v884, %v880
    %v886 = vmul.f32 1.0, %v885
    %v887 = vrcp.pop %v815
    %v888 = vmul.f32 %v815, %v887
    %v889 = vsub.f32 1.0, %v888
    %v890 = vmul.f32 %v887, %v889
    %v891 = vadd.f32 %v887, %v890
    %vm892 = vweird.f32 %v815
    %vm893 = vweird.f32 %v887
    %vm894 = vmor %vm892, %vm893
    %v895 = vsel %vm894, %v887, %v891
    %v896 = vand.u32 2147483647, %v815
    %vm897 = vcmp.eq.f32.partialorder %v896, 8.507059e+37
    %v898 = vand.u32 %v815, 2147483648
    %v899 = vor.u32 1.1754944e-38, %v898
    %v900 = vsel %vm897, %v899, %v895
    %v901 = vmul.f32 1.0, %v900
    %v902 = vrcp.pop %v816
    %v903 = vmul.f32 %v816, %v902
    %v904 = vsub.f32 1.0, %v903
    %v905 = vmul.f32 %v902, %v904
    %v906 = vadd.f32 %v902, %v905
    %vm907 = vweird.f32 %v816
    %vm908 = vweird.f32 %v902
    %vm909 = vmor %vm907, %vm908
    %v910 = vsel %vm909, %v902, %v906
    %v911 = vand.u32 2147483647, %v816
    %vm912 = vcmp.eq.f32.partialorder %v911, 8.507059e+37
    %v913 = vand.u32 %v816, 2147483648
    %v914 = vor.u32 1.1754944e-38, %v913
    %v915 = vsel %vm912, %v914, %v910
    %v916 = vmul.f32 1.0, %v915
    %v917 = vrcp.pop %v817
    %v918 = vmul.f32 %v817, %v917
    %v919 = vsub.f32 1.0, %v918
    %v920 = vmul.f32 %v917, %v919
    %v921 = vadd.f32 %v917, %v920
    %vm922 = vweird.f32 %v817
    %vm923 = vweird.f32 %v917
    %vm924 = vmor %vm922, %vm923
    %v925 = vsel %vm924, %v917, %v921
    %v926 = vand.u32 2147483647, %v817
    %vm927 = vcmp.eq.f32.partialorder %v926, 8.507059e+37
    %v928 = vand.u32 %v817, 2147483648
    %v929 = vor.u32 1.1754944e-38, %v928
    %v930 = vsel %vm927, %v929, %v925
    %v931 = vmul.f32 1.0, %v930
    %v932 = vrcp.pop %v818
    %v933 = vmul.f32 %v818, %v932
    %v934 = vsub.f32 1.0, %v933
    %v935 = vmul.f32 %v932, %v934
    %v936 = vadd.f32 %v932, %v935
    %vm937 = vweird.f32 %v818
    %vm938 = vweird.f32 %v932
    %vm939 = vmor %vm937, %vm938
    %v940 = vsel %vm939, %v932, %v936
    %v941 = vand.u32 2147483647, %v818
    %vm942 = vcmp.eq.f32.partialorder %v941, 8.507059e+37
    %v943 = vand.u32 %v818, 2147483648
    %v944 = vor.u32 1.1754944e-38, %v943
    %v945 = vsel %vm942, %v944, %v940
    %v946 = vmul.f32 1.0, %v945
    %v947 = vrcp.pop %v819
    %v948 = vmul.f32 %v819, %v947
    %v949 = vsub.f32 1.0, %v948
    %v950 = vmul.f32 %v947, %v949
    %v951 = vadd.f32 %v947, %v950
    %vm952 = vweird.f32 %v819
    %vm953 = vweird.f32 %v947
    %vm954 = vmor %vm952, %vm953
    %v955 = vsel %vm954, %v947, %v951
    %v956 = vand.u32 2147483647, %v819
    %vm957 = vcmp.eq.f32.partialorder %v956, 8.507059e+37
    %v958 = vand.u32 %v819, 2147483648
    %v959 = vor.u32 1.1754944e-38, %v958
    %v960 = vsel %vm957, %v959, %v955
    %v961 = vmul.f32 1.0, %v960
    %v962 = vrcp.pop %v820
    %v963 = vmul.f32 %v820, %v962
    %v964 = vsub.f32 1.0, %v963
    %v965 = vmul.f32 %v962, %v964
    %v966 = vadd.f32 %v962, %v965
    %vm967 = vweird.f32 %v820
    %vm968 = vweird.f32 %v962
    %vm969 = vmor %vm967, %vm968
    %v970 = vsel %vm969, %v962, %v966
    %v971 = vand.u32 2147483647, %v820
    %vm972 = vcmp.eq.f32.partialorder %v971, 8.507059e+37
    %v973 = vand.u32 %v820, 2147483648
    %v974 = vor.u32 1.1754944e-38, %v973
    %v975 = vsel %vm972, %v974, %v970
    %v976 = vmul.f32 1.0, %v975
    %v977 = vrcp.pop %v821
    %v978 = vmul.f32 %v821, %v977
    %v979 = vsub.f32 1.0, %v978
    %v980 = vmul.f32 %v977, %v979
    %v981 = vadd.f32 %v977, %v980
    %vm982 = vweird.f32 %v821
    %vm983 = vweird.f32 %v977
    %vm984 = vmor %vm982, %vm983
    %v985 = vsel %vm984, %v977, %v981
    %v986 = vand.u32 2147483647, %v821
    %vm987 = vcmp.eq.f32.partialorder %v986, 8.507059e+37
    %v988 = vand.u32 %v821, 2147483648
    %v989 = vor.u32 1.1754944e-38, %v988
    %v990 = vsel %vm987, %v989, %v985
    %v991 = vmul.f32 1.0, %v990
    %v992 = vrcp.pop %v822
    %v993 = vmul.f32 %v822, %v992
    %v994 = vsub.f32 1.0, %v993
    %v995 = vmul.f32 %v992, %v994
    %v996 = vadd.f32 %v992, %v995
    %vm997 = vweird.f32 %v822
    %vm998 = vweird.f32 %v992
    %vm999 = vmor %vm997, %vm998
    %v1000 = vsel %vm999, %v992, %v996
    %v1001 = vand.u32 2147483647, %v822
    %vm1002 = vcmp.eq.f32.partialorder %v1001, 8.507059e+37
    %v1003 = vand.u32 %v822, 2147483648
    %v1004 = vor.u32 1.1754944e-38, %v1003
    %v1005 = vsel %vm1002, %v1004, %v1000
    %v1006 = vmul.f32 1.0, %v1005
    %v1007 = vrcp.pop %v823
    %v1008 = vmul.f32 %v823, %v1007
    %v1009 = vsub.f32 1.0, %v1008
    %v1010 = vmul.f32 %v1007, %v1009
    %v1011 = vadd.f32 %v1007, %v1010
    %vm1012 = vweird.f32 %v823
    %vm1013 = vweird.f32 %v1007
    %vm1014 = vmor %vm1012, %vm1013
    %v1015 = vsel %vm1014, %v1007, %v1011
    %v1016 = vand.u32 2147483647, %v823
    %vm1017 = vcmp.eq.f32.partialorder %v1016, 8.507059e+37
    %v1018 = vand.u32 %v823, 2147483648
    %v1019 = vor.u32 1.1754944e-38, %v1018
    %v1020 = vsel %vm1017, %v1019, %v1015
    %v1021 = vmul.f32 1.0, %v1020
    %v1022 = vrcp.pop %v824
    %v1023 = vmul.f32 %v824, %v1022
    %v1024 = vsub.f32 1.0, %v1023
    %v1025 = vmul.f32 %v1022, %v1024
    %v1026 = vadd.f32 %v1022, %v1025
    %vm1027 = vweird.f32 %v824
    %vm1028 = vweird.f32 %v1022
    %vm1029 = vmor %vm1027, %vm1028
    %v1030 = vsel %vm1029, %v1022, %v1026
    %v1031 = vand.u32 2147483647, %v824
    %vm1032 = vcmp.eq.f32.partialorder %v1031, 8.507059e+37
    %v1033 = vand.u32 %v824, 2147483648
    %v1034 = vor.u32 1.1754944e-38, %v1033
    %v1035 = vsel %vm1032, %v1034, %v1030
    %v1036 = vmul.f32 1.0, %v1035
    %v1037 = vrcp.pop %v825
    %v1038 = vmul.f32 %v825, %v1037
    %v1039 = vsub.f32 1.0, %v1038
    %v1040 = vmul.f32 %v1037, %v1039
    %v1041 = vadd.f32 %v1037, %v1040
    %vm1042 = vweird.f32 %v825
    %vm1043 = vweird.f32 %v1037
    %vm1044 = vmor %vm1042, %vm1043
    %v1045 = vsel %vm1044, %v1037, %v1041
    %v1046 = vand.u32 2147483647, %v825
    %vm1047 = vcmp.eq.f32.partialorder %v1046, 8.507059e+37
    %v1048 = vand.u32 %v825, 2147483648
    %v1049 = vor.u32 1.1754944e-38, %v1048
    %v1050 = vsel %vm1047, %v1049, %v1045
    %v1051 = vmul.f32 1.0, %v1050
    %v1052 = vrcp.pop %v826
    %v1053 = vmul.f32 %v826, %v1052
    %v1054 = vsub.f32 1.0, %v1053
    %v1055 = vmul.f32 %v1052, %v1054
    %v1056 = vadd.f32 %v1052, %v1055
    %vm1057 = vweird.f32 %v826
    %vm1058 = vweird.f32 %v1052
    %vm1059 = vmor %vm1057, %vm1058
    %v1060 = vsel %vm1059, %v1052, %v1056
    %v1061 = vand.u32 2147483647, %v826
    %vm1062 = vcmp.eq.f32.partialorder %v1061, 8.507059e+37
    %v1063 = vand.u32 %v826, 2147483648
    %v1064 = vor.u32 1.1754944e-38, %v1063
    %v1065 = vsel %vm1062, %v1064, %v1060
    %v1066 = vmul.f32 1.0, %v1065
    %v1067 = vmul.f32 %v747, %v841
    %v1068 = vmul.f32 %v748, %v856
    %v1069 = vmul.f32 %v749, %v871
    %v1070 = vmul.f32 %v750, %v886
    %v1071 = vmul.f32 %v751, %v901
    %v1072 = vmul.f32 %v752, %v916
    %v1073 = vmul.f32 %v753, %v931
    %v1074 = vmul.f32 %v754, %v946
    %v1075 = vmul.f32 %v755, %v961
    %v1076 = vmul.f32 %v756, %v976
    %v1077 = vmul.f32 %v757, %v991
    %v1078 = vmul.f32 %v758, %v1006
    %v1079 = vmul.f32 %v759, %v1021
    %v1080 = vmul.f32 %v760, %v1036
    %v1081 = vmul.f32 %v761, %v1051
    %v1082 = vmul.f32 %v762, %v1066
    %v1100 = vrot.slane 0.0, 7
    %v1101 = vrot.slane %v1067, 7
    %v1102 = vrot.slane %v1068, 7
    %v1103 = vrot.slane %v1069, 7
    %v1104 = vrot.slane %v1070, 7
    %v1105 = vrot.slane %v1071, 7
    %v1106 = vrot.slane %v1072, 7
    %v1107 = vrot.slane %v1073, 7
    %v1108 = vrot.slane %v1074, 7
    %v1109 = vrot.slane %v1075, 7
    %v1110 = vrot.slane %v1076, 7
    %v1111 = vrot.slane %v1077, 7
    %v1112 = vrot.slane %v1078, 7
    %v1113 = vrot.slane %v1079, 7
    %v1114 = vrot.slane %v1080, 7
    %v1115 = vrot.slane %v1081, 7
    %v1116 = vrot.slane %v1082, 7
    %vm1134 = vcmask 1040384
    %v1135 = vsel %vm1134, 0.0, %v1100
    %v1136 = vsel %vm1134, 0.0, %v1101
    %v1137 = vsel %vm1134, 0.0, %v1102
    %v1138 = vsel %vm1134, 0.0, %v1103
    %v1139 = vsel %vm1134, 0.0, %v1104
    %v1140 = vsel %vm1134, 0.0, %v1105
    %v1141 = vsel %vm1134, 0.0, %v1106
    %v1142 = vsel %vm1134, 0.0, %v1107
    %v1143 = vsel %vm1134, 0.0, %v1108
    %v1144 = vsel %vm1134, 0.0, %v1109
    %v1145 = vsel %vm1134, 0.0, %v1110
    %v1146 = vsel %vm1134, 0.0, %v1111
    %v1147 = vsel %vm1134, 0.0, %v1112
    %v1148 = vsel %vm1134, 0.0, %v1113
    %v1149 = vsel %vm1134, 0.0, %v1114
    %v1150 = vsel %vm1134, 0.0, %v1115
    %v1151 = vsel %vm1134, 0.0, %v1116
    %v1152 = vsel %vm1134, %v1100, 0.0
    %v1153 = vsel %vm1134, %v1101, 0.0
    %v1154 = vsel %vm1134, %v1102, 0.0
    %v1155 = vsel %vm1134, %v1103, 0.0
    %v1156 = vsel %vm1134, %v1104, 0.0
    %v1157 = vsel %vm1134, %v1105, 0.0
    %v1158 = vsel %vm1134, %v1106, 0.0
    %v1159 = vsel %vm1134, %v1107, 0.0
    %v1160 = vsel %vm1134, %v1108, 0.0
    %v1161 = vsel %vm1134, %v1109, 0.0
    %v1162 = vsel %vm1134, %v1110, 0.0
    %v1163 = vsel %vm1134, %v1111, 0.0
    %v1164 = vsel %vm1134, %v1112, 0.0
    %v1165 = vsel %vm1134, %v1113, 0.0
    %v1166 = vsel %vm1134, %v1114, 0.0
    %v1167 = vsel %vm1134, %v1115, 0.0
    %v1168 = vsel %vm1134, %v1116, 0.0
    %vm1199 = vcmask 1046528
    %v1200 = vrot.slane %v1135, 1
    %v1201 = vrot.slane %v1152, 1
    %v1202 = vsel %vm1199, %v1200, %v1201
    %v1203 = vrot.slane %v1136, 1
    %v1204 = vrot.slane %v1153, 1
    %v1205 = vsel %vm1199, %v1203, %v1204
    %v1206 = vrot.slane %v1137, 1
    %v1207 = vrot.slane %v1154, 1
    %v1208 = vsel %vm1199, %v1206, %v1207
    %v1209 = vrot.slane %v1138, 1
    %v1210 = vrot.slane %v1155, 1
    %v1211 = vsel %vm1199, %v1209, %v1210
    %v1212 = vrot.slane %v1139, 1
    %v1213 = vrot.slane %v1156, 1
    %v1214 = vsel %vm1199, %v1212, %v1213
    %v1215 = vrot.slane %v1140, 1
    %v1216 = vrot.slane %v1157, 1
    %v1217 = vsel %vm1199, %v1215, %v1216
    %v1218 = vrot.slane %v1141, 1
    %v1219 = vrot.slane %v1158, 1
    %v1220 = vsel %vm1199, %v1218, %v1219
    %v1221 = vrot.slane %v1142, 1
    %v1222 = vrot.slane %v1159, 1
    %v1223 = vsel %vm1199, %v1221, %v1222
    %v1224 = vrot.slane %v1144, 1
    %v1225 = vrot.slane %v1161, 1
    %v1226 = vsel %vm1199, %v1224, %v1225
    %v1227 = vrot.slane %v1145, 1
    %v1228 = vrot.slane %v1162, 1
    %v1229 = vsel %vm1199, %v1227, %v1228
    %v1230 = vrot.slane %v1146, 1
    %v1231 = vrot.slane %v1163, 1
    %v1232 = vsel %vm1199, %v1230, %v1231
    %v1233 = vrot.slane %v1147, 1
    %v1234 = vrot.slane %v1164, 1
    %v1235 = vsel %vm1199, %v1233, %v1234
    %v1236 = vrot.slane %v1148, 1
    %v1237 = vrot.slane %v1165, 1
    %v1238 = vsel %vm1199, %v1236, %v1237
    %v1239 = vrot.slane %v1149, 1
    %v1240 = vrot.slane %v1166, 1
    %v1241 = vsel %vm1199, %v1239, %v1240
    %v1242 = vrot.slane %v1150, 1
    %v1243 = vrot.slane %v1167, 1
    %v1244 = vsel %vm1199, %v1242, %v1243
    %1245 = vrot.lane.b32.xlu0 %v1202, 64
    %v1246 = vpop.permute.xlu0 %1245
    %1247 = vrot.lane.b32.xlu0 %v1205, 64
    %v1248 = vpop.permute.xlu0 %1247
    %1249 = vrot.lane.b32.xlu0 %v1208, 64
    %v1250 = vpop.permute.xlu0 %1249
    %1251 = vrot.lane.b32.xlu0 %v1211, 64
    %v1252 = vpop.permute.xlu0 %1251
    %1253 = vrot.lane.b32.xlu0 %v1214, 64
    %v1254 = vpop.permute.xlu0 %1253
    %1255 = vrot.lane.b32.xlu0 %v1217, 64
    %v1256 = vpop.permute.xlu0 %1255
    %1257 = vrot.lane.b32.xlu0 %v1220, 64
    %v1258 = vpop.permute.xlu0 %1257
    %1259 = vrot.lane.b32.xlu0 %v1223, 64
    %v1260 = vpop.permute.xlu0 %1259
    %1261 = vrot.lane.b32.xlu0 %v1226, 64
    %v1262 = vpop.permute.xlu0 %1261
    %1263 = vrot.lane.b32.xlu0 %v1229, 64
    %v1264 = vpop.permute.xlu0 %1263
    %1265 = vrot.lane.b32.xlu0 %v1232, 64
    %v1266 = vpop.permute.xlu0 %1265
    %1267 = vrot.lane.b32.xlu0 %v1235, 64
    %v1268 = vpop.permute.xlu0 %1267
    %1269 = vrot.lane.b32.xlu0 %v1238, 64
    %v1270 = vpop.permute.xlu0 %1269
    %1271 = vrot.lane.b32.xlu0 %v1241, 64
    %v1272 = vpop.permute.xlu0 %1271
    %1273 = vrot.lane.b32.xlu0 %v1244, 64
    %v1274 = vpop.permute.xlu0 %1273
    %vm1290 = vcmask 1045504
    %v1291 = vrot.slane %v1135, 2
    %v1292 = vrot.slane %v1152, 2
    %v1293 = vsel %vm1290, %v1291, %v1292
    %v1294 = vrot.slane %v1136, 2
    %v1295 = vrot.slane %v1153, 2
    %v1296 = vsel %vm1290, %v1294, %v1295
    %v1297 = vrot.slane %v1137, 2
    %v1298 = vrot.slane %v1154, 2
    %v1299 = vsel %vm1290, %v1297, %v1298
    %v1300 = vrot.slane %v1138, 2
    %v1301 = vrot.slane %v1155, 2
    %v1302 = vsel %vm1290, %v1300, %v1301
    %v1303 = vrot.slane %v1139, 2
    %v1304 = vrot.slane %v1156, 2
    %v1305 = vsel %vm1290, %v1303, %v1304
    %v1306 = vrot.slane %v1140, 2
    %v1307 = vrot.slane %v1157, 2
    %v1308 = vsel %vm1290, %v1306, %v1307
    %v1309 = vrot.slane %v1141, 2
    %v1310 = vrot.slane %v1158, 2
    %v1311 = vsel %vm1290, %v1309, %v1310
    %v1312 = vrot.slane %v1142, 2
    %v1313 = vrot.slane %v1159, 2
    %v1314 = vsel %vm1290, %v1312, %v1313
    %v1315 = vrot.slane %v1144, 2
    %v1316 = vrot.slane %v1161, 2
    %v1317 = vsel %vm1290, %v1315, %v1316
    %v1318 = vrot.slane %v1145, 2
    %v1319 = vrot.slane %v1162, 2
    %v1320 = vsel %vm1290, %v1318, %v1319
    %v1321 = vrot.slane %v1146, 2
    %v1322 = vrot.slane %v1163, 2
    %v1323 = vsel %vm1290, %v1321, %v1322
    %v1324 = vrot.slane %v1147, 2
    %v1325 = vrot.slane %v1164, 2
    %v1326 = vsel %vm1290, %v1324, %v1325
    %v1327 = vrot.slane %v1148, 2
    %v1328 = vrot.slane %v1165, 2
    %v1329 = vsel %vm1290, %v1327, %v1328
    %v1330 = vrot.slane %v1149, 2
    %v1331 = vrot.slane %v1166, 2
    %v1332 = vsel %vm1290, %v1330, %v1331
    %v1333 = vrot.slane %v1150, 2
    %v1334 = vrot.slane %v1167, 2
    %v1335 = vsel %vm1290, %v1333, %v1334
    %1353 = vrot.lane.b32.xlu0 %v1136, 64
    %v1354 = vpop.permute.xlu0 %1353
    %1355 = vrot.lane.b32.xlu0 %v1137, 64
    %v1356 = vpop.permute.xlu0 %1355
    %1357 = vrot.lane.b32.xlu0 %v1138, 64
    %v1358 = vpop.permute.xlu0 %1357
    %1359 = vrot.lane.b32.xlu0 %v1139, 64
    %v1360 = vpop.permute.xlu0 %1359
    %1361 = vrot.lane.b32.xlu0 %v1140, 64
    %v1362 = vpop.permute.xlu0 %1361
    %1363 = vrot.lane.b32.xlu0 %v1141, 64
    %v1364 = vpop.permute.xlu0 %1363
    %1365 = vrot.lane.b32.xlu0 %v1142, 64
    %v1366 = vpop.permute.xlu0 %1365
    %1367 = vrot.lane.b32.xlu0 %v1143, 64
    %v1368 = vpop.permute.xlu0 %1367
    %1369 = vrot.lane.b32.xlu0 %v1144, 64
    %v1370 = vpop.permute.xlu0 %1369
    %1371 = vrot.lane.b32.xlu0 %v1145, 64
    %v1372 = vpop.permute.xlu0 %1371
    %1373 = vrot.lane.b32.xlu0 %v1146, 64
    %v1374 = vpop.permute.xlu0 %1373
    %1375 = vrot.lane.b32.xlu0 %v1147, 64
    %v1376 = vpop.permute.xlu0 %1375
    %1377 = vrot.lane.b32.xlu0 %v1148, 64
    %v1378 = vpop.permute.xlu0 %1377
    %1379 = vrot.lane.b32.xlu0 %v1149, 64
    %v1380 = vpop.permute.xlu0 %1379
    %1381 = vrot.lane.b32.xlu0 %v1150, 64
    %v1382 = vpop.permute.xlu0 %1381
    %1383 = vrot.lane.b32.xlu0 %v1151, 64
    %v1384 = vpop.permute.xlu0 %1383
    %v1403 = vrot.slane %v1143, 1
    %v1404 = vrot.slane %v1160, 1
    %v1405 = vsel %vm1199, %v1403, %v1404
    %v1406 = vrot.slane %v1151, 1
    %v1407 = vrot.slane %v1168, 1
    %v1408 = vsel %vm1199, %v1406, %v1407
    %v1425 = vrot.slane %v1143, 2
    %v1426 = vrot.slane %v1160, 2
    %v1427 = vsel %vm1290, %v1425, %v1426
    %v1428 = vrot.slane %v1151, 2
    %v1429 = vrot.slane %v1168, 2
    %v1430 = vsel %vm1290, %v1428, %v1429
    %1431 = vrot.lane.b32.xlu0 %v1296, 64
    %v1432 = vpop.permute.xlu0 %1431
    %1433 = vrot.lane.b32.xlu0 %v1299, 64
    %v1434 = vpop.permute.xlu0 %1433
    %1435 = vrot.lane.b32.xlu0 %v1302, 64
    %v1436 = vpop.permute.xlu0 %1435
    %1437 = vrot.lane.b32.xlu0 %v1305, 64
    %v1438 = vpop.permute.xlu0 %1437
    %1439 = vrot.lane.b32.xlu0 %v1308, 64
    %v1440 = vpop.permute.xlu0 %1439
    %1441 = vrot.lane.b32.xlu0 %v1311, 64
    %v1442 = vpop.permute.xlu0 %1441
    %1443 = vrot.lane.b32.xlu0 %v1314, 64
    %v1444 = vpop.permute.xlu0 %1443
    %1445 = vrot.lane.b32.xlu0 %v1427, 64
    %v1446 = vpop.permute.xlu0 %1445
    %1447 = vrot.lane.b32.xlu0 %v1317, 64
    %v1448 = vpop.permute.xlu0 %1447
    %1449 = vrot.lane.b32.xlu0 %v1320, 64
    %v1450 = vpop.permute.xlu0 %1449
    %1451 = vrot.lane.b32.xlu0 %v1323, 64
    %v1452 = vpop.permute.xlu0 %1451
    %1453 = vrot.lane.b32.xlu0 %v1326, 64
    %v1454 = vpop.permute.xlu0 %1453
    %1455 = vrot.lane.b32.xlu0 %v1329, 64
    %v1456 = vpop.permute.xlu0 %1455
    %1457 = vrot.lane.b32.xlu0 %v1332, 64
    %v1458 = vpop.permute.xlu0 %1457
    %1459 = vrot.lane.b32.xlu0 %v1335, 64
    %v1460 = vpop.permute.xlu0 %1459
    %1461 = vrot.lane.b32.xlu0 %v1430, 64
    %v1462 = vpop.permute.xlu0 %1461
    %1479 = vrot.lane.b32.xlu0 %v1405, 64
    %v1480 = vpop.permute.xlu0 %1479
    %1481 = vrot.lane.b32.xlu0 %v1408, 64
    %v1482 = vpop.permute.xlu0 %1481
    %v1487 = vsel %vm86, %v1135, %v1246
    %v1488 = vsel %vm86, %v1136, %v1248
    %v1489 = vsel %vm86, %v1137, %v1250
    %v1490 = vsel %vm86, %v1138, %v1252
    %v1491 = vsel %vm86, %v1139, %v1254
    %v1492 = vsel %vm86, %v1140, %v1256
    %v1493 = vsel %vm86, %v1141, %v1258
    %v1494 = vsel %vm86, %v1142, %v1260
    %v1495 = vsel %vm86, %v1144, %v1262
    %v1496 = vsel %vm86, %v1145, %v1264
    %v1497 = vsel %vm86, %v1146, %v1266
    %v1498 = vsel %vm86, %v1147, %v1268
    %v1499 = vsel %vm86, %v1148, %v1270
    %v1500 = vsel %vm86, %v1149, %v1272
    %v1501 = vsel %vm86, %v1150, %v1274
    %v1502 = vsel %vm86, %v1293, %v1354
    %v1503 = vsel %vm86, %v1296, %v1356
    %v1504 = vsel %vm86, %v1299, %v1358
    %v1505 = vsel %vm86, %v1302, %v1360
    %v1506 = vsel %vm86, %v1305, %v1362
    %v1507 = vsel %vm86, %v1308, %v1364
    %v1508 = vsel %vm86, %v1311, %v1366
    %v1509 = vsel %vm86, %v1314, %v1368
    %v1510 = vsel %vm86, %v1293, %v1370
    %v1511 = vsel %vm86, %v1317, %v1372
    %v1512 = vsel %vm86, %v1320, %v1374
    %v1513 = vsel %vm86, %v1323, %v1376
    %v1514 = vsel %vm86, %v1326, %v1378
    %v1515 = vsel %vm86, %v1329, %v1380
    %v1516 = vsel %vm86, %v1332, %v1382
    %v1517 = vsel %vm86, %v1335, %v1384
    %v1518 = vsel %vm86, %v1205, %v1432
    %v1519 = vsel %vm86, %v1208, %v1434
    %v1520 = vsel %vm86, %v1211, %v1436
    %v1521 = vsel %vm86, %v1214, %v1438
    %v1522 = vsel %vm86, %v1217, %v1440
    %v1523 = vsel %vm86, %v1220, %v1442
    %v1524 = vsel %vm86, %v1223, %v1444
    %v1525 = vsel %vm86, %v1405, %v1446
    %v1526 = vsel %vm86, %v1226, %v1448
    %v1527 = vsel %vm86, %v1229, %v1450
    %v1528 = vsel %vm86, %v1232, %v1452
    %v1529 = vsel %vm86, %v1235, %v1454
    %v1530 = vsel %vm86, %v1238, %v1456
    %v1531 = vsel %vm86, %v1241, %v1458
    %v1532 = vsel %vm86, %v1244, %v1460
    %v1533 = vsel %vm86, %v1408, %v1462
    %v1534 = vsel %vm86, %v1143, %v1480
    %v1535 = vsel %vm86, %v1151, %v1482
    %v1536 = vpack.c.bf16 %v1488, %v1487
    %v1537 = vpack.c.bf16 %v1503, %v1502
    %v1538 = vpack.c.bf16 %v1519, %v1518
    %v1539 = vpack.c.bf16 %v1490, %v1489
    %v1540 = vpack.c.bf16 %v1302, %v1299
    %v1541 = vpack.c.bf16 %v1505, %v1504
    %v1542 = vpack.c.bf16 %v1521, %v1520
    %v1543 = vpack.c.bf16 %v1492, %v1491
    %v1544 = vpack.c.bf16 %v1308, %v1305
    %v1545 = vpack.c.bf16 %v1507, %v1506
    %v1546 = vpack.c.bf16 %v1523, %v1522
    %v1547 = vpack.c.bf16 %v1494, %v1493
    %v1548 = vpack.c.bf16 %v1314, %v1311
    %v1549 = vpack.c.bf16 %v1509, %v1508
    %v1550 = vpack.c.bf16 %v1525, %v1524
    %v1551 = vpack.c.bf16 %v1487, %v1534
    %v1552 = vpack.c.bf16 %v1293, %v1427
    %v1553 = vpack.c.bf16 %v1495, %v1487
    %v1554 = vpack.c.bf16 %v1511, %v1510
    %v1555 = vpack.c.bf16 %v1527, %v1526
    %v1556 = vpack.c.bf16 %v1497, %v1496
    %v1557 = vpack.c.bf16 %v1323, %v1320
    %v1558 = vpack.c.bf16 %v1513, %v1512
    %v1559 = vpack.c.bf16 %v1529, %v1528
    %v1560 = vpack.c.bf16 %v1499, %v1498
    %v1561 = vpack.c.bf16 %v1329, %v1326
    %v1562 = vpack.c.bf16 %v1515, %v1514
    %v1563 = vpack.c.bf16 %v1531, %v1530
    %v1564 = vpack.c.bf16 %v1501, %v1500
    %v1565 = vpack.c.bf16 %v1335, %v1332
    %v1566 = vpack.c.bf16 %v1517, %v1516
    %v1567 = vpack.c.bf16 %v1533, %v1532
    %v1568 = vpack.c.bf16 %v1487, %v1535
    %v1569 = vpack.c.bf16 %v1293, %v1430
    %v1570 = vld [vmem:[%s6] sm:$0xf]
    %v1571 = vld [vmem:[%s6 + $0x4] sm:$0xf]
    %v1572 = vld [vmem:[%s6 + $0x8] sm:$0xf]
    %v1573 = vld [vmem:[%s6 + $0xc] sm:$0xf]
    %v1574 = vld [vmem:[%s6 + $0x10] sm:$0xf]
    %v1575 = vld [vmem:[%s6 + $0x14] sm:$0xf]
    %v1576 = vld [vmem:[%s6 + $0x18] sm:$0xf]
    %v1577 = vld [vmem:[%s6 + $0x1c] sm:$0xf]
    %v1578 = vld [vmem:[%s6 + $0x20] sm:$0xf]
    %v1579 = vld [vmem:[%s6 + $0x24] sm:$0xf]
    %v1580 = vld [vmem:[%s6 + $0x28] sm:$0xf]
    %v1581 = vld [vmem:[%s6 + $0x2c] sm:$0xf]
    %v1582 = vld [vmem:[%s6 + $0x30] sm:$0xf]
    %v1583 = vld [vmem:[%s6 + $0x34] sm:$0xf]
    %v1584 = vld [vmem:[%s6 + $0x38] sm:$0xf]
    %v1585 = vld [vmem:[%s6 + $0x3c] sm:$0xf]
    %v1586 = vld [vmem:[%s6 + $0x40] sm:$0xf]
    %v1587 = vld [vmem:[%s6 + $0x44] sm:$0xf]
    %v1588 = vld [vmem:[%s6 + $0x48] sm:$0xf]
    %v1589 = vld [vmem:[%s6 + $0x4c] sm:$0xf]
    %v1590 = vld [vmem:[%s6 + $0x50] sm:$0xf]
    %v1591 = vld [vmem:[%s6 + $0x54] sm:$0xf]
    %v1592 = vld [vmem:[%s6 + $0x58] sm:$0xf]
    %v1593 = vld [vmem:[%s6 + $0x5c] sm:$0xf]
    %v1594 = vld [vmem:[%s6 + $0x60] sm:$0xf]
    %v1595 = vld [vmem:[%s6 + $0x64] sm:$0xf]
    %v1596 = vld [vmem:[%s6 + $0x68] sm:$0xf]
    %v1597 = vld [vmem:[%s6 + $0x6c] sm:$0xf]
    %v1598 = vld [vmem:[%s6 + $0x70] sm:$0xf]
    %v1599 = vld [vmem:[%s6 + $0x74] sm:$0xf]
    %v1600 = vld [vmem:[%s6 + $0x78] sm:$0xf]
    %v1601 = vld [vmem:[%s6 + $0x7c] sm:$0xf]
    %v1602 = vld [vmem:[%s6 + $0x80] sm:$0xf]
    %v1603 = vld [vmem:[%s6 + $0x84] sm:$0xf]
    %v1604 = vld [vmem:[%s6 + $0x88] sm:$0xf]
    %v1605 = vld [vmem:[%s6 + $0x8c] sm:$0xf]
    %v1606 = vld [vmem:[%s6 + $0x90] sm:$0xf]
    %v1607 = vld [vmem:[%s6 + $0x94] sm:$0xf]
    %v1608 = vld [vmem:[%s6 + $0x98] sm:$0xf]
    %v1609 = vld [vmem:[%s6 + $0x9c] sm:$0xf]
    %v1610 = vld [vmem:[%s6 + $0xa0] sm:$0xf]
    %v1611 = vld [vmem:[%s6 + $0xa4] sm:$0xf]
    %v1612 = vld [vmem:[%s6 + $0xa8] sm:$0xf]
    %v1613 = vld [vmem:[%s6 + $0xac] sm:$0xf]
    %v1614 = vld [vmem:[%s6 + $0xb0] sm:$0xf]
    %v1615 = vld [vmem:[%s6 + $0xb4] sm:$0xf]
    %v1616 = vld [vmem:[%s6 + $0xb8] sm:$0xf]
    %v1617 = vld [vmem:[%s6 + $0xbc] sm:$0xf]
    %v1618 = vld [vmem:[%s6 + $0xc0] sm:$0xf]
    %v1619 = vld [vmem:[%s6 + $0xc4] sm:$0xf]
    %v1620 = vld [vmem:[%s6 + $0xc8] sm:$0xf]
    %v1621 = vld [vmem:[%s6 + $0xcc] sm:$0xf]
    %v1622 = vld [vmem:[%s6 + $0xd0] sm:$0xf]
    %v1623 = vld [vmem:[%s6 + $0xd4] sm:$0xf]
    %v1624 = vld [vmem:[%s6 + $0xd8] sm:$0xf]
    %v1625 = vld [vmem:[%s6 + $0xdc] sm:$0xf]
    %v1626 = vld [vmem:[%s6 + $0xe0] sm:$0xf]
    %v1627 = vld [vmem:[%s6 + $0xe4] sm:$0xf]
    %v1628 = vld [vmem:[%s6 + $0xe8] sm:$0xf]
    %v1629 = vld [vmem:[%s6 + $0xec] sm:$0xf]
    %v1630 = vld [vmem:[%s6 + $0xf0] sm:$0xf]
    %v1631 = vld [vmem:[%s6 + $0xf4] sm:$0xf]
    %v1632 = vld [vmem:[%s6 + $0xf8] sm:$0xf]
    %v1633 = vld [vmem:[%s6 + $0xfc] sm:$0xf]
    %v1634 = vld [vmem:[%s6 + $0x100] sm:$0xf]
    %v1635 = vld [vmem:[%s6 + $0x104] sm:$0xf]
    %v1636 = vld [vmem:[%s6 + $0x108] sm:$0xf]
    %v1637 = vld [vmem:[%s6 + $0x10c] sm:$0xf]
    %v1638 = vld [vmem:[%s6 + $0x110] sm:$0xf]
    %v1639 = vld [vmem:[%s6 + $0x114] sm:$0xf]
    %v1640 = vld [vmem:[%s6 + $0x118] sm:$0xf]
    %v1641 = vld [vmem:[%s6 + $0x11c] sm:$0xf]
    %v1714 = vunpack.c.l.b16 %v1570
    %v1715 = vunpack.c.l.b16 %v1571
    %v1716 = vunpack.c.l.b16 %v1572
    %v1717 = vunpack.c.l.b16 %v1573
    %v1718 = vunpack.c.l.b16 %v1574
    %v1719 = vunpack.c.l.b16 %v1575
    %v1720 = vunpack.c.l.b16 %v1576
    %v1721 = vunpack.c.l.b16 %v1577
    %v1722 = vunpack.c.l.b16 %v1578
    %v1723 = vunpack.c.l.b16 %v1579
    %v1724 = vunpack.c.l.b16 %v1580
    %v1725 = vunpack.c.l.b16 %v1581
    %v1726 = vunpack.c.l.b16 %v1582
    %v1727 = vunpack.c.l.b16 %v1583
    %v1728 = vunpack.c.l.b16 %v1584
    %v1729 = vunpack.c.l.b16 %v1585
    %v1730 = vunpack.c.l.b16 %v1586
    %v1731 = vunpack.c.l.b16 %v1587
    %v1732 = vunpack.c.l.b16 %v1588
    %v1733 = vunpack.c.l.b16 %v1589
    %v1734 = vunpack.c.l.b16 %v1590
    %v1735 = vunpack.c.l.b16 %v1591
    %v1736 = vunpack.c.l.b16 %v1592
    %v1737 = vunpack.c.l.b16 %v1593
    %v1738 = vunpack.c.l.b16 %v1594
    %v1739 = vunpack.c.l.b16 %v1595
    %v1740 = vunpack.c.l.b16 %v1596
    %v1741 = vunpack.c.l.b16 %v1597
    %v1742 = vunpack.c.l.b16 %v1598
    %v1743 = vunpack.c.l.b16 %v1599
    %v1744 = vunpack.c.l.b16 %v1600
    %v1745 = vunpack.c.l.b16 %v1601
    %v1746 = vunpack.c.l.b16 %v1602
    %v1747 = vunpack.c.l.b16 %v1603
    %v1748 = vunpack.c.l.b16 %v1604
    %v1749 = vunpack.c.l.b16 %v1605
    %v1750 = vunpack.c.l.b16 %v1606
    %v1751 = vunpack.c.l.b16 %v1607
    %v1752 = vunpack.c.l.b16 %v1608
    %v1753 = vunpack.c.l.b16 %v1609
    %v1754 = vunpack.c.l.b16 %v1610
    %v1755 = vunpack.c.l.b16 %v1611
    %v1756 = vunpack.c.l.b16 %v1612
    %v1757 = vunpack.c.l.b16 %v1613
    %v1758 = vunpack.c.l.b16 %v1614
    %v1759 = vunpack.c.l.b16 %v1615
    %v1760 = vunpack.c.l.b16 %v1616
    %v1761 = vunpack.c.l.b16 %v1617
    %v1762 = vunpack.c.l.b16 %v1618
    %v1763 = vunpack.c.l.b16 %v1619
    %v1764 = vunpack.c.l.b16 %v1620
    %v1765 = vunpack.c.l.b16 %v1621
    %v1766 = vunpack.c.l.b16 %v1622
    %v1767 = vunpack.c.l.b16 %v1623
    %v1768 = vunpack.c.l.b16 %v1624
    %v1769 = vunpack.c.l.b16 %v1625
    %v1770 = vunpack.c.l.b16 %v1626
    %v1771 = vunpack.c.l.b16 %v1627
    %v1772 = vunpack.c.l.b16 %v1628
    %v1773 = vunpack.c.l.b16 %v1629
    %v1774 = vunpack.c.l.b16 %v1630
    %v1775 = vunpack.c.l.b16 %v1631
    %v1776 = vunpack.c.l.b16 %v1632
    %v1777 = vunpack.c.l.b16 %v1633
    %v1778 = vunpack.c.l.b16 %v1634
    %v1779 = vunpack.c.l.b16 %v1635
    %v1780 = vunpack.c.l.b16 %v1636
    %v1781 = vunpack.c.l.b16 %v1637
    %v1782 = vunpack.c.l.b16 %v1638
    %v1783 = vunpack.c.l.b16 %v1639
    %v1784 = vunpack.c.l.b16 %v1640
    %v1785 = vunpack.c.l.b16 %v1641
    %v1786 = vpack.c.b16 %v1715, %v1714
    %v1787 = vpack.c.b16 %v1717, %v1716
    %v1788 = vpack.c.b16 %v1719, %v1718
    %v1789 = vpack.c.b16 %v1721, %v1720
    %v1790 = vpack.c.b16 %v1723, %v1722
    %v1791 = vpack.c.b16 %v1725, %v1724
    %v1792 = vpack.c.b16 %v1727, %v1726
    %v1793 = vpack.c.b16 %v1729, %v1728
    %v1794 = vpack.c.b16 %v1731, %v1730
    %v1795 = vpack.c.b16 %v1733, %v1732
    %v1796 = vpack.c.b16 %v1735, %v1734
    %v1797 = vpack.c.b16 %v1737, %v1736
    %v1798 = vpack.c.b16 %v1739, %v1738
    %v1799 = vpack.c.b16 %v1741, %v1740
    %v1800 = vpack.c.b16 %v1743, %v1742
    %v1801 = vpack.c.b16 %v1745, %v1744
    %v1802 = vpack.c.b16 %v1747, %v1746
    %v1803 = vpack.c.b16 %v1749, %v1748
    %v1804 = vpack.c.b16 %v1751, %v1750
    %v1805 = vpack.c.b16 %v1753, %v1752
    %v1806 = vpack.c.b16 %v1755, %v1754
    %v1807 = vpack.c.b16 %v1757, %v1756
    %v1808 = vpack.c.b16 %v1759, %v1758
    %v1809 = vpack.c.b16 %v1761, %v1760
    %v1810 = vpack.c.b16 %v1763, %v1762
    %v1811 = vpack.c.b16 %v1765, %v1764
    %v1812 = vpack.c.b16 %v1767, %v1766
    %v1813 = vpack.c.b16 %v1769, %v1768
    %v1814 = vpack.c.b16 %v1771, %v1770
    %v1815 = vpack.c.b16 %v1773, %v1772
    %v1816 = vpack.c.b16 %v1775, %v1774
    %v1817 = vpack.c.b16 %v1777, %v1776
    %v1818 = vpack.c.b16 %v1779, %v1778
    %v1819 = vpack.c.b16 %v1781, %v1780
    %v1820 = vpack.c.b16 %v1783, %v1782
    %v1821 = vpack.c.b16 %v1785, %v1784
    %v1859 = vsel %vm86, %v1540, 0
    %v1862 = vsel %vm86, %v1544, 0
    %v1865 = vsel %vm86, %v1548, 0
    %v1868 = vsel %vm86, %v1552, 0
    %v1871 = vsel %vm86, %v1557, 0
    %v1874 = vsel %vm86, %v1561, 0
    %v1877 = vsel %vm86, %v1565, 0
    %v1880 = vsel %vm86, %v1569, 0
    %1882 = vmatpush.bf16.msra.mxu0 %v1793
    %1883 = vmatpush.bf16.msra.mxu0 %v1792
    %1884 = vmatpush.bf16.msra.mxu0 %v1791
    %1885 = vmatpush.bf16.msra.mxu0 %v1790
    %1886 = vmatpush.bf16.msra.mxu0 %v1789
    %1887 = vmatpush.bf16.msra.mxu0 %v1788
    %1888 = vmatpush.bf16.msra.mxu0 %v1787
    %1889 = vmatpush.bf16.msra.mxu0 %v1786
    %1890 = vmatmul.bf16.gmra.mxu0 %v1536
    %v1891 = vpop.f32.mrf.mxu0
    %v1892 = vadd.f32 0.0, %v1891
    %v1893 = vpop.f32.mrf.mxu0
    %v1894 = vadd.f32 0.0, %v1893
    %1895 = vmatmul.bf16.gmra.mxu0 %v1539
    %v1896 = vpop.f32.mrf.mxu0
    %v1897 = vadd.f32 0.0, %v1896
    %v1898 = vpop.f32.mrf.mxu0
    %v1899 = vadd.f32 0.0, %v1898
    %1900 = vmatmul.bf16.gmra.mxu0 %v1543
    %v1901 = vpop.f32.mrf.mxu0
    %v1902 = vadd.f32 0.0, %v1901
    %v1903 = vpop.f32.mrf.mxu0
    %v1904 = vadd.f32 0.0, %v1903
    %1905 = vmatmul.bf16.gmra.mxu0 %v1547
    %v1906 = vpop.f32.mrf.mxu0
    %v1907 = vadd.f32 0.0, %v1906
    %v1908 = vpop.f32.mrf.mxu0
    %v1909 = vadd.f32 0.0, %v1908
    %1910 = vmatmul.bf16.gmra.mxu0 %v1553
    %v1911 = vpop.f32.mrf.mxu0
    %v1912 = vadd.f32 0.0, %v1911
    %v1913 = vpop.f32.mrf.mxu0
    %v1914 = vadd.f32 0.0, %v1913
    %1915 = vmatmul.bf16.gmra.mxu0 %v1556
    %v1916 = vpop.f32.mrf.mxu0
    %v1917 = vadd.f32 0.0, %v1916
    %v1918 = vpop.f32.mrf.mxu0
    %v1919 = vadd.f32 0.0, %v1918
    %1920 = vmatmul.bf16.gmra.mxu0 %v1560
    %v1921 = vpop.f32.mrf.mxu0
    %v1922 = vadd.f32 0.0, %v1921
    %v1923 = vpop.f32.mrf.mxu0
    %v1924 = vadd.f32 0.0, %v1923
    %1925 = vmatmul.bf16.gmra.mxu0 %v1564
    %v1926 = vpop.f32.mrf.mxu0
    %v1927 = vadd.f32 0.0, %v1926
    %v1928 = vpop.f32.mrf.mxu0
    %v1929 = vadd.f32 0.0, %v1928
    %1930 = vdwg.mxu0
    %1931 = vmatpush.bf16.msra.mxu0 %v1801
    %1932 = vmatpush.bf16.msra.mxu0 %v1800
    %1933 = vmatpush.bf16.msra.mxu0 %v1799
    %1934 = vmatpush.bf16.msra.mxu0 %v1798
    %1935 = vmatpush.bf16.msra.mxu0 %v1797
    %1936 = vmatpush.bf16.msra.mxu0 %v1796
    %1937 = vmatpush.bf16.msra.mxu0 %v1795
    %1938 = vmatpush.bf16.msra.mxu0 %v1794
    %1939 = vmatmul.bf16.gmra.mxu0 %v1537
    %v1940 = vpop.f32.mrf.mxu0
    %v1941 = vadd.f32 %v1892, %v1940
    %v1942 = vpop.f32.mrf.mxu0
    %v1943 = vadd.f32 %v1894, %v1942
    %1944 = vmatmul.bf16.gmra.mxu0 %v1541
    %v1945 = vpop.f32.mrf.mxu0
    %v1946 = vadd.f32 %v1897, %v1945
    %v1947 = vpop.f32.mrf.mxu0
    %v1948 = vadd.f32 %v1899, %v1947
    %1949 = vmatmul.bf16.gmra.mxu0 %v1545
    %v1950 = vpop.f32.mrf.mxu0
    %v1951 = vadd.f32 %v1902, %v1950
    %v1952 = vpop.f32.mrf.mxu0
    %v1953 = vadd.f32 %v1904, %v1952
    %1954 = vmatmul.bf16.gmra.mxu0 %v1549
    %v1955 = vpop.f32.mrf.mxu0
    %v1956 = vadd.f32 %v1907, %v1955
    %v1957 = vpop.f32.mrf.mxu0
    %v1958 = vadd.f32 %v1909, %v1957
    %1959 = vmatmul.bf16.gmra.mxu0 %v1554
    %v1960 = vpop.f32.mrf.mxu0
    %v1961 = vadd.f32 %v1912, %v1960
    %v1962 = vpop.f32.mrf.mxu0
    %v1963 = vadd.f32 %v1914, %v1962
    %1964 = vmatmul.bf16.gmra.mxu0 %v1558
    %v1965 = vpop.f32.mrf.mxu0
    %v1966 = vadd.f32 %v1917, %v1965
    %v1967 = vpop.f32.mrf.mxu0
    %v1968 = vadd.f32 %v1919, %v1967
    %1969 = vmatmul.bf16.gmra.mxu0 %v1562
    %v1970 = vpop.f32.mrf.mxu0
    %v1971 = vadd.f32 %v1922, %v1970
    %v1972 = vpop.f32.mrf.mxu0
    %v1973 = vadd.f32 %v1924, %v1972
    %1974 = vmatmul.bf16.gmra.mxu0 %v1566
    %v1975 = vpop.f32.mrf.mxu0
    %v1976 = vadd.f32 %v1927, %v1975
    %v1977 = vpop.f32.mrf.mxu0
    %v1978 = vadd.f32 %v1929, %v1977
    %1979 = vdwg.mxu0
    %1980 = vmatpush.bf16.msra.mxu0 %v1809
    %1981 = vmatpush.bf16.msra.mxu0 %v1808
    %1982 = vmatpush.bf16.msra.mxu0 %v1807
    %1983 = vmatpush.bf16.msra.mxu0 %v1806
    %1984 = vmatpush.bf16.msra.mxu0 %v1805
    %1985 = vmatpush.bf16.msra.mxu0 %v1804
    %1986 = vmatpush.bf16.msra.mxu0 %v1803
    %1987 = vmatpush.bf16.msra.mxu0 %v1802
    %1988 = vmatmul.bf16.gmra.mxu0 %v1538
    %v1989 = vpop.f32.mrf.mxu0
    %v1990 = vadd.f32 %v1941, %v1989
    %v1991 = vpop.f32.mrf.mxu0
    %v1992 = vadd.f32 %v1943, %v1991
    %1993 = vmatmul.bf16.gmra.mxu0 %v1542
    %v1994 = vpop.f32.mrf.mxu0
    %v1995 = vadd.f32 %v1946, %v1994
    %v1996 = vpop.f32.mrf.mxu0
    %v1997 = vadd.f32 %v1948, %v1996
    %1998 = vmatmul.bf16.gmra.mxu0 %v1546
    %v1999 = vpop.f32.mrf.mxu0
    %v2000 = vadd.f32 %v1951, %v1999
    %v2001 = vpop.f32.mrf.mxu0
    %v2002 = vadd.f32 %v1953, %v2001
    %2003 = vmatmul.bf16.gmra.mxu0 %v1550
    %v2004 = vpop.f32.mrf.mxu0
    %v2005 = vadd.f32 %v1956, %v2004
    %v2006 = vpop.f32.mrf.mxu0
    %v2007 = vadd.f32 %v1958, %v2006
    %2008 = vmatmul.bf16.gmra.mxu0 %v1555
    %v2009 = vpop.f32.mrf.mxu0
    %v2010 = vadd.f32 %v1961, %v2009
    %v2011 = vpop.f32.mrf.mxu0
    %v2012 = vadd.f32 %v1963, %v2011
    %2013 = vmatmul.bf16.gmra.mxu0 %v1559
    %v2014 = vpop.f32.mrf.mxu0
    %v2015 = vadd.f32 %v1966, %v2014
    %v2016 = vpop.f32.mrf.mxu0
    %v2017 = vadd.f32 %v1968, %v2016
    %2018 = vmatmul.bf16.gmra.mxu0 %v1563
    %v2019 = vpop.f32.mrf.mxu0
    %v2020 = vadd.f32 %v1971, %v2019
    %v2021 = vpop.f32.mrf.mxu0
    %v2022 = vadd.f32 %v1973, %v2021
    %2023 = vmatmul.bf16.gmra.mxu0 %v1567
    %v2024 = vpop.f32.mrf.mxu0
    %v2025 = vadd.f32 %v1976, %v2024
    %v2026 = vpop.f32.mrf.mxu0
    %v2027 = vadd.f32 %v1978, %v2026
    %2028 = vdwg.mxu0
    %2029 = vmatpush.bf16.msra.mxu0 %v1817
    %2030 = vmatpush.bf16.msra.mxu0 %v1816
    %2031 = vmatpush.bf16.msra.mxu0 %v1815
    %2032 = vmatpush.bf16.msra.mxu0 %v1814
    %2033 = vmatpush.bf16.msra.mxu0 %v1813
    %2034 = vmatpush.bf16.msra.mxu0 %v1812
    %2035 = vmatpush.bf16.msra.mxu0 %v1811
    %2036 = vmatpush.bf16.msra.mxu0 %v1810
    %2037 = vmatmul.bf16.gmra.mxu0 %v1539
    %v2038 = vpop.f32.mrf.mxu0
    %v2039 = vadd.f32 %v1990, %v2038
    %v2040 = vpop.f32.mrf.mxu0
    %v2041 = vadd.f32 %v1992, %v2040
    %2042 = vmatmul.bf16.gmra.mxu0 %v1543
    %v2043 = vpop.f32.mrf.mxu0
    %v2044 = vadd.f32 %v1995, %v2043
    %v2045 = vpop.f32.mrf.mxu0
    %v2046 = vadd.f32 %v1997, %v2045
    %2047 = vmatmul.bf16.gmra.mxu0 %v1547
    %v2048 = vpop.f32.mrf.mxu0
    %v2049 = vadd.f32 %v2000, %v2048
    %v2050 = vpop.f32.mrf.mxu0
    %v2051 = vadd.f32 %v2002, %v2050
    %2052 = vmatmul.bf16.gmra.mxu0 %v1551
    %v2053 = vpop.f32.mrf.mxu0
    %v2054 = vadd.f32 %v2005, %v2053
    %v2055 = vpop.f32.mrf.mxu0
    %v2056 = vadd.f32 %v2007, %v2055
    %2057 = vmatmul.bf16.gmra.mxu0 %v1556
    %v2058 = vpop.f32.mrf.mxu0
    %v2059 = vadd.f32 %v2010, %v2058
    %v2060 = vpop.f32.mrf.mxu0
    %v2061 = vadd.f32 %v2012, %v2060
    %2062 = vmatmul.bf16.gmra.mxu0 %v1560
    %v2063 = vpop.f32.mrf.mxu0
    %v2064 = vadd.f32 %v2015, %v2063
    %v2065 = vpop.f32.mrf.mxu0
    %v2066 = vadd.f32 %v2017, %v2065
    %2067 = vmatmul.bf16.gmra.mxu0 %v1564
    %v2068 = vpop.f32.mrf.mxu0
    %v2069 = vadd.f32 %v2020, %v2068
    %v2070 = vpop.f32.mrf.mxu0
    %v2071 = vadd.f32 %v2022, %v2070
    %2072 = vmatmul.bf16.gmra.mxu0 %v1568
    %v2073 = vpop.f32.mrf.mxu0
    %v2074 = vadd.f32 %v2025, %v2073
    %v2075 = vpop.f32.mrf.mxu0
    %v2076 = vadd.f32 %v2027, %v2075
    %2077 = vdwg.mxu0
    %2078 = vmatpush.bf16.msra.mxu0 0
    %2079 = vmatpush.bf16.msra.mxu0 0
    %2080 = vmatpush.bf16.msra.mxu0 0
    %2081 = vmatpush.bf16.msra.mxu0 0
    %2082 = vmatpush.bf16.msra.mxu0 %v1821
    %2083 = vmatpush.bf16.msra.mxu0 %v1820
    %2084 = vmatpush.bf16.msra.mxu0 %v1819
    %2085 = vmatpush.bf16.msra.mxu0 %v1818
    %2086 = vmatmul.bf16.gmra.mxu0 %v1859
    %v2087 = vpop.f32.mrf.mxu0
    %v2088 = vadd.f32 %v2039, %v2087
    %v2089 = vpop.f32.mrf.mxu0
    %v2090 = vadd.f32 %v2041, %v2089
    %2091 = vmatmul.bf16.gmra.mxu0 %v1862
    %v2092 = vpop.f32.mrf.mxu0
    %v2093 = vadd.f32 %v2044, %v2092
    %v2094 = vpop.f32.mrf.mxu0
    %v2095 = vadd.f32 %v2046, %v2094
    %2096 = vmatmul.bf16.gmra.mxu0 %v1865
    %v2097 = vpop.f32.mrf.mxu0
    %v2098 = vadd.f32 %v2049, %v2097
    %v2099 = vpop.f32.mrf.mxu0
    %v2100 = vadd.f32 %v2051, %v2099
    %2101 = vmatmul.bf16.gmra.mxu0 %v1868
    %v2102 = vpop.f32.mrf.mxu0
    %v2103 = vadd.f32 %v2054, %v2102
    %v2104 = vpop.f32.mrf.mxu0
    %v2105 = vadd.f32 %v2056, %v2104
    %2106 = vmatmul.bf16.gmra.mxu0 %v1871
    %v2107 = vpop.f32.mrf.mxu0
    %v2108 = vadd.f32 %v2059, %v2107
    %v2109 = vpop.f32.mrf.mxu0
    %v2110 = vadd.f32 %v2061, %v2109
    %2111 = vmatmul.bf16.gmra.mxu0 %v1874
    %v2112 = vpop.f32.mrf.mxu0
    %v2113 = vadd.f32 %v2064, %v2112
    %v2114 = vpop.f32.mrf.mxu0
    %v2115 = vadd.f32 %v2066, %v2114
    %2116 = vmatmul.bf16.gmra.mxu0 %v1877
    %v2117 = vpop.f32.mrf.mxu0
    %v2118 = vadd.f32 %v2069, %v2117
    %v2119 = vpop.f32.mrf.mxu0
    %v2120 = vadd.f32 %v2071, %v2119
    %2121 = vmatmul.bf16.gmra.mxu0 %v1880
    %v2122 = vpop.f32.mrf.mxu0
    %v2123 = vadd.f32 %v2074, %v2122
    %v2124 = vpop.f32.mrf.mxu0
    %v2125 = vadd.f32 %v2076, %v2124
    %2126 = vdwg.mxu0
    %v2127 = vld [vmem:[%s7] sm:$0x1]
    %v2129 = vperm.slane %v2127, 0
    %v2131 = vadd.f32 %v2088, %v2129
    %v2132 = vadd.f32 %v2090, %v2129
    %v2133 = vadd.f32 %v2093, %v2129
    %v2134 = vadd.f32 %v2095, %v2129
    %v2135 = vadd.f32 %v2098, %v2129
    %v2136 = vadd.f32 %v2100, %v2129
    %v2137 = vadd.f32 %v2103, %v2129
    %v2138 = vadd.f32 %v2105, %v2129
    %v2139 = vadd.f32 %v2108, %v2129
    %v2140 = vadd.f32 %v2110, %v2129
    %v2141 = vadd.f32 %v2113, %v2129
    %v2142 = vadd.f32 %v2115, %v2129
    %v2143 = vadd.f32 %v2118, %v2129
    %v2144 = vadd.f32 %v2120, %v2129
    %v2145 = vadd.f32 %v2123, %v2129
    %v2146 = vadd.f32 %v2125, %v2129
    %v2147 = vld [vmem:[%s1] sm:$0x1]
    %v2148 = vld [vmem:[%s1 + $0x1] sm:$0x1]
    %v2149 = vxor.u32 %v2147, 2147483648
    %v2150 = vxor.u32 %v2148, 2147483648
    %v2151 = vmul.f32 %v2149, 1.442695
    %v2152 = vpow.pop %v2151
    %v2153 = vmul.f32 %v2150, 1.442695
    %v2154 = vpow.pop %v2153
    %v2155 = vadd.f32 %v2152, 1.0
    %v2156 = vadd.f32 %v2154, 1.0
    %v2157 = vrcp.pop %v2155
    %v2158 = vmul.f32 %v2155, %v2157
    %v2159 = vsub.f32 1.0, %v2158
    %v2160 = vmul.f32 %v2157, %v2159
    %v2161 = vadd.f32 %v2157, %v2160
    %vm2162 = vweird.f32 %v2155
    %vm2163 = vweird.f32 %v2157
    %vm2164 = vmor %vm2162, %vm2163
    %v2165 = vsel %vm2164, %v2157, %v2161
    %v2166 = vand.u32 2147483647, %v2155
    %vm2167 = vcmp.eq.f32.partialorder %v2166, 8.507059e+37
    %v2168 = vand.u32 %v2155, 2147483648
    %v2169 = vor.u32 1.1754944e-38, %v2168
    %v2170 = vsel %vm2167, %v2169, %v2165
    %v2171 = vmul.f32 1.0, %v2170
    %v2172 = vrcp.pop %v2156
    %v2173 = vmul.f32 %v2156, %v2172
    %v2174 = vsub.f32 1.0, %v2173
    %v2175 = vmul.f32 %v2172, %v2174
    %v2176 = vadd.f32 %v2172, %v2175
    %vm2177 = vweird.f32 %v2156
    %vm2178 = vweird.f32 %v2172
    %vm2179 = vmor %vm2177, %vm2178
    %v2180 = vsel %vm2179, %v2172, %v2176
    %v2181 = vand.u32 2147483647, %v2156
    %vm2182 = vcmp.eq.f32.partialorder %v2181, 8.507059e+37
    %v2183 = vand.u32 %v2156, 2147483648
    %v2184 = vor.u32 1.1754944e-38, %v2183
    %v2185 = vsel %vm2182, %v2184, %v2180
    %v2186 = vmul.f32 1.0, %v2185
    %v2187 = vmul.f32 %v2147, %v2171
    %v2188 = vmul.f32 %v2148, %v2186
    %v2189 = vld [vmem:[%s2] sm:$0x1]
    %v2190 = vld [vmem:[%s2 + $0x1] sm:$0x1]
    %v2191 = vxor.u32 %v2189, 2147483648
    %v2192 = vxor.u32 %v2190, 2147483648
    %v2193 = vmul.f32 %v2191, 1.442695
    %v2194 = vpow.pop %v2193
    %v2195 = vmul.f32 %v2192, 1.442695
    %v2196 = vpow.pop %v2195
    %v2197 = vadd.f32 %v2194, 1.0
    %v2198 = vadd.f32 %v2196, 1.0
    %v2199 = vrcp.pop %v2197
    %v2200 = vmul.f32 %v2197, %v2199
    %v2201 = vsub.f32 1.0, %v2200
    %v2202 = vmul.f32 %v2199, %v2201
    %v2203 = vadd.f32 %v2199, %v2202
    %vm2204 = vweird.f32 %v2197
    %vm2205 = vweird.f32 %v2199
    %vm2206 = vmor %vm2204, %vm2205
    %v2207 = vsel %vm2206, %v2199, %v2203
    %v2208 = vand.u32 2147483647, %v2197
    %vm2209 = vcmp.eq.f32.partialorder %v2208, 8.507059e+37
    %v2210 = vand.u32 %v2197, 2147483648
    %v2211 = vor.u32 1.1754944e-38, %v2210
    %v2212 = vsel %vm2209, %v2211, %v2207
    %v2213 = vmul.f32 1.0, %v2212
    %v2214 = vrcp.pop %v2198
    %v2215 = vmul.f32 %v2198, %v2214
    %v2216 = vsub.f32 1.0, %v2215
    %v2217 = vmul.f32 %v2214, %v2216
    %v2218 = vadd.f32 %v2214, %v2217
    %vm2219 = vweird.f32 %v2198
    %vm2220 = vweird.f32 %v2214
    %vm2221 = vmor %vm2219, %vm2220
    %v2222 = vsel %vm2221, %v2214, %v2218
    %v2223 = vand.u32 2147483647, %v2198
    %vm2224 = vcmp.eq.f32.partialorder %v2223, 8.507059e+37
    %v2225 = vand.u32 %v2198, 2147483648
    %v2226 = vor.u32 1.1754944e-38, %v2225
    %v2227 = vsel %vm2224, %v2226, %v2222
    %v2228 = vmul.f32 1.0, %v2227
    %v2229 = vmul.f32 %v2189, %v2213
    %v2230 = vmul.f32 %v2190, %v2228
    %v2231 = vld [vmem:[%s11] sm:$0xff]
    %v2232 = vld [vmem:[%s11 + $0x8] sm:$0xff]
    %v2233 = vld [vmem:[%s11 + $0x10] sm:$0xff]
    %v2234 = vld [vmem:[%s11 + $0x18] sm:$0xff]
    %v2235 = vld [vmem:[%s12] sm:$0x1]
    %v2237 = vperm.slane %v2235, 0
    %2241 = vst [vmem:[#allocation1] ss:$9 sm:$0xff] %v2187
    %s2242 = scalar_lea.vmem [#allocation1], 1
    %2243 = vst [vmem:[%s2242] ss:$9 sm:$0xff] %v2188
    %v2244 = vld [vmem:[#allocation1] sm:$0xff]
    %vm2245 = vcmask 261120
    %v2246 = vsel %vm2245, %v2244, 0
    %2248 = vmatpush.msra.mxu0 0.0
    %2249 = vmatpush.msra.mxu0 0.0
    %2250 = vmatpush.msra.mxu0 0.0
    %2251 = vmatpush.msra.mxu0 0.0
    %2252 = vmatpush.msra.mxu0 0.0
    %2253 = vmatpush.msra.mxu0 0.0
    %2254 = vmatpush.msra.mxu0 0.0
    %2255 = vmatpush.msra.mxu0 0.0
    %2256 = vmatpush.msra.mxu0 0.0
    %2257 = vmatpush.msra.mxu0 0.0
    %2258 = vmatpush.msra.mxu0 0.0
    %2259 = vmatpush.msra.mxu0 0.0
    %v2260 = vand.u32 %v2234, 4294901760
    %2261 = vmatpush.msra.mxu0 %v2260
    %v2262 = vand.u32 %v2233, 4294901760
    %2263 = vmatpush.msra.mxu0 %v2262
    %v2264 = vand.u32 %v2232, 4294901760
    %2265 = vmatpush.msra.mxu0 %v2264
    %v2266 = vand.u32 %v2231, 4294901760
    %2267 = vmatpush.msra.mxu0 %v2266
    %v2268 = vand.u32 %v2246, 4294901760
    %v2269 = vsub.f32 %v2246, %v2268
    %v2270 = vand.u32 %v2269, 4294901760
    %v2271 = vsub.f32 %v2269, %v2270
    %v2272 = vand.u32 %v2271, 4294901760
    %2273 = vmatmul.f32.gmra.mxu0 %v2272
    %v2274 = vpop.f32.mrf.mxu0
    %v2275 = vadd.f32 %v2237, %v2274
    %2276 = vdwg.mxu0
    %2277 = vmatpush.msra.mxu0 0.0
    %2278 = vmatpush.msra.mxu0 0.0
    %2279 = vmatpush.msra.mxu0 0.0
    %2280 = vmatpush.msra.mxu0 0.0
    %2281 = vmatpush.msra.mxu0 0.0
    %2282 = vmatpush.msra.mxu0 0.0
    %2283 = vmatpush.msra.mxu0 0.0
    %2284 = vmatpush.msra.mxu0 0.0
    %2285 = vmatpush.msra.mxu0 0.0
    %2286 = vmatpush.msra.mxu0 0.0
    %2287 = vmatpush.msra.mxu0 0.0
    %2288 = vmatpush.msra.mxu0 0.0
    %v2289 = vand.u32 %v2234, 4294901760
    %v2290 = vsub.f32 %v2234, %v2289
    %v2291 = vand.u32 %v2290, 4294901760
    %v2292 = vsub.f32 %v2290, %v2291
    %v2293 = vand.u32 %v2292, 4294901760
    %2294 = vmatpush.msra.mxu0 %v2293
    %v2295 = vand.u32 %v2233, 4294901760
    %v2296 = vsub.f32 %v2233, %v2295
    %v2297 = vand.u32 %v2296, 4294901760
    %v2298 = vsub.f32 %v2296, %v2297
    %v2299 = vand.u32 %v2298, 4294901760
    %2300 = vmatpush.msra.mxu0 %v2299
    %v2301 = vand.u32 %v2232, 4294901760
    %v2302 = vsub.f32 %v2232, %v2301
    %v2303 = vand.u32 %v2302, 4294901760
    %v2304 = vsub.f32 %v2302, %v2303
    %v2305 = vand.u32 %v2304, 4294901760
    %2306 = vmatpush.msra.mxu0 %v2305
    %v2307 = vand.u32 %v2231, 4294901760
    %v2308 = vsub.f32 %v2231, %v2307
    %v2309 = vand.u32 %v2308, 4294901760
    %v2310 = vsub.f32 %v2308, %v2309
    %v2311 = vand.u32 %v2310, 4294901760
    %2312 = vmatpush.msra.mxu0 %v2311
    %v2313 = vand.u32 %v2246, 4294901760
    %2314 = vmatmul.f32.gmra.mxu0 %v2313
    %v2315 = vpop.f32.mrf.mxu0
    %v2316 = vadd.f32 %v2275, %v2315
    %2317 = vdwg.mxu0
    %2318 = vmatpush.msra.mxu0 0.0
    %2319 = vmatpush.msra.mxu0 0.0
    %2320 = vmatpush.msra.mxu0 0.0
    %2321 = vmatpush.msra.mxu0 0.0
    %2322 = vmatpush.msra.mxu0 0.0
    %2323 = vmatpush.msra.mxu0 0.0
    %2324 = vmatpush.msra.mxu0 0.0
    %2325 = vmatpush.msra.mxu0 0.0
    %2326 = vmatpush.msra.mxu0 0.0
    %2327 = vmatpush.msra.mxu0 0.0
    %2328 = vmatpush.msra.mxu0 0.0
    %2329 = vmatpush.msra.mxu0 0.0
    %v2330 = vand.u32 %v2234, 4294901760
    %v2331 = vsub.f32 %v2234, %v2330
    %2332 = vmatpush.msra.mxu0 %v2331
    %v2333 = vand.u32 %v2233, 4294901760
    %v2334 = vsub.f32 %v2233, %v2333
    %2335 = vmatpush.msra.mxu0 %v2334
    %v2336 = vand.u32 %v2232, 4294901760
    %v2337 = vsub.f32 %v2232, %v2336
    %2338 = vmatpush.msra.mxu0 %v2337
    %v2339 = vand.u32 %v2231, 4294901760
    %v2340 = vsub.f32 %v2231, %v2339
    %2341 = vmatpush.msra.mxu0 %v2340
    %v2342 = vand.u32 %v2246, 4294901760
    %v2343 = vsub.f32 %v2246, %v2342
    %2344 = vmatmul.f32.gmra.mxu0 %v2343
    %v2345 = vpop.f32.mrf.mxu0
    %v2346 = vadd.f32 %v2316, %v2345
    %2347 = vdwg.mxu0
    %2348 = vmatpush.msra.mxu0 0.0
    %2349 = vmatpush.msra.mxu0 0.0
    %2350 = vmatpush.msra.mxu0 0.0
    %2351 = vmatpush.msra.mxu0 0.0
    %2352 = vmatpush.msra.mxu0 0.0
    %2353 = vmatpush.msra.mxu0 0.0
    %2354 = vmatpush.msra.mxu0 0.0
    %2355 = vmatpush.msra.mxu0 0.0
    %2356 = vmatpush.msra.mxu0 0.0
    %2357 = vmatpush.msra.mxu0 0.0
    %2358 = vmatpush.msra.mxu0 0.0
    %2359 = vmatpush.msra.mxu0 0.0
    %v2360 = vand.u32 %v2234, 4294901760
    %2361 = vmatpush.msra.mxu0 %v2360
    %v2362 = vand.u32 %v2233, 4294901760
    %2363 = vmatpush.msra.mxu0 %v2362
    %v2364 = vand.u32 %v2232, 4294901760
    %2365 = vmatpush.msra.mxu0 %v2364
    %v2366 = vand.u32 %v2231, 4294901760
    %2367 = vmatpush.msra.mxu0 %v2366
    %v2368 = vand.u32 %v2246, 4294901760
    %v2369 = vsub.f32 %v2246, %v2368
    %v2370 = vand.u32 %v2369, 4294901760
    %2371 = vmatmul.f32.gmra.mxu0 %v2370
    %v2372 = vpop.f32.mrf.mxu0
    %v2373 = vadd.f32 %v2346, %v2372
    %2374 = vdwg.mxu0
    %2375 = vmatpush.msra.mxu0 0.0
    %2376 = vmatpush.msra.mxu0 0.0
    %2377 = vmatpush.msra.mxu0 0.0
    %2378 = vmatpush.msra.mxu0 0.0
    %2379 = vmatpush.msra.mxu0 0.0
    %2380 = vmatpush.msra.mxu0 0.0
    %2381 = vmatpush.msra.mxu0 0.0
    %2382 = vmatpush.msra.mxu0 0.0
    %2383 = vmatpush.msra.mxu0 0.0
    %2384 = vmatpush.msra.mxu0 0.0
    %2385 = vmatpush.msra.mxu0 0.0
    %2386 = vmatpush.msra.mxu0 0.0
    %v2387 = vand.u32 %v2234, 4294901760
    %v2388 = vsub.f32 %v2234, %v2387
    %v2389 = vand.u32 %v2388, 4294901760
    %2390 = vmatpush.msra.mxu0 %v2389
    %v2391 = vand.u32 %v2233, 4294901760
    %v2392 = vsub.f32 %v2233, %v2391
    %v2393 = vand.u32 %v2392, 4294901760
    %2394 = vmatpush.msra.mxu0 %v2393
    %v2395 = vand.u32 %v2232, 4294901760
    %v2396 = vsub.f32 %v2232, %v2395
    %v2397 = vand.u32 %v2396, 4294901760
    %2398 = vmatpush.msra.mxu0 %v2397
    %v2399 = vand.u32 %v2231, 4294901760
    %v2400 = vsub.f32 %v2231, %v2399
    %v2401 = vand.u32 %v2400, 4294901760
    %2402 = vmatpush.msra.mxu0 %v2401
    %v2403 = vand.u32 %v2246, 4294901760
    %2404 = vmatmul.f32.gmra.mxu0 %v2403
    %v2405 = vpop.f32.mrf.mxu0
    %v2406 = vadd.f32 %v2373, %v2405
    %2407 = vdwg.mxu0
    %2408 = vmatpush.msra.mxu0 0.0
    %2409 = vmatpush.msra.mxu0 0.0
    %2410 = vmatpush.msra.mxu0 0.0
    %2411 = vmatpush.msra.mxu0 0.0
    %2412 = vmatpush.msra.mxu0 0.0
    %2413 = vmatpush.msra.mxu0 0.0
    %2414 = vmatpush.msra.mxu0 0.0
    %2415 = vmatpush.msra.mxu0 0.0
    %2416 = vmatpush.msra.mxu0 0.0
    %2417 = vmatpush.msra.mxu0 0.0
    %2418 = vmatpush.msra.mxu0 0.0
    %2419 = vmatpush.msra.mxu0 0.0
    %v2420 = vand.u32 %v2234, 4294901760
    %2421 = vmatpush.msra.mxu0 %v2420
    %v2422 = vand.u32 %v2233, 4294901760
    %2423 = vmatpush.msra.mxu0 %v2422
    %v2424 = vand.u32 %v2232, 4294901760
    %2425 = vmatpush.msra.mxu0 %v2424
    %v2426 = vand.u32 %v2231, 4294901760
    %2427 = vmatpush.msra.mxu0 %v2426
    %v2428 = vand.u32 %v2246, 4294901760
    %2429 = vmatmul.f32.gmra.mxu0 %v2428
    %v2430 = vpop.f32.mrf.mxu0
    %v2431 = vadd.f32 %v2406, %v2430
    %2432 = vdwg.mxu0
    %v2433 = vld [vmem:[%s13] sm:$0xff]
    %v2434 = vld [vmem:[%s13 + $0x8] sm:$0xff]
    %v2435 = vld [vmem:[%s13 + $0x10] sm:$0xff]
    %v2436 = vld [vmem:[%s13 + $0x18] sm:$0xff]
    %v2437 = vld [vmem:[%s14] sm:$0x1]
    %v2439 = vperm.slane %v2437, 0
    %2441 = vst [vmem:[#allocation1] ss:$9 sm:$0xff] %v2187
    %s2442 = scalar_lea.vmem [#allocation1], 1
    %2443 = vst [vmem:[%s2442] ss:$9 sm:$0xff] %v2188
    %v2444 = vld [vmem:[#allocation1] sm:$0xff]
    %v2445 = vsel %vm2245, %v2444, 0
    %2447 = vmatpush.msra.mxu0 0.0
    %2448 = vmatpush.msra.mxu0 0.0
    %2449 = vmatpush.msra.mxu0 0.0
    %2450 = vmatpush.msra.mxu0 0.0
    %2451 = vmatpush.msra.mxu0 0.0
    %2452 = vmatpush.msra.mxu0 0.0
    %2453 = vmatpush.msra.mxu0 0.0
    %2454 = vmatpush.msra.mxu0 0.0
    %2455 = vmatpush.msra.mxu0 0.0
    %2456 = vmatpush.msra.mxu0 0.0
    %2457 = vmatpush.msra.mxu0 0.0
    %2458 = vmatpush.msra.mxu0 0.0
    %v2459 = vand.u32 %v2436, 4294901760
    %2460 = vmatpush.msra.mxu0 %v2459
    %v2461 = vand.u32 %v2435, 4294901760
    %2462 = vmatpush.msra.mxu0 %v2461
    %v2463 = vand.u32 %v2434, 4294901760
    %2464 = vmatpush.msra.mxu0 %v2463
    %v2465 = vand.u32 %v2433, 4294901760
    %2466 = vmatpush.msra.mxu0 %v2465
    %v2467 = vand.u32 %v2445, 4294901760
    %v2468 = vsub.f32 %v2445, %v2467
    %v2469 = vand.u32 %v2468, 4294901760
    %v2470 = vsub.f32 %v2468, %v2469
    %v2471 = vand.u32 %v2470, 4294901760
    %2472 = vmatmul.f32.gmra.mxu0 %v2471
    %v2473 = vpop.f32.mrf.mxu0
    %v2474 = vadd.f32 %v2439, %v2473
    %2475 = vdwg.mxu0
    %2476 = vmatpush.msra.mxu0 0.0
    %2477 = vmatpush.msra.mxu0 0.0
    %2478 = vmatpush.msra.mxu0 0.0
    %2479 = vmatpush.msra.mxu0 0.0
    %2480 = vmatpush.msra.mxu0 0.0
    %2481 = vmatpush.msra.mxu0 0.0
    %2482 = vmatpush.msra.mxu0 0.0
    %2483 = vmatpush.msra.mxu0 0.0
    %2484 = vmatpush.msra.mxu0 0.0
    %2485 = vmatpush.msra.mxu0 0.0
    %2486 = vmatpush.msra.mxu0 0.0
    %2487 = vmatpush.msra.mxu0 0.0
    %v2488 = vand.u32 %v2436, 4294901760
    %v2489 = vsub.f32 %v2436, %v2488
    %v2490 = vand.u32 %v2489, 4294901760
    %v2491 = vsub.f32 %v2489, %v2490
    %v2492 = vand.u32 %v2491, 4294901760
    %2493 = vmatpush.msra.mxu0 %v2492
    %v2494 = vand.u32 %v2435, 4294901760
    %v2495 = vsub.f32 %v2435, %v2494
    %v2496 = vand.u32 %v2495, 4294901760
    %v2497 = vsub.f32 %v2495, %v2496
    %v2498 = vand.u32 %v2497, 4294901760
    %2499 = vmatpush.msra.mxu0 %v2498
    %v2500 = vand.u32 %v2434, 4294901760
    %v2501 = vsub.f32 %v2434, %v2500
    %v2502 = vand.u32 %v2501, 4294901760
    %v2503 = vsub.f32 %v2501, %v2502
    %v2504 = vand.u32 %v2503, 4294901760
    %2505 = vmatpush.msra.mxu0 %v2504
    %v2506 = vand.u32 %v2433, 4294901760
    %v2507 = vsub.f32 %v2433, %v2506
    %v2508 = vand.u32 %v2507, 4294901760
    %v2509 = vsub.f32 %v2507, %v2508
    %v2510 = vand.u32 %v2509, 4294901760
    %2511 = vmatpush.msra.mxu0 %v2510
    %v2512 = vand.u32 %v2445, 4294901760
    %2513 = vmatmul.f32.gmra.mxu0 %v2512
    %v2514 = vpop.f32.mrf.mxu0
    %v2515 = vadd.f32 %v2474, %v2514
    %2516 = vdwg.mxu0
    %2517 = vmatpush.msra.mxu0 0.0
    %2518 = vmatpush.msra.mxu0 0.0
    %2519 = vmatpush.msra.mxu0 0.0
    %2520 = vmatpush.msra.mxu0 0.0
    %2521 = vmatpush.msra.mxu0 0.0
    %2522 = vmatpush.msra.mxu0 0.0
    %2523 = vmatpush.msra.mxu0 0.0
    %2524 = vmatpush.msra.mxu0 0.0
    %2525 = vmatpush.msra.mxu0 0.0
    %2526 = vmatpush.msra.mxu0 0.0
    %2527 = vmatpush.msra.mxu0 0.0
    %2528 = vmatpush.msra.mxu0 0.0
    %v2529 = vand.u32 %v2436, 4294901760
    %v2530 = vsub.f32 %v2436, %v2529
    %2531 = vmatpush.msra.mxu0 %v2530
    %v2532 = vand.u32 %v2435, 4294901760
    %v2533 = vsub.f32 %v2435, %v2532
    %2534 = vmatpush.msra.mxu0 %v2533
    %v2535 = vand.u32 %v2434, 4294901760
    %v2536 = vsub.f32 %v2434, %v2535
    %2537 = vmatpush.msra.mxu0 %v2536
    %v2538 = vand.u32 %v2433, 4294901760
    %v2539 = vsub.f32 %v2433, %v2538
    %2540 = vmatpush.msra.mxu0 %v2539
    %v2541 = vand.u32 %v2445, 4294901760
    %v2542 = vsub.f32 %v2445, %v2541
    %2543 = vmatmul.f32.gmra.mxu0 %v2542
    %v2544 = vpop.f32.mrf.mxu0
    %v2545 = vadd.f32 %v2515, %v2544
    %2546 = vdwg.mxu0
    %2547 = vmatpush.msra.mxu0 0.0
    %2548 = vmatpush.msra.mxu0 0.0
    %2549 = vmatpush.msra.mxu0 0.0
    %2550 = vmatpush.msra.mxu0 0.0
    %2551 = vmatpush.msra.mxu0 0.0
    %2552 = vmatpush.msra.mxu0 0.0
    %2553 = vmatpush.msra.mxu0 0.0
    %2554 = vmatpush.msra.mxu0 0.0
    %2555 = vmatpush.msra.mxu0 0.0
    %2556 = vmatpush.msra.mxu0 0.0
    %2557 = vmatpush.msra.mxu0 0.0
    %2558 = vmatpush.msra.mxu0 0.0
    %v2559 = vand.u32 %v2436, 4294901760
    %2560 = vmatpush.msra.mxu0 %v2559
    %v2561 = vand.u32 %v2435, 4294901760
    %2562 = vmatpush.msra.mxu0 %v2561
    %v2563 = vand.u32 %v2434, 4294901760
    %2564 = vmatpush.msra.mxu0 %v2563
    %v2565 = vand.u32 %v2433, 4294901760
    %2566 = vmatpush.msra.mxu0 %v2565
    %v2567 = vand.u32 %v2445, 4294901760
    %v2568 = vsub.f32 %v2445, %v2567
    %v2569 = vand.u32 %v2568, 4294901760
    %2570 = vmatmul.f32.gmra.mxu0 %v2569
    %v2571 = vpop.f32.mrf.mxu0
    %v2572 = vadd.f32 %v2545, %v2571
    %2573 = vdwg.mxu0
    %2574 = vmatpush.msra.mxu0 0.0
    %2575 = vmatpush.msra.mxu0 0.0
    %2576 = vmatpush.msra.mxu0 0.0
    %2577 = vmatpush.msra.mxu0 0.0
    %2578 = vmatpush.msra.mxu0 0.0
    %2579 = vmatpush.msra.mxu0 0.0
    %2580 = vmatpush.msra.mxu0 0.0
    %2581 = vmatpush.msra.mxu0 0.0
    %2582 = vmatpush.msra.mxu0 0.0
    %2583 = vmatpush.msra.mxu0 0.0
    %2584 = vmatpush.msra.mxu0 0.0
    %2585 = vmatpush.msra.mxu0 0.0
    %v2586 = vand.u32 %v2436, 4294901760
    %v2587 = vsub.f32 %v2436, %v2586
    %v2588 = vand.u32 %v2587, 4294901760
    %2589 = vmatpush.msra.mxu0 %v2588
    %v2590 = vand.u32 %v2435, 4294901760
    %v2591 = vsub.f32 %v2435, %v2590
    %v2592 = vand.u32 %v2591, 4294901760
    %2593 = vmatpush.msra.mxu0 %v2592
    %v2594 = vand.u32 %v2434, 4294901760
    %v2595 = vsub.f32 %v2434, %v2594
    %v2596 = vand.u32 %v2595, 4294901760
    %2597 = vmatpush.msra.mxu0 %v2596
    %v2598 = vand.u32 %v2433, 4294901760
    %v2599 = vsub.f32 %v2433, %v2598
    %v2600 = vand.u32 %v2599, 4294901760
    %2601 = vmatpush.msra.mxu0 %v2600
    %v2602 = vand.u32 %v2445, 4294901760
    %2603 = vmatmul.f32.gmra.mxu0 %v2602
    %v2604 = vpop.f32.mrf.mxu0
    %v2605 = vadd.f32 %v2572, %v2604
    %2606 = vdwg.mxu0
    %2607 = vmatpush.msra.mxu0 0.0
    %2608 = vmatpush.msra.mxu0 0.0
    %2609 = vmatpush.msra.mxu0 0.0
    %2610 = vmatpush.msra.mxu0 0.0
    %2611 = vmatpush.msra.mxu0 0.0
    %2612 = vmatpush.msra.mxu0 0.0
    %2613 = vmatpush.msra.mxu0 0.0
    %2614 = vmatpush.msra.mxu0 0.0
    %2615 = vmatpush.msra.mxu0 0.0
    %2616 = vmatpush.msra.mxu0 0.0
    %2617 = vmatpush.msra.mxu0 0.0
    %2618 = vmatpush.msra.mxu0 0.0
    %v2619 = vand.u32 %v2436, 4294901760
    %2620 = vmatpush.msra.mxu0 %v2619
    %v2621 = vand.u32 %v2435, 4294901760
    %2622 = vmatpush.msra.mxu0 %v2621
    %v2623 = vand.u32 %v2434, 4294901760
    %2624 = vmatpush.msra.mxu0 %v2623
    %v2625 = vand.u32 %v2433, 4294901760
    %2626 = vmatpush.msra.mxu0 %v2625
    %v2627 = vand.u32 %v2445, 4294901760
    %2628 = vmatmul.f32.gmra.mxu0 %v2627
    %v2629 = vpop.f32.mrf.mxu0
    %v2630 = vadd.f32 %v2605, %v2629
    %2631 = vdwg.mxu0
    %v2632 = vld [vmem:[%s15] sm:$0xff]
    %v2633 = vld [vmem:[%s15 + $0x8] sm:$0xff]
    %v2634 = vld [vmem:[%s15 + $0x10] sm:$0xff]
    %v2635 = vld [vmem:[%s15 + $0x18] sm:$0xff]
    %v2636 = vld [vmem:[%s16] sm:$0x1]
    %v2638 = vperm.slane %v2636, 0
    %2642 = vst [vmem:[#allocation1] ss:$9 sm:$0xff] %v2229
    %s2643 = scalar_lea.vmem [#allocation1], 1
    %2644 = vst [vmem:[%s2643] ss:$9 sm:$0xff] %v2230
    %v2645 = vld [vmem:[#allocation1] sm:$0xff]
    %v2646 = vsel %vm2245, %v2645, 0
    %2648 = vmatpush.msra.mxu0 0.0
    %2649 = vmatpush.msra.mxu0 0.0
    %2650 = vmatpush.msra.mxu0 0.0
    %2651 = vmatpush.msra.mxu0 0.0
    %2652 = vmatpush.msra.mxu0 0.0
    %2653 = vmatpush.msra.mxu0 0.0
    %2654 = vmatpush.msra.mxu0 0.0
    %2655 = vmatpush.msra.mxu0 0.0
    %2656 = vmatpush.msra.mxu0 0.0
    %2657 = vmatpush.msra.mxu0 0.0
    %2658 = vmatpush.msra.mxu0 0.0
    %2659 = vmatpush.msra.mxu0 0.0
    %v2660 = vand.u32 %v2635, 4294901760
    %2661 = vmatpush.msra.mxu0 %v2660
    %v2662 = vand.u32 %v2634, 4294901760
    %2663 = vmatpush.msra.mxu0 %v2662
    %v2664 = vand.u32 %v2633, 4294901760
    %2665 = vmatpush.msra.mxu0 %v2664
    %v2666 = vand.u32 %v2632, 4294901760
    %2667 = vmatpush.msra.mxu0 %v2666
    %v2668 = vand.u32 %v2646, 4294901760
    %v2669 = vsub.f32 %v2646, %v2668
    %v2670 = vand.u32 %v2669, 4294901760
    %v2671 = vsub.f32 %v2669, %v2670
    %v2672 = vand.u32 %v2671, 4294901760
    %2673 = vmatmul.f32.gmra.mxu0 %v2672
    %v2674 = vpop.f32.mrf.mxu0
    %v2675 = vadd.f32 %v2638, %v2674
    %2676 = vdwg.mxu0
    %2677 = vmatpush.msra.mxu0 0.0
    %2678 = vmatpush.msra.mxu0 0.0
    %2679 = vmatpush.msra.mxu0 0.0
    %2680 = vmatpush.msra.mxu0 0.0
    %2681 = vmatpush.msra.mxu0 0.0
    %2682 = vmatpush.msra.mxu0 0.0
    %2683 = vmatpush.msra.mxu0 0.0
    %2684 = vmatpush.msra.mxu0 0.0
    %2685 = vmatpush.msra.mxu0 0.0
    %2686 = vmatpush.msra.mxu0 0.0
    %2687 = vmatpush.msra.mxu0 0.0
    %2688 = vmatpush.msra.mxu0 0.0
    %v2689 = vand.u32 %v2635, 4294901760
    %v2690 = vsub.f32 %v2635, %v2689
    %v2691 = vand.u32 %v2690, 4294901760
    %v2692 = vsub.f32 %v2690, %v2691
    %v2693 = vand.u32 %v2692, 4294901760
    %2694 = vmatpush.msra.mxu0 %v2693
    %v2695 = vand.u32 %v2634, 4294901760
    %v2696 = vsub.f32 %v2634, %v2695
    %v2697 = vand.u32 %v2696, 4294901760
    %v2698 = vsub.f32 %v2696, %v2697
    %v2699 = vand.u32 %v2698, 4294901760
    %2700 = vmatpush.msra.mxu0 %v2699
    %v2701 = vand.u32 %v2633, 4294901760
    %v2702 = vsub.f32 %v2633, %v2701
    %v2703 = vand.u32 %v2702, 4294901760
    %v2704 = vsub.f32 %v2702, %v2703
    %v2705 = vand.u32 %v2704, 4294901760
    %2706 = vmatpush.msra.mxu0 %v2705
    %v2707 = vand.u32 %v2632, 4294901760
    %v2708 = vsub.f32 %v2632, %v2707
    %v2709 = vand.u32 %v2708, 4294901760
    %v2710 = vsub.f32 %v2708, %v2709
    %v2711 = vand.u32 %v2710, 4294901760
    %2712 = vmatpush.msra.mxu0 %v2711
    %v2713 = vand.u32 %v2646, 4294901760
    %2714 = vmatmul.f32.gmra.mxu0 %v2713
    %v2715 = vpop.f32.mrf.mxu0
    %v2716 = vadd.f32 %v2675, %v2715
    %2717 = vdwg.mxu0
    %2718 = vmatpush.msra.mxu0 0.0
    %2719 = vmatpush.msra.mxu0 0.0
    %2720 = vmatpush.msra.mxu0 0.0
    %2721 = vmatpush.msra.mxu0 0.0
    %2722 = vmatpush.msra.mxu0 0.0
    %2723 = vmatpush.msra.mxu0 0.0
    %2724 = vmatpush.msra.mxu0 0.0
    %2725 = vmatpush.msra.mxu0 0.0
    %2726 = vmatpush.msra.mxu0 0.0
    %2727 = vmatpush.msra.mxu0 0.0
    %2728 = vmatpush.msra.mxu0 0.0
    %2729 = vmatpush.msra.mxu0 0.0
    %v2730 = vand.u32 %v2635, 4294901760
    %v2731 = vsub.f32 %v2635, %v2730
    %2732 = vmatpush.msra.mxu0 %v2731
    %v2733 = vand.u32 %v2634, 4294901760
    %v2734 = vsub.f32 %v2634, %v2733
    %2735 = vmatpush.msra.mxu0 %v2734
    %v2736 = vand.u32 %v2633, 4294901760
    %v2737 = vsub.f32 %v2633, %v2736
    %2738 = vmatpush.msra.mxu0 %v2737
    %v2739 = vand.u32 %v2632, 4294901760
    %v2740 = vsub.f32 %v2632, %v2739
    %2741 = vmatpush.msra.mxu0 %v2740
    %v2742 = vand.u32 %v2646, 4294901760
    %v2743 = vsub.f32 %v2646, %v2742
    %2744 = vmatmul.f32.gmra.mxu0 %v2743
    %v2745 = vpop.f32.mrf.mxu0
    %v2746 = vadd.f32 %v2716, %v2745
    %2747 = vdwg.mxu0
    %2748 = vmatpush.msra.mxu0 0.0
    %2749 = vmatpush.msra.mxu0 0.0
    %2750 = vmatpush.msra.mxu0 0.0
    %2751 = vmatpush.msra.mxu0 0.0
    %2752 = vmatpush.msra.mxu0 0.0
    %2753 = vmatpush.msra.mxu0 0.0
    %2754 = vmatpush.msra.mxu0 0.0
    %2755 = vmatpush.msra.mxu0 0.0
    %2756 = vmatpush.msra.mxu0 0.0
    %2757 = vmatpush.msra.mxu0 0.0
    %2758 = vmatpush.msra.mxu0 0.0
    %2759 = vmatpush.msra.mxu0 0.0
    %v2760 = vand.u32 %v2635, 4294901760
    %2761 = vmatpush.msra.mxu0 %v2760
    %v2762 = vand.u32 %v2634, 4294901760
    %2763 = vmatpush.msra.mxu0 %v2762
    %v2764 = vand.u32 %v2633, 4294901760
    %2765 = vmatpush.msra.mxu0 %v2764
    %v2766 = vand.u32 %v2632, 4294901760
    %2767 = vmatpush.msra.mxu0 %v2766
    %v2768 = vand.u32 %v2646, 4294901760
    %v2769 = vsub.f32 %v2646, %v2768
    %v2770 = vand.u32 %v2769, 4294901760
    %2771 = vmatmul.f32.gmra.mxu0 %v2770
    %v2772 = vpop.f32.mrf.mxu0
    %v2773 = vadd.f32 %v2746, %v2772
    %2774 = vdwg.mxu0
    %2775 = vmatpush.msra.mxu0 0.0
    %2776 = vmatpush.msra.mxu0 0.0
    %2777 = vmatpush.msra.mxu0 0.0
    %2778 = vmatpush.msra.mxu0 0.0
    %2779 = vmatpush.msra.mxu0 0.0
    %2780 = vmatpush.msra.mxu0 0.0
    %2781 = vmatpush.msra.mxu0 0.0
    %2782 = vmatpush.msra.mxu0 0.0
    %2783 = vmatpush.msra.mxu0 0.0
    %2784 = vmatpush.msra.mxu0 0.0
    %2785 = vmatpush.msra.mxu0 0.0
    %2786 = vmatpush.msra.mxu0 0.0
    %v2787 = vand.u32 %v2635, 4294901760
    %v2788 = vsub.f32 %v2635, %v2787
    %v2789 = vand.u32 %v2788, 4294901760
    %2790 = vmatpush.msra.mxu0 %v2789
    %v2791 = vand.u32 %v2634, 4294901760
    %v2792 = vsub.f32 %v2634, %v2791
    %v2793 = vand.u32 %v2792, 4294901760
    %2794 = vmatpush.msra.mxu0 %v2793
    %v2795 = vand.u32 %v2633, 4294901760
    %v2796 = vsub.f32 %v2633, %v2795
    %v2797 = vand.u32 %v2796, 4294901760
    %2798 = vmatpush.msra.mxu0 %v2797
    %v2799 = vand.u32 %v2632, 4294901760
    %v2800 = vsub.f32 %v2632, %v2799
    %v2801 = vand.u32 %v2800, 4294901760
    %2802 = vmatpush.msra.mxu0 %v2801
    %v2803 = vand.u32 %v2646, 4294901760
    %2804 = vmatmul.f32.gmra.mxu0 %v2803
    %v2805 = vpop.f32.mrf.mxu0
    %v2806 = vadd.f32 %v2773, %v2805
    %2807 = vdwg.mxu0
    %2808 = vmatpush.msra.mxu0 0.0
    %2809 = vmatpush.msra.mxu0 0.0
    %2810 = vmatpush.msra.mxu0 0.0
    %2811 = vmatpush.msra.mxu0 0.0
    %2812 = vmatpush.msra.mxu0 0.0
    %2813 = vmatpush.msra.mxu0 0.0
    %2814 = vmatpush.msra.mxu0 0.0
    %2815 = vmatpush.msra.mxu0 0.0
    %2816 = vmatpush.msra.mxu0 0.0
    %2817 = vmatpush.msra.mxu0 0.0
    %2818 = vmatpush.msra.mxu0 0.0
    %2819 = vmatpush.msra.mxu0 0.0
    %v2820 = vand.u32 %v2635, 4294901760
    %2821 = vmatpush.msra.mxu0 %v2820
    %v2822 = vand.u32 %v2634, 4294901760
    %2823 = vmatpush.msra.mxu0 %v2822
    %v2824 = vand.u32 %v2633, 4294901760
    %2825 = vmatpush.msra.mxu0 %v2824
    %v2826 = vand.u32 %v2632, 4294901760
    %2827 = vmatpush.msra.mxu0 %v2826
    %v2828 = vand.u32 %v2646, 4294901760
    %2829 = vmatmul.f32.gmra.mxu0 %v2828
    %v2830 = vpop.f32.mrf.mxu0
    %v2831 = vadd.f32 %v2806, %v2830
    %2832 = vdwg.mxu0
    %v2833 = vld [vmem:[%s17] sm:$0xff]
    %v2834 = vld [vmem:[%s17 + $0x8] sm:$0xff]
    %v2835 = vld [vmem:[%s17 + $0x10] sm:$0xff]
    %v2836 = vld [vmem:[%s17 + $0x18] sm:$0xff]
    %v2837 = vld [vmem:[%s18] sm:$0x1]
    %v2839 = vperm.slane %v2837, 0
    %2841 = vst [vmem:[#allocation1] ss:$9 sm:$0xff] %v2229
    %s2842 = scalar_lea.vmem [#allocation1], 1
    %2843 = vst [vmem:[%s2842] ss:$9 sm:$0xff] %v2230
    %v2844 = vld [vmem:[#allocation1] sm:$0xff]
    %v2845 = vsel %vm2245, %v2844, 0
    %2847 = vmatpush.msra.mxu0 0.0
    %2848 = vmatpush.msra.mxu0 0.0
    %2849 = vmatpush.msra.mxu0 0.0
    %2850 = vmatpush.msra.mxu0 0.0
    %2851 = vmatpush.msra.mxu0 0.0
    %2852 = vmatpush.msra.mxu0 0.0
    %2853 = vmatpush.msra.mxu0 0.0
    %2854 = vmatpush.msra.mxu0 0.0
    %2855 = vmatpush.msra.mxu0 0.0
    %2856 = vmatpush.msra.mxu0 0.0
    %2857 = vmatpush.msra.mxu0 0.0
    %2858 = vmatpush.msra.mxu0 0.0
    %v2859 = vand.u32 %v2836, 4294901760
    %2860 = vmatpush.msra.mxu0 %v2859
    %v2861 = vand.u32 %v2835, 4294901760
    %2862 = vmatpush.msra.mxu0 %v2861
    %v2863 = vand.u32 %v2834, 4294901760
    %2864 = vmatpush.msra.mxu0 %v2863
    %v2865 = vand.u32 %v2833, 4294901760
    %2866 = vmatpush.msra.mxu0 %v2865
    %v2867 = vand.u32 %v2845, 4294901760
    %v2868 = vsub.f32 %v2845, %v2867
    %v2869 = vand.u32 %v2868, 4294901760
    %v2870 = vsub.f32 %v2868, %v2869
    %v2871 = vand.u32 %v2870, 4294901760
    %2872 = vmatmul.f32.gmra.mxu0 %v2871
    %v2873 = vpop.f32.mrf.mxu0
    %v2874 = vadd.f32 %v2839, %v2873
    %2875 = vdwg.mxu0
    %2876 = vmatpush.msra.mxu0 0.0
    %2877 = vmatpush.msra.mxu0 0.0
    %2878 = vmatpush.msra.mxu0 0.0
    %2879 = vmatpush.msra.mxu0 0.0
    %2880 = vmatpush.msra.mxu0 0.0
    %2881 = vmatpush.msra.mxu0 0.0
    %2882 = vmatpush.msra.mxu0 0.0
    %2883 = vmatpush.msra.mxu0 0.0
    %2884 = vmatpush.msra.mxu0 0.0
    %2885 = vmatpush.msra.mxu0 0.0
    %2886 = vmatpush.msra.mxu0 0.0
    %2887 = vmatpush.msra.mxu0 0.0
    %v2888 = vand.u32 %v2836, 4294901760
    %v2889 = vsub.f32 %v2836, %v2888
    %v2890 = vand.u32 %v2889, 4294901760
    %v2891 = vsub.f32 %v2889, %v2890
    %v2892 = vand.u32 %v2891, 4294901760
    %2893 = vmatpush.msra.mxu0 %v2892
    %v2894 = vand.u32 %v2835, 4294901760
    %v2895 = vsub.f32 %v2835, %v2894
    %v2896 = vand.u32 %v2895, 4294901760
    %v2897 = vsub.f32 %v2895, %v2896
    %v2898 = vand.u32 %v2897, 4294901760
    %2899 = vmatpush.msra.mxu0 %v2898
    %v2900 = vand.u32 %v2834, 4294901760
    %v2901 = vsub.f32 %v2834, %v2900
    %v2902 = vand.u32 %v2901, 4294901760
    %v2903 = vsub.f32 %v2901, %v2902
    %v2904 = vand.u32 %v2903, 4294901760
    %2905 = vmatpush.msra.mxu0 %v2904
    %v2906 = vand.u32 %v2833, 4294901760
    %v2907 = vsub.f32 %v2833, %v2906
    %v2908 = vand.u32 %v2907, 4294901760
    %v2909 = vsub.f32 %v2907, %v2908
    %v2910 = vand.u32 %v2909, 4294901760
    %2911 = vmatpush.msra.mxu0 %v2910
    %v2912 = vand.u32 %v2845, 4294901760
    %2913 = vmatmul.f32.gmra.mxu0 %v2912
    %v2914 = vpop.f32.mrf.mxu0
    %v2915 = vadd.f32 %v2874, %v2914
    %2916 = vdwg.mxu0
    %2917 = vmatpush.msra.mxu0 0.0
    %2918 = vmatpush.msra.mxu0 0.0
    %2919 = vmatpush.msra.mxu0 0.0
    %2920 = vmatpush.msra.mxu0 0.0
    %2921 = vmatpush.msra.mxu0 0.0
    %2922 = vmatpush.msra.mxu0 0.0
    %2923 = vmatpush.msra.mxu0 0.0
    %2924 = vmatpush.msra.mxu0 0.0
    %2925 = vmatpush.msra.mxu0 0.0
    %2926 = vmatpush.msra.mxu0 0.0
    %2927 = vmatpush.msra.mxu0 0.0
    %2928 = vmatpush.msra.mxu0 0.0
    %v2929 = vand.u32 %v2836, 4294901760
    %v2930 = vsub.f32 %v2836, %v2929
    %2931 = vmatpush.msra.mxu0 %v2930
    %v2932 = vand.u32 %v2835, 4294901760
    %v2933 = vsub.f32 %v2835, %v2932
    %2934 = vmatpush.msra.mxu0 %v2933
    %v2935 = vand.u32 %v2834, 4294901760
    %v2936 = vsub.f32 %v2834, %v2935
    %2937 = vmatpush.msra.mxu0 %v2936
    %v2938 = vand.u32 %v2833, 4294901760
    %v2939 = vsub.f32 %v2833, %v2938
    %2940 = vmatpush.msra.mxu0 %v2939
    %v2941 = vand.u32 %v2845, 4294901760
    %v2942 = vsub.f32 %v2845, %v2941
    %2943 = vmatmul.f32.gmra.mxu0 %v2942
    %v2944 = vpop.f32.mrf.mxu0
    %v2945 = vadd.f32 %v2915, %v2944
    %2946 = vdwg.mxu0
    %2947 = vmatpush.msra.mxu0 0.0
    %2948 = vmatpush.msra.mxu0 0.0
    %2949 = vmatpush.msra.mxu0 0.0
    %2950 = vmatpush.msra.mxu0 0.0
    %2951 = vmatpush.msra.mxu0 0.0
    %2952 = vmatpush.msra.mxu0 0.0
    %2953 = vmatpush.msra.mxu0 0.0
    %2954 = vmatpush.msra.mxu0 0.0
    %2955 = vmatpush.msra.mxu0 0.0
    %2956 = vmatpush.msra.mxu0 0.0
    %2957 = vmatpush.msra.mxu0 0.0
    %2958 = vmatpush.msra.mxu0 0.0
    %v2959 = vand.u32 %v2836, 4294901760
    %2960 = vmatpush.msra.mxu0 %v2959
    %v2961 = vand.u32 %v2835, 4294901760
    %2962 = vmatpush.msra.mxu0 %v2961
    %v2963 = vand.u32 %v2834, 4294901760
    %2964 = vmatpush.msra.mxu0 %v2963
    %v2965 = vand.u32 %v2833, 4294901760
    %2966 = vmatpush.msra.mxu0 %v2965
    %v2967 = vand.u32 %v2845, 4294901760
    %v2968 = vsub.f32 %v2845, %v2967
    %v2969 = vand.u32 %v2968, 4294901760
    %2970 = vmatmul.f32.gmra.mxu0 %v2969
    %v2971 = vpop.f32.mrf.mxu0
    %v2972 = vadd.f32 %v2945, %v2971
    %2973 = vdwg.mxu0
    %2974 = vmatpush.msra.mxu0 0.0
    %2975 = vmatpush.msra.mxu0 0.0
    %2976 = vmatpush.msra.mxu0 0.0
    %2977 = vmatpush.msra.mxu0 0.0
    %2978 = vmatpush.msra.mxu0 0.0
    %2979 = vmatpush.msra.mxu0 0.0
    %2980 = vmatpush.msra.mxu0 0.0
    %2981 = vmatpush.msra.mxu0 0.0
    %2982 = vmatpush.msra.mxu0 0.0
    %2983 = vmatpush.msra.mxu0 0.0
    %2984 = vmatpush.msra.mxu0 0.0
    %2985 = vmatpush.msra.mxu0 0.0
    %v2986 = vand.u32 %v2836, 4294901760
    %v2987 = vsub.f32 %v2836, %v2986
    %v2988 = vand.u32 %v2987, 4294901760
    %2989 = vmatpush.msra.mxu0 %v2988
    %v2990 = vand.u32 %v2835, 4294901760
    %v2991 = vsub.f32 %v2835, %v2990
    %v2992 = vand.u32 %v2991, 4294901760
    %2993 = vmatpush.msra.mxu0 %v2992
    %v2994 = vand.u32 %v2834, 4294901760
    %v2995 = vsub.f32 %v2834, %v2994
    %v2996 = vand.u32 %v2995, 4294901760
    %2997 = vmatpush.msra.mxu0 %v2996
    %v2998 = vand.u32 %v2833, 4294901760
    %v2999 = vsub.f32 %v2833, %v2998
    %v3000 = vand.u32 %v2999, 4294901760
    %3001 = vmatpush.msra.mxu0 %v3000
    %v3002 = vand.u32 %v2845, 4294901760
    %3003 = vmatmul.f32.gmra.mxu0 %v3002
    %v3004 = vpop.f32.mrf.mxu0
    %v3005 = vadd.f32 %v2972, %v3004
    %3006 = vdwg.mxu0
    %3007 = vmatpush.msra.mxu0 0.0
    %3008 = vmatpush.msra.mxu0 0.0
    %3009 = vmatpush.msra.mxu0 0.0
    %3010 = vmatpush.msra.mxu0 0.0
    %3011 = vmatpush.msra.mxu0 0.0
    %3012 = vmatpush.msra.mxu0 0.0
    %3013 = vmatpush.msra.mxu0 0.0
    %3014 = vmatpush.msra.mxu0 0.0
    %3015 = vmatpush.msra.mxu0 0.0
    %3016 = vmatpush.msra.mxu0 0.0
    %3017 = vmatpush.msra.mxu0 0.0
    %3018 = vmatpush.msra.mxu0 0.0
    %v3019 = vand.u32 %v2836, 4294901760
    %3020 = vmatpush.msra.mxu0 %v3019
    %v3021 = vand.u32 %v2835, 4294901760
    %3022 = vmatpush.msra.mxu0 %v3021
    %v3023 = vand.u32 %v2834, 4294901760
    %3024 = vmatpush.msra.mxu0 %v3023
    %v3025 = vand.u32 %v2833, 4294901760
    %3026 = vmatpush.msra.mxu0 %v3025
    %v3027 = vand.u32 %v2845, 4294901760
    %3028 = vmatmul.f32.gmra.mxu0 %v3027
    %v3029 = vpop.f32.mrf.mxu0
    %v3030 = vadd.f32 %v3005, %v3029
    %3031 = vdwg.mxu0
    %v3032 = vsel %vm86, %v2131, 0.0
    %v3033 = vsel %vm86, %v2132, 0.0
    %v3034 = vadd.f32 %v3032, %v3033
    %v3035 = vsel %vm86, %v2133, 0.0
    %v3036 = vadd.f32 %v3034, %v3035
    %v3037 = vsel %vm86, %v2134, 0.0
    %v3038 = vadd.f32 %v3036, %v3037
    %v3039 = vsel %vm86, %v2135, 0.0
    %v3040 = vadd.f32 %v3038, %v3039
    %v3041 = vsel %vm86, %v2136, 0.0
    %v3042 = vadd.f32 %v3040, %v3041
    %v3043 = vsel %vm86, %v2137, 0.0
    %v3044 = vadd.f32 %v3042, %v3043
    %v3045 = vsel %vm86, %v2138, 0.0
    %v3046 = vadd.f32 %v3044, %v3045
    %v3047 = vrot.slane %v3046, 4
    %v3048 = vadd.f32 %v3046, %v3047
    %v3049 = vrot.slane %v3048, 2
    %v3050 = vadd.f32 %v3048, %v3049
    %v3051 = vrot.slane %v3050, 1
    %v3052 = vadd.f32 %v3050, %v3051
    %v3053 = vsel %vm86, %v2139, 0.0
    %v3054 = vsel %vm86, %v2140, 0.0
    %v3055 = vadd.f32 %v3053, %v3054
    %v3056 = vsel %vm86, %v2141, 0.0
    %v3057 = vadd.f32 %v3055, %v3056
    %v3058 = vsel %vm86, %v2142, 0.0
    %v3059 = vadd.f32 %v3057, %v3058
    %v3060 = vsel %vm86, %v2143, 0.0
    %v3061 = vadd.f32 %v3059, %v3060
    %v3062 = vsel %vm86, %v2144, 0.0
    %v3063 = vadd.f32 %v3061, %v3062
    %v3064 = vsel %vm86, %v2145, 0.0
    %v3065 = vadd.f32 %v3063, %v3064
    %v3066 = vsel %vm86, %v2146, 0.0
    %v3067 = vadd.f32 %v3065, %v3066
    %v3068 = vrot.slane %v3067, 4
    %v3069 = vadd.f32 %v3067, %v3068
    %v3070 = vrot.slane %v3069, 2
    %v3071 = vadd.f32 %v3069, %v3070
    %v3072 = vrot.slane %v3071, 1
    %v3073 = vadd.f32 %v3071, %v3072
    %v3074 = vmul.f32 %v3052, 0.015625
    %v3075 = vmul.f32 %v3073, 0.015625
    %v3076 = vld [vmem:[%s10] sm:$0xff]
    %v3077 = vld [vmem:[%s10 + $0x8] sm:$0xff]
    %v3078 = vld [vmem:[%s10 + $0x10] sm:$0xff]
    %v3079 = vld [vmem:[%s10 + $0x18] sm:$0xff]
    %v3080 = vld [vmem:[%s10 + $0x20] sm:$0xff]
    %v3081 = vld [vmem:[%s10 + $0x28] sm:$0xff]
    %v3082 = vld [vmem:[%s10 + $0x30] sm:$0xff]
    %v3083 = vld [vmem:[%s10 + $0x38] sm:$0xff]
    %v3086 = vsel %vm141, %v3075, %v3074
    %v3087 = vsel %vm86, %v3086, 0
    %3089 = vmatpush.msra.mxu0 0.0
    %3090 = vmatpush.msra.mxu0 0.0
    %3091 = vmatpush.msra.mxu0 0.0
    %3092 = vmatpush.msra.mxu0 0.0
    %3093 = vmatpush.msra.mxu0 0.0
    %3094 = vmatpush.msra.mxu0 0.0
    %3095 = vmatpush.msra.mxu0 0.0
    %3096 = vmatpush.msra.mxu0 0.0
    %v3097 = vand.u32 %v3083, 4294901760
    %3098 = vmatpush.msra.mxu0 %v3097
    %v3099 = vand.u32 %v3082, 4294901760
    %3100 = vmatpush.msra.mxu0 %v3099
    %v3101 = vand.u32 %v3081, 4294901760
    %3102 = vmatpush.msra.mxu0 %v3101
    %v3103 = vand.u32 %v3080, 4294901760
    %3104 = vmatpush.msra.mxu0 %v3103
    %v3105 = vand.u32 %v3079, 4294901760
    %3106 = vmatpush.msra.mxu0 %v3105
    %v3107 = vand.u32 %v3078, 4294901760
    %3108 = vmatpush.msra.mxu0 %v3107
    %v3109 = vand.u32 %v3077, 4294901760
    %3110 = vmatpush.msra.mxu0 %v3109
    %v3111 = vand.u32 %v3076, 4294901760
    %3112 = vmatpush.msra.mxu0 %v3111
    %v3113 = vand.u32 %v3087, 4294901760
    %v3114 = vsub.f32 %v3087, %v3113
    %v3115 = vand.u32 %v3114, 4294901760
    %v3116 = vsub.f32 %v3114, %v3115
    %v3117 = vand.u32 %v3116, 4294901760
    %3118 = vmatmul.f32.gmra.mxu0 %v3117
    %v3119 = vpop.f32.mrf.mxu0
    %v3120 = vadd.f32 0.0, %v3119
    %3121 = vdwg.mxu0
    %3122 = vmatpush.msra.mxu0 0.0
    %3123 = vmatpush.msra.mxu0 0.0
    %3124 = vmatpush.msra.mxu0 0.0
    %3125 = vmatpush.msra.mxu0 0.0
    %3126 = vmatpush.msra.mxu0 0.0
    %3127 = vmatpush.msra.mxu0 0.0
    %3128 = vmatpush.msra.mxu0 0.0
    %3129 = vmatpush.msra.mxu0 0.0
    %v3130 = vand.u32 %v3083, 4294901760
    %v3131 = vsub.f32 %v3083, %v3130
    %v3132 = vand.u32 %v3131, 4294901760
    %v3133 = vsub.f32 %v3131, %v3132
    %v3134 = vand.u32 %v3133, 4294901760
    %3135 = vmatpush.msra.mxu0 %v3134
    %v3136 = vand.u32 %v3082, 4294901760
    %v3137 = vsub.f32 %v3082, %v3136
    %v3138 = vand.u32 %v3137, 4294901760
    %v3139 = vsub.f32 %v3137, %v3138
    %v3140 = vand.u32 %v3139, 4294901760
    %3141 = vmatpush.msra.mxu0 %v3140
    %v3142 = vand.u32 %v3081, 4294901760
    %v3143 = vsub.f32 %v3081, %v3142
    %v3144 = vand.u32 %v3143, 4294901760
    %v3145 = vsub.f32 %v3143, %v3144
    %v3146 = vand.u32 %v3145, 4294901760
    %3147 = vmatpush.msra.mxu0 %v3146
    %v3148 = vand.u32 %v3080, 4294901760
    %v3149 = vsub.f32 %v3080, %v3148
    %v3150 = vand.u32 %v3149, 4294901760
    %v3151 = vsub.f32 %v3149, %v3150
    %v3152 = vand.u32 %v3151, 4294901760
    %3153 = vmatpush.msra.mxu0 %v3152
    %v3154 = vand.u32 %v3079, 4294901760
    %v3155 = vsub.f32 %v3079, %v3154
    %v3156 = vand.u32 %v3155, 4294901760
    %v3157 = vsub.f32 %v3155, %v3156
    %v3158 = vand.u32 %v3157, 4294901760
    %3159 = vmatpush.msra.mxu0 %v3158
    %v3160 = vand.u32 %v3078, 4294901760
    %v3161 = vsub.f32 %v3078, %v3160
    %v3162 = vand.u32 %v3161, 4294901760
    %v3163 = vsub.f32 %v3161, %v3162
    %v3164 = vand.u32 %v3163, 4294901760
    %3165 = vmatpush.msra.mxu0 %v3164
    %v3166 = vand.u32 %v3077, 4294901760
    %v3167 = vsub.f32 %v3077, %v3166
    %v3168 = vand.u32 %v3167, 4294901760
    %v3169 = vsub.f32 %v3167, %v3168
    %v3170 = vand.u32 %v3169, 4294901760
    %3171 = vmatpush.msra.mxu0 %v3170
    %v3172 = vand.u32 %v3076, 4294901760
    %v3173 = vsub.f32 %v3076, %v3172
    %v3174 = vand.u32 %v3173, 4294901760
    %v3175 = vsub.f32 %v3173, %v3174
    %v3176 = vand.u32 %v3175, 4294901760
    %3177 = vmatpush.msra.mxu0 %v3176
    %v3178 = vand.u32 %v3087, 4294901760
    %3179 = vmatmul.f32.gmra.mxu0 %v3178
    %v3180 = vpop.f32.mrf.mxu0
    %v3181 = vadd.f32 %v3120, %v3180
    %3182 = vdwg.mxu0
    %3183 = vmatpush.msra.mxu0 0.0
    %3184 = vmatpush.msra.mxu0 0.0
    %3185 = vmatpush.msra.mxu0 0.0
    %3186 = vmatpush.msra.mxu0 0.0
    %3187 = vmatpush.msra.mxu0 0.0
    %3188 = vmatpush.msra.mxu0 0.0
    %3189 = vmatpush.msra.mxu0 0.0
    %3190 = vmatpush.msra.mxu0 0.0
    %v3191 = vand.u32 %v3083, 4294901760
    %v3192 = vsub.f32 %v3083, %v3191
    %3193 = vmatpush.msra.mxu0 %v3192
    %v3194 = vand.u32 %v3082, 4294901760
    %v3195 = vsub.f32 %v3082, %v3194
    %3196 = vmatpush.msra.mxu0 %v3195
    %v3197 = vand.u32 %v3081, 4294901760
    %v3198 = vsub.f32 %v3081, %v3197
    %3199 = vmatpush.msra.mxu0 %v3198
    %v3200 = vand.u32 %v3080, 4294901760
    %v3201 = vsub.f32 %v3080, %v3200
    %3202 = vmatpush.msra.mxu0 %v3201
    %v3203 = vand.u32 %v3079, 4294901760
    %v3204 = vsub.f32 %v3079, %v3203
    %3205 = vmatpush.msra.mxu0 %v3204
    %v3206 = vand.u32 %v3078, 4294901760
    %v3207 = vsub.f32 %v3078, %v3206
    %3208 = vmatpush.msra.mxu0 %v3207
    %v3209 = vand.u32 %v3077, 4294901760
    %v3210 = vsub.f32 %v3077, %v3209
    %3211 = vmatpush.msra.mxu0 %v3210
    %v3212 = vand.u32 %v3076, 4294901760
    %v3213 = vsub.f32 %v3076, %v3212
    %3214 = vmatpush.msra.mxu0 %v3213
    %v3215 = vand.u32 %v3087, 4294901760
    %v3216 = vsub.f32 %v3087, %v3215
    %3217 = vmatmul.f32.gmra.mxu0 %v3216
    %v3218 = vpop.f32.mrf.mxu0
    %v3219 = vadd.f32 %v3181, %v3218
    %3220 = vdwg.mxu0
    %3221 = vmatpush.msra.mxu0 0.0
    %3222 = vmatpush.msra.mxu0 0.0
    %3223 = vmatpush.msra.mxu0 0.0
    %3224 = vmatpush.msra.mxu0 0.0
    %3225 = vmatpush.msra.mxu0 0.0
    %3226 = vmatpush.msra.mxu0 0.0
    %3227 = vmatpush.msra.mxu0 0.0
    %3228 = vmatpush.msra.mxu0 0.0
    %v3229 = vand.u32 %v3083, 4294901760
    %3230 = vmatpush.msra.mxu0 %v3229
    %v3231 = vand.u32 %v3082, 4294901760
    %3232 = vmatpush.msra.mxu0 %v3231
    %v3233 = vand.u32 %v3081, 4294901760
    %3234 = vmatpush.msra.mxu0 %v3233
    %v3235 = vand.u32 %v3080, 4294901760
    %3236 = vmatpush.msra.mxu0 %v3235
    %v3237 = vand.u32 %v3079, 4294901760
    %3238 = vmatpush.msra.mxu0 %v3237
    %v3239 = vand.u32 %v3078, 4294901760
    %3240 = vmatpush.msra.mxu0 %v3239
    %v3241 = vand.u32 %v3077, 4294901760
    %3242 = vmatpush.msra.mxu0 %v3241
    %v3243 = vand.u32 %v3076, 4294901760
    %3244 = vmatpush.msra.mxu0 %v3243
    %v3245 = vand.u32 %v3087, 4294901760
    %v3246 = vsub.f32 %v3087, %v3245
    %v3247 = vand.u32 %v3246, 4294901760
    %3248 = vmatmul.f32.gmra.mxu0 %v3247
    %v3249 = vpop.f32.mrf.mxu0
    %v3250 = vadd.f32 %v3219, %v3249
    %3251 = vdwg.mxu0
    %3252 = vmatpush.msra.mxu0 0.0
    %3253 = vmatpush.msra.mxu0 0.0
    %3254 = vmatpush.msra.mxu0 0.0
    %3255 = vmatpush.msra.mxu0 0.0
    %3256 = vmatpush.msra.mxu0 0.0
    %3257 = vmatpush.msra.mxu0 0.0
    %3258 = vmatpush.msra.mxu0 0.0
    %3259 = vmatpush.msra.mxu0 0.0
    %v3260 = vand.u32 %v3083, 4294901760
    %v3261 = vsub.f32 %v3083, %v3260
    %v3262 = vand.u32 %v3261, 4294901760
    %3263 = vmatpush.msra.mxu0 %v3262
    %v3264 = vand.u32 %v3082, 4294901760
    %v3265 = vsub.f32 %v3082, %v3264
    %v3266 = vand.u32 %v3265, 4294901760
    %3267 = vmatpush.msra.mxu0 %v3266
    %v3268 = vand.u32 %v3081, 4294901760
    %v3269 = vsub.f32 %v3081, %v3268
    %v3270 = vand.u32 %v3269, 4294901760
    %3271 = vmatpush.msra.mxu0 %v3270
    %v3272 = vand.u32 %v3080, 4294901760
    %v3273 = vsub.f32 %v3080, %v3272
    %v3274 = vand.u32 %v3273, 4294901760
    %3275 = vmatpush.msra.mxu0 %v3274
    %v3276 = vand.u32 %v3079, 4294901760
    %v3277 = vsub.f32 %v3079, %v3276
    %v3278 = vand.u32 %v3277, 4294901760
    %3279 = vmatpush.msra.mxu0 %v3278
    %v3280 = vand.u32 %v3078, 4294901760
    %v3281 = vsub.f32 %v3078, %v3280
    %v3282 = vand.u32 %v3281, 4294901760
    %3283 = vmatpush.msra.mxu0 %v3282
    %v3284 = vand.u32 %v3077, 4294901760
    %v3285 = vsub.f32 %v3077, %v3284
    %v3286 = vand.u32 %v3285, 4294901760
    %3287 = vmatpush.msra.mxu0 %v3286
    %v3288 = vand.u32 %v3076, 4294901760
    %v3289 = vsub.f32 %v3076, %v3288
    %v3290 = vand.u32 %v3289, 4294901760
    %3291 = vmatpush.msra.mxu0 %v3290
    %v3292 = vand.u32 %v3087, 4294901760
    %3293 = vmatmul.f32.gmra.mxu0 %v3292
    %v3294 = vpop.f32.mrf.mxu0
    %v3295 = vadd.f32 %v3250, %v3294
    %3296 = vdwg.mxu0
    %3297 = vmatpush.msra.mxu0 0.0
    %3298 = vmatpush.msra.mxu0 0.0
    %3299 = vmatpush.msra.mxu0 0.0
    %3300 = vmatpush.msra.mxu0 0.0
    %3301 = vmatpush.msra.mxu0 0.0
    %3302 = vmatpush.msra.mxu0 0.0
    %3303 = vmatpush.msra.mxu0 0.0
    %3304 = vmatpush.msra.mxu0 0.0
    %v3305 = vand.u32 %v3083, 4294901760
    %3306 = vmatpush.msra.mxu0 %v3305
    %v3307 = vand.u32 %v3082, 4294901760
    %3308 = vmatpush.msra.mxu0 %v3307
    %v3309 = vand.u32 %v3081, 4294901760
    %3310 = vmatpush.msra.mxu0 %v3309
    %v3311 = vand.u32 %v3080, 4294901760
    %3312 = vmatpush.msra.mxu0 %v3311
    %v3313 = vand.u32 %v3079, 4294901760
    %3314 = vmatpush.msra.mxu0 %v3313
    %v3315 = vand.u32 %v3078, 4294901760
    %3316 = vmatpush.msra.mxu0 %v3315
    %v3317 = vand.u32 %v3077, 4294901760
    %3318 = vmatpush.msra.mxu0 %v3317
    %v3319 = vand.u32 %v3076, 4294901760
    %3320 = vmatpush.msra.mxu0 %v3319
    %v3321 = vand.u32 %v3087, 4294901760
    %3322 = vmatmul.f32.gmra.mxu0 %v3321
    %v3323 = vpop.f32.mrf.mxu0
    %v3324 = vadd.f32 %v3295, %v3323
    %3325 = vdwg.mxu0
    %v3327 = vrot.slane %v3324, 1
    %v3328 = vperm.slane %v3324, 0
    %v3329 = vperm.slane %v3327, 0
    %v3332 = vsub.f32 %v2131, %v3328
    %v3333 = vsub.f32 %v2132, %v3328
    %v3334 = vsub.f32 %v2133, %v3328
    %v3335 = vsub.f32 %v2134, %v3328
    %v3336 = vsub.f32 %v2135, %v3328
    %v3337 = vsub.f32 %v2136, %v3328
    %v3338 = vsub.f32 %v2137, %v3328
    %v3339 = vsub.f32 %v2138, %v3328
    %v3340 = vsub.f32 %v2139, %v3329
    %v3341 = vsub.f32 %v2140, %v3329
    %v3342 = vsub.f32 %v2141, %v3329
    %v3343 = vsub.f32 %v2142, %v3329
    %v3344 = vsub.f32 %v2143, %v3329
    %v3345 = vsub.f32 %v2144, %v3329
    %v3346 = vsub.f32 %v2145, %v3329
    %v3347 = vsub.f32 %v2146, %v3329
    %v3348 = vmul.f32 %v3332, %v3332
    %v3349 = vmul.f32 %v3333, %v3333
    %v3350 = vmul.f32 %v3334, %v3334
    %v3351 = vmul.f32 %v3335, %v3335
    %v3352 = vmul.f32 %v3336, %v3336
    %v3353 = vmul.f32 %v3337, %v3337
    %v3354 = vmul.f32 %v3338, %v3338
    %v3355 = vmul.f32 %v3339, %v3339
    %v3356 = vmul.f32 %v3340, %v3340
    %v3357 = vmul.f32 %v3341, %v3341
    %v3358 = vmul.f32 %v3342, %v3342
    %v3359 = vmul.f32 %v3343, %v3343
    %v3360 = vmul.f32 %v3344, %v3344
    %v3361 = vmul.f32 %v3345, %v3345
    %v3362 = vmul.f32 %v3346, %v3346
    %v3363 = vmul.f32 %v3347, %v3347
    %v3364 = vsel %vm86, %v3348, 0.0
    %v3365 = vsel %vm86, %v3349, 0.0
    %v3366 = vadd.f32 %v3364, %v3365
    %v3367 = vsel %vm86, %v3350, 0.0
    %v3368 = vadd.f32 %v3366, %v3367
    %v3369 = vsel %vm86, %v3351, 0.0
    %v3370 = vadd.f32 %v3368, %v3369
    %v3371 = vsel %vm86, %v3352, 0.0
    %v3372 = vadd.f32 %v3370, %v3371
    %v3373 = vsel %vm86, %v3353, 0.0
    %v3374 = vadd.f32 %v3372, %v3373
    %v3375 = vsel %vm86, %v3354, 0.0
    %v3376 = vadd.f32 %v3374, %v3375
    %v3377 = vsel %vm86, %v3355, 0.0
    %v3378 = vadd.f32 %v3376, %v3377
    %v3379 = vrot.slane %v3378, 4
    %v3380 = vadd.f32 %v3378, %v3379
    %v3381 = vrot.slane %v3380, 2
    %v3382 = vadd.f32 %v3380, %v3381
    %v3383 = vrot.slane %v3382, 1
    %v3384 = vadd.f32 %v3382, %v3383
    %v3385 = vsel %vm86, %v3356, 0.0
    %v3386 = vsel %vm86, %v3357, 0.0
    %v3387 = vadd.f32 %v3385, %v3386
    %v3388 = vsel %vm86, %v3358, 0.0
    %v3389 = vadd.f32 %v3387, %v3388
    %v3390 = vsel %vm86, %v3359, 0.0
    %v3391 = vadd.f32 %v3389, %v3390
    %v3392 = vsel %vm86, %v3360, 0.0
    %v3393 = vadd.f32 %v3391, %v3392
    %v3394 = vsel %vm86, %v3361, 0.0
    %v3395 = vadd.f32 %v3393, %v3394
    %v3396 = vsel %vm86, %v3362, 0.0
    %v3397 = vadd.f32 %v3395, %v3396
    %v3398 = vsel %vm86, %v3363, 0.0
    %v3399 = vadd.f32 %v3397, %v3398
    %v3400 = vrot.slane %v3399, 4
    %v3401 = vadd.f32 %v3399, %v3400
    %v3402 = vrot.slane %v3401, 2
    %v3403 = vadd.f32 %v3401, %v3402
    %v3404 = vrot.slane %v3403, 1
    %v3405 = vadd.f32 %v3403, %v3404
    %v3406 = vmul.f32 %v3384, 0.015625
    %v3407 = vmul.f32 %v3405, 0.015625
    %v3410 = vsel %vm141, %v3407, %v3406
    %v3411 = vsel %vm86, %v3410, 0
    %3413 = vmatpush.msra.mxu0 0.0
    %3414 = vmatpush.msra.mxu0 0.0
    %3415 = vmatpush.msra.mxu0 0.0
    %3416 = vmatpush.msra.mxu0 0.0
    %3417 = vmatpush.msra.mxu0 0.0
    %3418 = vmatpush.msra.mxu0 0.0
    %3419 = vmatpush.msra.mxu0 0.0
    %3420 = vmatpush.msra.mxu0 0.0
    %v3421 = vand.u32 %v3083, 4294901760
    %3422 = vmatpush.msra.mxu0 %v3421
    %v3423 = vand.u32 %v3082, 4294901760
    %3424 = vmatpush.msra.mxu0 %v3423
    %v3425 = vand.u32 %v3081, 4294901760
    %3426 = vmatpush.msra.mxu0 %v3425
    %v3427 = vand.u32 %v3080, 4294901760
    %3428 = vmatpush.msra.mxu0 %v3427
    %v3429 = vand.u32 %v3079, 4294901760
    %3430 = vmatpush.msra.mxu0 %v3429
    %v3431 = vand.u32 %v3078, 4294901760
    %3432 = vmatpush.msra.mxu0 %v3431
    %v3433 = vand.u32 %v3077, 4294901760
    %3434 = vmatpush.msra.mxu0 %v3433
    %v3435 = vand.u32 %v3076, 4294901760
    %3436 = vmatpush.msra.mxu0 %v3435
    %v3437 = vand.u32 %v3411, 4294901760
    %v3438 = vsub.f32 %v3411, %v3437
    %v3439 = vand.u32 %v3438, 4294901760
    %v3440 = vsub.f32 %v3438, %v3439
    %v3441 = vand.u32 %v3440, 4294901760
    %3442 = vmatmul.f32.gmra.mxu0 %v3441
    %v3443 = vpop.f32.mrf.mxu0
    %v3444 = vadd.f32 1e-05, %v3443
    %3445 = vdwg.mxu0
    %3446 = vmatpush.msra.mxu0 0.0
    %3447 = vmatpush.msra.mxu0 0.0
    %3448 = vmatpush.msra.mxu0 0.0
    %3449 = vmatpush.msra.mxu0 0.0
    %3450 = vmatpush.msra.mxu0 0.0
    %3451 = vmatpush.msra.mxu0 0.0
    %3452 = vmatpush.msra.mxu0 0.0
    %3453 = vmatpush.msra.mxu0 0.0
    %v3454 = vand.u32 %v3083, 4294901760
    %v3455 = vsub.f32 %v3083, %v3454
    %v3456 = vand.u32 %v3455, 4294901760
    %v3457 = vsub.f32 %v3455, %v3456
    %v3458 = vand.u32 %v3457, 4294901760
    %3459 = vmatpush.msra.mxu0 %v3458
    %v3460 = vand.u32 %v3082, 4294901760
    %v3461 = vsub.f32 %v3082, %v3460
    %v3462 = vand.u32 %v3461, 4294901760
    %v3463 = vsub.f32 %v3461, %v3462
    %v3464 = vand.u32 %v3463, 4294901760
    %3465 = vmatpush.msra.mxu0 %v3464
    %v3466 = vand.u32 %v3081, 4294901760
    %v3467 = vsub.f32 %v3081, %v3466
    %v3468 = vand.u32 %v3467, 4294901760
    %v3469 = vsub.f32 %v3467, %v3468
    %v3470 = vand.u32 %v3469, 4294901760
    %3471 = vmatpush.msra.mxu0 %v3470
    %v3472 = vand.u32 %v3080, 4294901760
    %v3473 = vsub.f32 %v3080, %v3472
    %v3474 = vand.u32 %v3473, 4294901760
    %v3475 = vsub.f32 %v3473, %v3474
    %v3476 = vand.u32 %v3475, 4294901760
    %3477 = vmatpush.msra.mxu0 %v3476
    %v3478 = vand.u32 %v3079, 4294901760
    %v3479 = vsub.f32 %v3079, %v3478
    %v3480 = vand.u32 %v3479, 4294901760
    %v3481 = vsub.f32 %v3479, %v3480
    %v3482 = vand.u32 %v3481, 4294901760
    %3483 = vmatpush.msra.mxu0 %v3482
    %v3484 = vand.u32 %v3078, 4294901760
    %v3485 = vsub.f32 %v3078, %v3484
    %v3486 = vand.u32 %v3485, 4294901760
    %v3487 = vsub.f32 %v3485, %v3486
    %v3488 = vand.u32 %v3487, 4294901760
    %3489 = vmatpush.msra.mxu0 %v3488
    %v3490 = vand.u32 %v3077, 4294901760
    %v3491 = vsub.f32 %v3077, %v3490
    %v3492 = vand.u32 %v3491, 4294901760
    %v3493 = vsub.f32 %v3491, %v3492
    %v3494 = vand.u32 %v3493, 4294901760
    %3495 = vmatpush.msra.mxu0 %v3494
    %v3496 = vand.u32 %v3076, 4294901760
    %v3497 = vsub.f32 %v3076, %v3496
    %v3498 = vand.u32 %v3497, 4294901760
    %v3499 = vsub.f32 %v3497, %v3498
    %v3500 = vand.u32 %v3499, 4294901760
    %3501 = vmatpush.msra.mxu0 %v3500
    %v3502 = vand.u32 %v3411, 4294901760
    %3503 = vmatmul.f32.gmra.mxu0 %v3502
    %v3504 = vpop.f32.mrf.mxu0
    %v3505 = vadd.f32 %v3444, %v3504
    %3506 = vdwg.mxu0
    %3507 = vmatpush.msra.mxu0 0.0
    %3508 = vmatpush.msra.mxu0 0.0
    %3509 = vmatpush.msra.mxu0 0.0
    %3510 = vmatpush.msra.mxu0 0.0
    %3511 = vmatpush.msra.mxu0 0.0
    %3512 = vmatpush.msra.mxu0 0.0
    %3513 = vmatpush.msra.mxu0 0.0
    %3514 = vmatpush.msra.mxu0 0.0
    %v3515 = vand.u32 %v3083, 4294901760
    %v3516 = vsub.f32 %v3083, %v3515
    %3517 = vmatpush.msra.mxu0 %v3516
    %v3518 = vand.u32 %v3082, 4294901760
    %v3519 = vsub.f32 %v3082, %v3518
    %3520 = vmatpush.msra.mxu0 %v3519
    %v3521 = vand.u32 %v3081, 4294901760
    %v3522 = vsub.f32 %v3081, %v3521
    %3523 = vmatpush.msra.mxu0 %v3522
    %v3524 = vand.u32 %v3080, 4294901760
    %v3525 = vsub.f32 %v3080, %v3524
    %3526 = vmatpush.msra.mxu0 %v3525
    %v3527 = vand.u32 %v3079, 4294901760
    %v3528 = vsub.f32 %v3079, %v3527
    %3529 = vmatpush.msra.mxu0 %v3528
    %v3530 = vand.u32 %v3078, 4294901760
    %v3531 = vsub.f32 %v3078, %v3530
    %3532 = vmatpush.msra.mxu0 %v3531
    %v3533 = vand.u32 %v3077, 4294901760
    %v3534 = vsub.f32 %v3077, %v3533
    %3535 = vmatpush.msra.mxu0 %v3534
    %v3536 = vand.u32 %v3076, 4294901760
    %v3537 = vsub.f32 %v3076, %v3536
    %3538 = vmatpush.msra.mxu0 %v3537
    %v3539 = vand.u32 %v3411, 4294901760
    %v3540 = vsub.f32 %v3411, %v3539
    %3541 = vmatmul.f32.gmra.mxu0 %v3540
    %v3542 = vpop.f32.mrf.mxu0
    %v3543 = vadd.f32 %v3505, %v3542
    %3544 = vdwg.mxu0
    %3545 = vmatpush.msra.mxu0 0.0
    %3546 = vmatpush.msra.mxu0 0.0
    %3547 = vmatpush.msra.mxu0 0.0
    %3548 = vmatpush.msra.mxu0 0.0
    %3549 = vmatpush.msra.mxu0 0.0
    %3550 = vmatpush.msra.mxu0 0.0
    %3551 = vmatpush.msra.mxu0 0.0
    %3552 = vmatpush.msra.mxu0 0.0
    %v3553 = vand.u32 %v3083, 4294901760
    %3554 = vmatpush.msra.mxu0 %v3553
    %v3555 = vand.u32 %v3082, 4294901760
    %3556 = vmatpush.msra.mxu0 %v3555
    %v3557 = vand.u32 %v3081, 4294901760
    %3558 = vmatpush.msra.mxu0 %v3557
    %v3559 = vand.u32 %v3080, 4294901760
    %3560 = vmatpush.msra.mxu0 %v3559
    %v3561 = vand.u32 %v3079, 4294901760
    %3562 = vmatpush.msra.mxu0 %v3561
    %v3563 = vand.u32 %v3078, 4294901760
    %3564 = vmatpush.msra.mxu0 %v3563
    %v3565 = vand.u32 %v3077, 4294901760
    %3566 = vmatpush.msra.mxu0 %v3565
    %v3567 = vand.u32 %v3076, 4294901760
    %3568 = vmatpush.msra.mxu0 %v3567
    %v3569 = vand.u32 %v3411, 4294901760
    %v3570 = vsub.f32 %v3411, %v3569
    %v3571 = vand.u32 %v3570, 4294901760
    %3572 = vmatmul.f32.gmra.mxu0 %v3571
    %v3573 = vpop.f32.mrf.mxu0
    %v3574 = vadd.f32 %v3543, %v3573
    %3575 = vdwg.mxu0
    %3576 = vmatpush.msra.mxu0 0.0
    %3577 = vmatpush.msra.mxu0 0.0
    %3578 = vmatpush.msra.mxu0 0.0
    %3579 = vmatpush.msra.mxu0 0.0
    %3580 = vmatpush.msra.mxu0 0.0
    %3581 = vmatpush.msra.mxu0 0.0
    %3582 = vmatpush.msra.mxu0 0.0
    %3583 = vmatpush.msra.mxu0 0.0
    %v3584 = vand.u32 %v3083, 4294901760
    %v3585 = vsub.f32 %v3083, %v3584
    %v3586 = vand.u32 %v3585, 4294901760
    %3587 = vmatpush.msra.mxu0 %v3586
    %v3588 = vand.u32 %v3082, 4294901760
    %v3589 = vsub.f32 %v3082, %v3588
    %v3590 = vand.u32 %v3589, 4294901760
    %3591 = vmatpush.msra.mxu0 %v3590
    %v3592 = vand.u32 %v3081, 4294901760
    %v3593 = vsub.f32 %v3081, %v3592
    %v3594 = vand.u32 %v3593, 4294901760
    %3595 = vmatpush.msra.mxu0 %v3594
    %v3596 = vand.u32 %v3080, 4294901760
    %v3597 = vsub.f32 %v3080, %v3596
    %v3598 = vand.u32 %v3597, 4294901760
    %3599 = vmatpush.msra.mxu0 %v3598
    %v3600 = vand.u32 %v3079, 4294901760
    %v3601 = vsub.f32 %v3079, %v3600
    %v3602 = vand.u32 %v3601, 4294901760
    %3603 = vmatpush.msra.mxu0 %v3602
    %v3604 = vand.u32 %v3078, 4294901760
    %v3605 = vsub.f32 %v3078, %v3604
    %v3606 = vand.u32 %v3605, 4294901760
    %3607 = vmatpush.msra.mxu0 %v3606
    %v3608 = vand.u32 %v3077, 4294901760
    %v3609 = vsub.f32 %v3077, %v3608
    %v3610 = vand.u32 %v3609, 4294901760
    %3611 = vmatpush.msra.mxu0 %v3610
    %v3612 = vand.u32 %v3076, 4294901760
    %v3613 = vsub.f32 %v3076, %v3612
    %v3614 = vand.u32 %v3613, 4294901760
    %3615 = vmatpush.msra.mxu0 %v3614
    %v3616 = vand.u32 %v3411, 4294901760
    %3617 = vmatmul.f32.gmra.mxu0 %v3616
    %v3618 = vpop.f32.mrf.mxu0
    %v3619 = vadd.f32 %v3574, %v3618
    %3620 = vdwg.mxu0
    %3621 = vmatpush.msra.mxu0 0.0
    %3622 = vmatpush.msra.mxu0 0.0
    %3623 = vmatpush.msra.mxu0 0.0
    %3624 = vmatpush.msra.mxu0 0.0
    %3625 = vmatpush.msra.mxu0 0.0
    %3626 = vmatpush.msra.mxu0 0.0
    %3627 = vmatpush.msra.mxu0 0.0
    %3628 = vmatpush.msra.mxu0 0.0
    %v3629 = vand.u32 %v3083, 4294901760
    %3630 = vmatpush.msra.mxu0 %v3629
    %v3631 = vand.u32 %v3082, 4294901760
    %3632 = vmatpush.msra.mxu0 %v3631
    %v3633 = vand.u32 %v3081, 4294901760
    %3634 = vmatpush.msra.mxu0 %v3633
    %v3635 = vand.u32 %v3080, 4294901760
    %3636 = vmatpush.msra.mxu0 %v3635
    %v3637 = vand.u32 %v3079, 4294901760
    %3638 = vmatpush.msra.mxu0 %v3637
    %v3639 = vand.u32 %v3078, 4294901760
    %3640 = vmatpush.msra.mxu0 %v3639
    %v3641 = vand.u32 %v3077, 4294901760
    %3642 = vmatpush.msra.mxu0 %v3641
    %v3643 = vand.u32 %v3076, 4294901760
    %3644 = vmatpush.msra.mxu0 %v3643
    %v3645 = vand.u32 %v3411, 4294901760
    %3646 = vmatmul.f32.gmra.mxu0 %v3645
    %v3647 = vpop.f32.mrf.mxu0
    %v3648 = vadd.f32 %v3619, %v3647
    %3649 = vdwg.mxu0
    %v3650 = vrsqrt.pop %v3648
    %v3651 = vmul.f32 %v3650, %v3648
    %v3652 = vmul.f32 %v3651, %v3650
    %v3653 = vmul.f32 0.5, %v3652
    %v3654 = vsub.f32 1.5, %v3653
    %v3655 = vmul.f32 %v3650, %v3654
    %vm3656 = vweird.f32 %v3648
    %vm3657 = vweird.f32 %v3650
    %vm3658 = vmor %vm3656, %vm3657
    %v3659 = vsel %vm3658, %v3650, %v3655
    %v3660 = vld [vmem:[%s8] sm:$0x1]
    %v3662 = vperm.slane %v3660, 0
    %v3664 = vmul.f32 %v3662, %v3659
    %v3666 = vrot.slane %v3664, 1
    %v3667 = vperm.slane %v3664, 0
    %v3668 = vperm.slane %v3666, 0
    %v3671 = vmul.f32 %v3332, %v3667
    %v3672 = vmul.f32 %v3333, %v3667
    %v3673 = vmul.f32 %v3334, %v3667
    %v3674 = vmul.f32 %v3335, %v3667
    %v3675 = vmul.f32 %v3336, %v3667
    %v3676 = vmul.f32 %v3337, %v3667
    %v3677 = vmul.f32 %v3338, %v3667
    %v3678 = vmul.f32 %v3339, %v3667
    %v3679 = vmul.f32 %v3340, %v3668
    %v3680 = vmul.f32 %v3341, %v3668
    %v3681 = vmul.f32 %v3342, %v3668
    %v3682 = vmul.f32 %v3343, %v3668
    %v3683 = vmul.f32 %v3344, %v3668
    %v3684 = vmul.f32 %v3345, %v3668
    %v3685 = vmul.f32 %v3346, %v3668
    %v3686 = vmul.f32 %v3347, %v3668
    %v3687 = vld [vmem:[%s9] sm:$0x1]
    %v3689 = vperm.slane %v3687, 0
    %v3691 = vadd.f32 %v3671, %v3689
    %v3692 = vadd.f32 %v3672, %v3689
    %v3693 = vadd.f32 %v3673, %v3689
    %v3694 = vadd.f32 %v3674, %v3689
    %v3695 = vadd.f32 %v3675, %v3689
    %v3696 = vadd.f32 %v3676, %v3689
    %v3697 = vadd.f32 %v3677, %v3689
    %v3698 = vadd.f32 %v3678, %v3689
    %v3699 = vadd.f32 %v3679, %v3689
    %v3700 = vadd.f32 %v3680, %v3689
    %v3701 = vadd.f32 %v3681, %v3689
    %v3702 = vadd.f32 %v3682, %v3689
    %v3703 = vadd.f32 %v3683, %v3689
    %v3704 = vadd.f32 %v3684, %v3689
    %v3705 = vadd.f32 %v3685, %v3689
    %v3706 = vadd.f32 %v3686, %v3689
    %v3707 = vadd.f32 %v2831, 1.0
    %v3709 = vrot.slane %v3707, 1
    %v3710 = vadd.f32 %v2431, 1.0
    %v3712 = vrot.slane %v3710, 1
    %v3713 = vperm.slane %v3710, 0
    %v3714 = vperm.slane %v3712, 0
    %v3717 = vmul.f32 %v3691, %v3713
    %v3718 = vmul.f32 %v3692, %v3713
    %v3719 = vmul.f32 %v3693, %v3713
    %v3720 = vmul.f32 %v3694, %v3713
    %v3721 = vmul.f32 %v3695, %v3713
    %v3722 = vmul.f32 %v3696, %v3713
    %v3723 = vmul.f32 %v3697, %v3713
    %v3724 = vmul.f32 %v3698, %v3713
    %v3725 = vmul.f32 %v3699, %v3714
    %v3726 = vmul.f32 %v3700, %v3714
    %v3727 = vmul.f32 %v3701, %v3714
    %v3728 = vmul.f32 %v3702, %v3714
    %v3729 = vmul.f32 %v3703, %v3714
    %v3730 = vmul.f32 %v3704, %v3714
    %v3731 = vmul.f32 %v3705, %v3714
    %v3732 = vmul.f32 %v3706, %v3714
    %v3734 = vrot.slane %v2630, 1
    %v3735 = vperm.slane %v2630, 0
    %v3736 = vperm.slane %v3734, 0
    %v3739 = vadd.f32 %v3717, %v3735
    %v3740 = vadd.f32 %v3718, %v3735
    %v3741 = vadd.f32 %v3719, %v3735
    %v3742 = vadd.f32 %v3720, %v3735
    %v3743 = vadd.f32 %v3721, %v3735
    %v3744 = vadd.f32 %v3722, %v3735
    %v3745 = vadd.f32 %v3723, %v3735
    %v3746 = vadd.f32 %v3724, %v3735
    %v3747 = vadd.f32 %v3725, %v3736
    %v3748 = vadd.f32 %v3726, %v3736
    %v3749 = vadd.f32 %v3727, %v3736
    %v3750 = vadd.f32 %v3728, %v3736
    %v3751 = vadd.f32 %v3729, %v3736
    %v3752 = vadd.f32 %v3730, %v3736
    %v3753 = vadd.f32 %v3731, %v3736
    %v3754 = vadd.f32 %v3732, %v3736
    %v3755 = vperm.slane %v3707, 0
    %v3756 = vperm.slane %v3709, 0
    %v3759 = vmul.f32 %v3755, %v3739
    %v3760 = vmul.f32 %v3755, %v3740
    %v3761 = vmul.f32 %v3755, %v3741
    %v3762 = vmul.f32 %v3755, %v3742
    %v3763 = vmul.f32 %v3755, %v3743
    %v3764 = vmul.f32 %v3755, %v3744
    %v3765 = vmul.f32 %v3755, %v3745
    %v3766 = vmul.f32 %v3755, %v3746
    %v3767 = vmul.f32 %v3756, %v3747
    %v3768 = vmul.f32 %v3756, %v3748
    %v3769 = vmul.f32 %v3756, %v3749
    %v3770 = vmul.f32 %v3756, %v3750
    %v3771 = vmul.f32 %v3756, %v3751
    %v3772 = vmul.f32 %v3756, %v3752
    %v3773 = vmul.f32 %v3756, %v3753
    %v3774 = vmul.f32 %v3756, %v3754
    %v3776 = vrot.slane %v3030, 1
    %v3777 = vperm.slane %v3030, 0
    %v3778 = vperm.slane %v3776, 0
    %v3781 = vadd.f32 %v3759, %v3777
    %v3782 = vadd.f32 %v3760, %v3777
    %v3783 = vadd.f32 %v3761, %v3777
    %v3784 = vadd.f32 %v3762, %v3777
    %v3785 = vadd.f32 %v3763, %v3777
    %v3786 = vadd.f32 %v3764, %v3777
    %v3787 = vadd.f32 %v3765, %v3777
    %v3788 = vadd.f32 %v3766, %v3777
    %v3789 = vadd.f32 %v3767, %v3778
    %v3790 = vadd.f32 %v3768, %v3778
    %v3791 = vadd.f32 %v3769, %v3778
    %v3792 = vadd.f32 %v3770, %v3778
    %v3793 = vadd.f32 %v3771, %v3778
    %v3794 = vadd.f32 %v3772, %v3778
    %v3795 = vadd.f32 %v3773, %v3778
    %v3796 = vadd.f32 %v3774, %v3778
    %v3797 = vxor.u32 %v3781, 2147483648
    %v3798 = vxor.u32 %v3782, 2147483648
    %v3799 = vxor.u32 %v3783, 2147483648
    %v3800 = vxor.u32 %v3784, 2147483648
    %v3801 = vxor.u32 %v3785, 2147483648
    %v3802 = vxor.u32 %v3786, 2147483648
    %v3803 = vxor.u32 %v3787, 2147483648
    %v3804 = vxor.u32 %v3788, 2147483648
    %v3805 = vxor.u32 %v3789, 2147483648
    %v3806 = vxor.u32 %v3790, 2147483648
    %v3807 = vxor.u32 %v3791, 2147483648
    %v3808 = vxor.u32 %v3792, 2147483648
    %v3809 = vxor.u32 %v3793, 2147483648
    %v3810 = vxor.u32 %v3794, 2147483648
    %v3811 = vxor.u32 %v3795, 2147483648
    %v3812 = vxor.u32 %v3796, 2147483648
    %v3813 = vmul.f32 %v3797, 1.442695
    %v3814 = vpow.pop %v3813
    %v3815 = vmul.f32 %v3798, 1.442695
    %v3816 = vpow.pop %v3815
    %v3817 = vmul.f32 %v3799, 1.442695
    %v3818 = vpow.pop %v3817
    %v3819 = vmul.f32 %v3800, 1.442695
    %v3820 = vpow.pop %v3819
    %v3821 = vmul.f32 %v3801, 1.442695
    %v3822 = vpow.pop %v3821
    %v3823 = vmul.f32 %v3802, 1.442695
    %v3824 = vpow.pop %v3823
    %v3825 = vmul.f32 %v3803, 1.442695
    %v3826 = vpow.pop %v3825
    %v3827 = vmul.f32 %v3804, 1.442695
    %v3828 = vpow.pop %v3827
    %v3829 = vmul.f32 %v3805, 1.442695
    %v3830 = vpow.pop %v3829
    %v3831 = vmul.f32 %v3806, 1.442695
    %v3832 = vpow.pop %v3831
    %v3833 = vmul.f32 %v3807, 1.442695
    %v3834 = vpow.pop %v3833
    %v3835 = vmul.f32 %v3808, 1.442695
    %v3836 = vpow.pop %v3835
    %v3837 = vmul.f32 %v3809, 1.442695
    %v3838 = vpow.pop %v3837
    %v3839 = vmul.f32 %v3810, 1.442695
    %v3840 = vpow.pop %v3839
    %v3841 = vmul.f32 %v3811, 1.442695
    %v3842 = vpow.pop %v3841
    %v3843 = vmul.f32 %v3812, 1.442695
    %v3844 = vpow.pop %v3843
    %v3845 = vadd.f32 %v3814, 1.0
    %v3846 = vadd.f32 %v3816, 1.0
    %v3847 = vadd.f32 %v3818, 1.0
    %v3848 = vadd.f32 %v3820, 1.0
    %v3849 = vadd.f32 %v3822, 1.0
    %v3850 = vadd.f32 %v3824, 1.0
    %v3851 = vadd.f32 %v3826, 1.0
    %v3852 = vadd.f32 %v3828, 1.0
    %v3853 = vadd.f32 %v3830, 1.0
    %v3854 = vadd.f32 %v3832, 1.0
    %v3855 = vadd.f32 %v3834, 1.0
    %v3856 = vadd.f32 %v3836, 1.0
    %v3857 = vadd.f32 %v3838, 1.0
    %v3858 = vadd.f32 %v3840, 1.0
    %v3859 = vadd.f32 %v3842, 1.0
    %v3860 = vadd.f32 %v3844, 1.0
    %v3861 = vrcp.pop %v3845
    %v3862 = vmul.f32 %v3845, %v3861
    %v3863 = vsub.f32 1.0, %v3862
    %v3864 = vmul.f32 %v3861, %v3863
    %v3865 = vadd.f32 %v3861, %v3864
    %vm3866 = vweird.f32 %v3845
    %vm3867 = vweird.f32 %v3861
    %vm3868 = vmor %vm3866, %vm3867
    %v3869 = vsel %vm3868, %v3861, %v3865
    %v3870 = vand.u32 2147483647, %v3845
    %vm3871 = vcmp.eq.f32.partialorder %v3870, 8.507059e+37
    %v3872 = vand.u32 %v3845, 2147483648
    %v3873 = vor.u32 1.1754944e-38, %v3872
    %v3874 = vsel %vm3871, %v3873, %v3869
    %v3875 = vmul.f32 1.0, %v3874
    %v3876 = vrcp.pop %v3846
    %v3877 = vmul.f32 %v3846, %v3876
    %v3878 = vsub.f32 1.0, %v3877
    %v3879 = vmul.f32 %v3876, %v3878
    %v3880 = vadd.f32 %v3876, %v3879
    %vm3881 = vweird.f32 %v3846
    %vm3882 = vweird.f32 %v3876
    %vm3883 = vmor %vm3881, %vm3882
    %v3884 = vsel %vm3883, %v3876, %v3880
    %v3885 = vand.u32 2147483647, %v3846
    %vm3886 = vcmp.eq.f32.partialorder %v3885, 8.507059e+37
    %v3887 = vand.u32 %v3846, 2147483648
    %v3888 = vor.u32 1.1754944e-38, %v3887
    %v3889 = vsel %vm3886, %v3888, %v3884
    %v3890 = vmul.f32 1.0, %v3889
    %v3891 = vrcp.pop %v3847
    %v3892 = vmul.f32 %v3847, %v3891
    %v3893 = vsub.f32 1.0, %v3892
    %v3894 = vmul.f32 %v3891, %v3893
    %v3895 = vadd.f32 %v3891, %v3894
    %vm3896 = vweird.f32 %v3847
    %vm3897 = vweird.f32 %v3891
    %vm3898 = vmor %vm3896, %vm3897
    %v3899 = vsel %vm3898, %v3891, %v3895
    %v3900 = vand.u32 2147483647, %v3847
    %vm3901 = vcmp.eq.f32.partialorder %v3900, 8.507059e+37
    %v3902 = vand.u32 %v3847, 2147483648
    %v3903 = vor.u32 1.1754944e-38, %v3902
    %v3904 = vsel %vm3901, %v3903, %v3899
    %v3905 = vmul.f32 1.0, %v3904
    %v3906 = vrcp.pop %v3848
    %v3907 = vmul.f32 %v3848, %v3906
    %v3908 = vsub.f32 1.0, %v3907
    %v3909 = vmul.f32 %v3906, %v3908
    %v3910 = vadd.f32 %v3906, %v3909
    %vm3911 = vweird.f32 %v3848
    %vm3912 = vweird.f32 %v3906
    %vm3913 = vmor %vm3911, %vm3912
    %v3914 = vsel %vm3913, %v3906, %v3910
    %v3915 = vand.u32 2147483647, %v3848
    %vm3916 = vcmp.eq.f32.partialorder %v3915, 8.507059e+37
    %v3917 = vand.u32 %v3848, 2147483648
    %v3918 = vor.u32 1.1754944e-38, %v3917
    %v3919 = vsel %vm3916, %v3918, %v3914
    %v3920 = vmul.f32 1.0, %v3919
    %v3921 = vrcp.pop %v3849
    %v3922 = vmul.f32 %v3849, %v3921
    %v3923 = vsub.f32 1.0, %v3922
    %v3924 = vmul.f32 %v3921, %v3923
    %v3925 = vadd.f32 %v3921, %v3924
    %vm3926 = vweird.f32 %v3849
    %vm3927 = vweird.f32 %v3921
    %vm3928 = vmor %vm3926, %vm3927
    %v3929 = vsel %vm3928, %v3921, %v3925
    %v3930 = vand.u32 2147483647, %v3849
    %vm3931 = vcmp.eq.f32.partialorder %v3930, 8.507059e+37
    %v3932 = vand.u32 %v3849, 2147483648
    %v3933 = vor.u32 1.1754944e-38, %v3932
    %v3934 = vsel %vm3931, %v3933, %v3929
    %v3935 = vmul.f32 1.0, %v3934
    %v3936 = vrcp.pop %v3850
    %v3937 = vmul.f32 %v3850, %v3936
    %v3938 = vsub.f32 1.0, %v3937
    %v3939 = vmul.f32 %v3936, %v3938
    %v3940 = vadd.f32 %v3936, %v3939
    %vm3941 = vweird.f32 %v3850
    %vm3942 = vweird.f32 %v3936
    %vm3943 = vmor %vm3941, %vm3942
    %v3944 = vsel %vm3943, %v3936, %v3940
    %v3945 = vand.u32 2147483647, %v3850
    %vm3946 = vcmp.eq.f32.partialorder %v3945, 8.507059e+37
    %v3947 = vand.u32 %v3850, 2147483648
    %v3948 = vor.u32 1.1754944e-38, %v3947
    %v3949 = vsel %vm3946, %v3948, %v3944
    %v3950 = vmul.f32 1.0, %v3949
    %v3951 = vrcp.pop %v3851
    %v3952 = vmul.f32 %v3851, %v3951
    %v3953 = vsub.f32 1.0, %v3952
    %v3954 = vmul.f32 %v3951, %v3953
    %v3955 = vadd.f32 %v3951, %v3954
    %vm3956 = vweird.f32 %v3851
    %vm3957 = vweird.f32 %v3951
    %vm3958 = vmor %vm3956, %vm3957
    %v3959 = vsel %vm3958, %v3951, %v3955
    %v3960 = vand.u32 2147483647, %v3851
    %vm3961 = vcmp.eq.f32.partialorder %v3960, 8.507059e+37
    %v3962 = vand.u32 %v3851, 2147483648
    %v3963 = vor.u32 1.1754944e-38, %v3962
    %v3964 = vsel %vm3961, %v3963, %v3959
    %v3965 = vmul.f32 1.0, %v3964
    %v3966 = vrcp.pop %v3852
    %v3967 = vmul.f32 %v3852, %v3966
    %v3968 = vsub.f32 1.0, %v3967
    %v3969 = vmul.f32 %v3966, %v3968
    %v3970 = vadd.f32 %v3966, %v3969
    %vm3971 = vweird.f32 %v3852
    %vm3972 = vweird.f32 %v3966
    %vm3973 = vmor %vm3971, %vm3972
    %v3974 = vsel %vm3973, %v3966, %v3970
    %v3975 = vand.u32 2147483647, %v3852
    %vm3976 = vcmp.eq.f32.partialorder %v3975, 8.507059e+37
    %v3977 = vand.u32 %v3852, 2147483648
    %v3978 = vor.u32 1.1754944e-38, %v3977
    %v3979 = vsel %vm3976, %v3978, %v3974
    %v3980 = vmul.f32 1.0, %v3979
    %v3981 = vrcp.pop %v3853
    %v3982 = vmul.f32 %v3853, %v3981
    %v3983 = vsub.f32 1.0, %v3982
    %v3984 = vmul.f32 %v3981, %v3983
    %v3985 = vadd.f32 %v3981, %v3984
    %vm3986 = vweird.f32 %v3853
    %vm3987 = vweird.f32 %v3981
    %vm3988 = vmor %vm3986, %vm3987
    %v3989 = vsel %vm3988, %v3981, %v3985
    %v3990 = vand.u32 2147483647, %v3853
    %vm3991 = vcmp.eq.f32.partialorder %v3990, 8.507059e+37
    %v3992 = vand.u32 %v3853, 2147483648
    %v3993 = vor.u32 1.1754944e-38, %v3992
    %v3994 = vsel %vm3991, %v3993, %v3989
    %v3995 = vmul.f32 1.0, %v3994
    %v3996 = vrcp.pop %v3854
    %v3997 = vmul.f32 %v3854, %v3996
    %v3998 = vsub.f32 1.0, %v3997
    %v3999 = vmul.f32 %v3996, %v3998
    %v4000 = vadd.f32 %v3996, %v3999
    %vm4001 = vweird.f32 %v3854
    %vm4002 = vweird.f32 %v3996
    %vm4003 = vmor %vm4001, %vm4002
    %v4004 = vsel %vm4003, %v3996, %v4000
    %v4005 = vand.u32 2147483647, %v3854
    %vm4006 = vcmp.eq.f32.partialorder %v4005, 8.507059e+37
    %v4007 = vand.u32 %v3854, 2147483648
    %v4008 = vor.u32 1.1754944e-38, %v4007
    %v4009 = vsel %vm4006, %v4008, %v4004
    %v4010 = vmul.f32 1.0, %v4009
    %v4011 = vrcp.pop %v3855
    %v4012 = vmul.f32 %v3855, %v4011
    %v4013 = vsub.f32 1.0, %v4012
    %v4014 = vmul.f32 %v4011, %v4013
    %v4015 = vadd.f32 %v4011, %v4014
    %vm4016 = vweird.f32 %v3855
    %vm4017 = vweird.f32 %v4011
    %vm4018 = vmor %vm4016, %vm4017
    %v4019 = vsel %vm4018, %v4011, %v4015
    %v4020 = vand.u32 2147483647, %v3855
    %vm4021 = vcmp.eq.f32.partialorder %v4020, 8.507059e+37
    %v4022 = vand.u32 %v3855, 2147483648
    %v4023 = vor.u32 1.1754944e-38, %v4022
    %v4024 = vsel %vm4021, %v4023, %v4019
    %v4025 = vmul.f32 1.0, %v4024
    %v4026 = vrcp.pop %v3856
    %v4027 = vmul.f32 %v3856, %v4026
    %v4028 = vsub.f32 1.0, %v4027
    %v4029 = vmul.f32 %v4026, %v4028
    %v4030 = vadd.f32 %v4026, %v4029
    %vm4031 = vweird.f32 %v3856
    %vm4032 = vweird.f32 %v4026
    %vm4033 = vmor %vm4031, %vm4032
    %v4034 = vsel %vm4033, %v4026, %v4030
    %v4035 = vand.u32 2147483647, %v3856
    %vm4036 = vcmp.eq.f32.partialorder %v4035, 8.507059e+37
    %v4037 = vand.u32 %v3856, 2147483648
    %v4038 = vor.u32 1.1754944e-38, %v4037
    %v4039 = vsel %vm4036, %v4038, %v4034
    %v4040 = vmul.f32 1.0, %v4039
    %v4041 = vrcp.pop %v3857
    %v4042 = vmul.f32 %v3857, %v4041
    %v4043 = vsub.f32 1.0, %v4042
    %v4044 = vmul.f32 %v4041, %v4043
    %v4045 = vadd.f32 %v4041, %v4044
    %vm4046 = vweird.f32 %v3857
    %vm4047 = vweird.f32 %v4041
    %vm4048 = vmor %vm4046, %vm4047
    %v4049 = vsel %vm4048, %v4041, %v4045
    %v4050 = vand.u32 2147483647, %v3857
    %vm4051 = vcmp.eq.f32.partialorder %v4050, 8.507059e+37
    %v4052 = vand.u32 %v3857, 2147483648
    %v4053 = vor.u32 1.1754944e-38, %v4052
    %v4054 = vsel %vm4051, %v4053, %v4049
    %v4055 = vmul.f32 1.0, %v4054
    %v4056 = vrcp.pop %v3858
    %v4057 = vmul.f32 %v3858, %v4056
    %v4058 = vsub.f32 1.0, %v4057
    %v4059 = vmul.f32 %v4056, %v4058
    %v4060 = vadd.f32 %v4056, %v4059
    %vm4061 = vweird.f32 %v3858
    %vm4062 = vweird.f32 %v4056
    %vm4063 = vmor %vm4061, %vm4062
    %v4064 = vsel %vm4063, %v4056, %v4060
    %v4065 = vand.u32 2147483647, %v3858
    %vm4066 = vcmp.eq.f32.partialorder %v4065, 8.507059e+37
    %v4067 = vand.u32 %v3858, 2147483648
    %v4068 = vor.u32 1.1754944e-38, %v4067
    %v4069 = vsel %vm4066, %v4068, %v4064
    %v4070 = vmul.f32 1.0, %v4069
    %v4071 = vrcp.pop %v3859
    %v4072 = vmul.f32 %v3859, %v4071
    %v4073 = vsub.f32 1.0, %v4072
    %v4074 = vmul.f32 %v4071, %v4073
    %v4075 = vadd.f32 %v4071, %v4074
    %vm4076 = vweird.f32 %v3859
    %vm4077 = vweird.f32 %v4071
    %vm4078 = vmor %vm4076, %vm4077
    %v4079 = vsel %vm4078, %v4071, %v4075
    %v4080 = vand.u32 2147483647, %v3859
    %vm4081 = vcmp.eq.f32.partialorder %v4080, 8.507059e+37
    %v4082 = vand.u32 %v3859, 2147483648
    %v4083 = vor.u32 1.1754944e-38, %v4082
    %v4084 = vsel %vm4081, %v4083, %v4079
    %v4085 = vmul.f32 1.0, %v4084
    %v4086 = vrcp.pop %v3860
    %v4087 = vmul.f32 %v3860, %v4086
    %v4088 = vsub.f32 1.0, %v4087
    %v4089 = vmul.f32 %v4086, %v4088
    %v4090 = vadd.f32 %v4086, %v4089
    %vm4091 = vweird.f32 %v3860
    %vm4092 = vweird.f32 %v4086
    %vm4093 = vmor %vm4091, %vm4092
    %v4094 = vsel %vm4093, %v4086, %v4090
    %v4095 = vand.u32 2147483647, %v3860
    %vm4096 = vcmp.eq.f32.partialorder %v4095, 8.507059e+37
    %v4097 = vand.u32 %v3860, 2147483648
    %v4098 = vor.u32 1.1754944e-38, %v4097
    %v4099 = vsel %vm4096, %v4098, %v4094
    %v4100 = vmul.f32 1.0, %v4099
    %v4101 = vmul.f32 %v3781, %v3875
    %v4102 = vmul.f32 %v3782, %v3890
    %v4103 = vmul.f32 %v3783, %v3905
    %v4104 = vmul.f32 %v3784, %v3920
    %v4105 = vmul.f32 %v3785, %v3935
    %v4106 = vmul.f32 %v3786, %v3950
    %v4107 = vmul.f32 %v3787, %v3965
    %v4108 = vmul.f32 %v3788, %v3980
    %v4109 = vmul.f32 %v3789, %v3995
    %v4110 = vmul.f32 %v3790, %v4010
    %v4111 = vmul.f32 %v3791, %v4025
    %v4112 = vmul.f32 %v3792, %v4040
    %v4113 = vmul.f32 %v3793, %v4055
    %v4114 = vmul.f32 %v3794, %v4070
    %v4115 = vmul.f32 %v3795, %v4085
    %v4116 = vmul.f32 %v3796, %v4100
    %v4133 = vrot.slane %v4101, 7
    %v4134 = vrot.slane %v4102, 7
    %v4135 = vrot.slane %v4103, 7
    %v4136 = vrot.slane %v4104, 7
    %v4137 = vrot.slane %v4105, 7
    %v4138 = vrot.slane %v4106, 7
    %v4139 = vrot.slane %v4107, 7
    %v4140 = vrot.slane %v4108, 7
    %v4141 = vrot.slane %v4109, 7
    %v4142 = vrot.slane %v4110, 7
    %v4143 = vrot.slane %v4111, 7
    %v4144 = vrot.slane %v4112, 7
    %v4145 = vrot.slane %v4113, 7
    %v4146 = vrot.slane %v4114, 7
    %v4147 = vrot.slane %v4115, 7
    %v4148 = vrot.slane %v4116, 7
    %v4165 = vsel %vm1134, 0.0, %v4133
    %v4166 = vsel %vm1134, 0.0, %v4134
    %v4167 = vsel %vm1134, 0.0, %v4135
    %v4168 = vsel %vm1134, 0.0, %v4136
    %v4169 = vsel %vm1134, 0.0, %v4137
    %v4170 = vsel %vm1134, 0.0, %v4138
    %v4171 = vsel %vm1134, 0.0, %v4139
    %v4172 = vsel %vm1134, 0.0, %v4140
    %v4173 = vsel %vm1134, 0.0, %v4141
    %v4174 = vsel %vm1134, 0.0, %v4142
    %v4175 = vsel %vm1134, 0.0, %v4143
    %v4176 = vsel %vm1134, 0.0, %v4144
    %v4177 = vsel %vm1134, 0.0, %v4145
    %v4178 = vsel %vm1134, 0.0, %v4146
    %v4179 = vsel %vm1134, 0.0, %v4147
    %v4180 = vsel %vm1134, 0.0, %v4148
    %v4181 = vsel %vm1134, %v4133, 0.0
    %v4182 = vsel %vm1134, %v4134, 0.0
    %v4183 = vsel %vm1134, %v4135, 0.0
    %v4184 = vsel %vm1134, %v4136, 0.0
    %v4185 = vsel %vm1134, %v4137, 0.0
    %v4186 = vsel %vm1134, %v4138, 0.0
    %v4187 = vsel %vm1134, %v4139, 0.0
    %v4188 = vsel %vm1134, %v4140, 0.0
    %v4189 = vsel %vm1134, %v4141, 0.0
    %v4190 = vsel %vm1134, %v4142, 0.0
    %v4191 = vsel %vm1134, %v4143, 0.0
    %v4192 = vsel %vm1134, %v4144, 0.0
    %v4193 = vsel %vm1134, %v4145, 0.0
    %v4194 = vsel %vm1134, %v4146, 0.0
    %v4195 = vsel %vm1134, %v4147, 0.0
    %v4196 = vsel %vm1134, %v4148, 0.0
    %v4225 = vrot.slane %v4165, 1
    %v4226 = vrot.slane %v4181, 1
    %v4227 = vsel %vm1199, %v4225, %v4226
    %v4228 = vrot.slane %v4166, 1
    %v4229 = vrot.slane %v4182, 1
    %v4230 = vsel %vm1199, %v4228, %v4229
    %v4231 = vrot.slane %v4167, 1
    %v4232 = vrot.slane %v4183, 1
    %v4233 = vsel %vm1199, %v4231, %v4232
    %v4234 = vrot.slane %v4168, 1
    %v4235 = vrot.slane %v4184, 1
    %v4236 = vsel %vm1199, %v4234, %v4235
    %v4237 = vrot.slane %v4169, 1
    %v4238 = vrot.slane %v4185, 1
    %v4239 = vsel %vm1199, %v4237, %v4238
    %v4240 = vrot.slane %v4170, 1
    %v4241 = vrot.slane %v4186, 1
    %v4242 = vsel %vm1199, %v4240, %v4241
    %v4243 = vrot.slane %v4171, 1
    %v4244 = vrot.slane %v4187, 1
    %v4245 = vsel %vm1199, %v4243, %v4244
    %v4246 = vrot.slane %v4173, 1
    %v4247 = vrot.slane %v4189, 1
    %v4248 = vsel %vm1199, %v4246, %v4247
    %v4249 = vrot.slane %v4174, 1
    %v4250 = vrot.slane %v4190, 1
    %v4251 = vsel %vm1199, %v4249, %v4250
    %v4252 = vrot.slane %v4175, 1
    %v4253 = vrot.slane %v4191, 1
    %v4254 = vsel %vm1199, %v4252, %v4253
    %v4255 = vrot.slane %v4176, 1
    %v4256 = vrot.slane %v4192, 1
    %v4257 = vsel %vm1199, %v4255, %v4256
    %v4258 = vrot.slane %v4177, 1
    %v4259 = vrot.slane %v4193, 1
    %v4260 = vsel %vm1199, %v4258, %v4259
    %v4261 = vrot.slane %v4178, 1
    %v4262 = vrot.slane %v4194, 1
    %v4263 = vsel %vm1199, %v4261, %v4262
    %v4264 = vrot.slane %v4179, 1
    %v4265 = vrot.slane %v4195, 1
    %v4266 = vsel %vm1199, %v4264, %v4265
    %4267 = vrot.lane.b32.xlu0 %v4227, 64
    %v4268 = vpop.permute.xlu0 %4267
    %4269 = vrot.lane.b32.xlu0 %v4230, 64
    %v4270 = vpop.permute.xlu0 %4269
    %4271 = vrot.lane.b32.xlu0 %v4233, 64
    %v4272 = vpop.permute.xlu0 %4271
    %4273 = vrot.lane.b32.xlu0 %v4236, 64
    %v4274 = vpop.permute.xlu0 %4273
    %4275 = vrot.lane.b32.xlu0 %v4239, 64
    %v4276 = vpop.permute.xlu0 %4275
    %4277 = vrot.lane.b32.xlu0 %v4242, 64
    %v4278 = vpop.permute.xlu0 %4277
    %4279 = vrot.lane.b32.xlu0 %v4245, 64
    %v4280 = vpop.permute.xlu0 %4279
    %4281 = vrot.lane.b32.xlu0 %v4248, 64
    %v4282 = vpop.permute.xlu0 %4281
    %4283 = vrot.lane.b32.xlu0 %v4251, 64
    %v4284 = vpop.permute.xlu0 %4283
    %4285 = vrot.lane.b32.xlu0 %v4254, 64
    %v4286 = vpop.permute.xlu0 %4285
    %4287 = vrot.lane.b32.xlu0 %v4257, 64
    %v4288 = vpop.permute.xlu0 %4287
    %4289 = vrot.lane.b32.xlu0 %v4260, 64
    %v4290 = vpop.permute.xlu0 %4289
    %4291 = vrot.lane.b32.xlu0 %v4263, 64
    %v4292 = vpop.permute.xlu0 %4291
    %4293 = vrot.lane.b32.xlu0 %v4266, 64
    %v4294 = vpop.permute.xlu0 %4293
    %v4309 = vrot.slane %v4165, 2
    %v4310 = vrot.slane %v4181, 2
    %v4311 = vsel %vm1290, %v4309, %v4310
    %v4312 = vrot.slane %v4166, 2
    %v4313 = vrot.slane %v4182, 2
    %v4314 = vsel %vm1290, %v4312, %v4313
    %v4315 = vrot.slane %v4167, 2
    %v4316 = vrot.slane %v4183, 2
    %v4317 = vsel %vm1290, %v4315, %v4316
    %v4318 = vrot.slane %v4168, 2
    %v4319 = vrot.slane %v4184, 2
    %v4320 = vsel %vm1290, %v4318, %v4319
    %v4321 = vrot.slane %v4169, 2
    %v4322 = vrot.slane %v4185, 2
    %v4323 = vsel %vm1290, %v4321, %v4322
    %v4324 = vrot.slane %v4170, 2
    %v4325 = vrot.slane %v4186, 2
    %v4326 = vsel %vm1290, %v4324, %v4325
    %v4327 = vrot.slane %v4171, 2
    %v4328 = vrot.slane %v4187, 2
    %v4329 = vsel %vm1290, %v4327, %v4328
    %v4330 = vrot.slane %v4173, 2
    %v4331 = vrot.slane %v4189, 2
    %v4332 = vsel %vm1290, %v4330, %v4331
    %v4333 = vrot.slane %v4174, 2
    %v4334 = vrot.slane %v4190, 2
    %v4335 = vsel %vm1290, %v4333, %v4334
    %v4336 = vrot.slane %v4175, 2
    %v4337 = vrot.slane %v4191, 2
    %v4338 = vsel %vm1290, %v4336, %v4337
    %v4339 = vrot.slane %v4176, 2
    %v4340 = vrot.slane %v4192, 2
    %v4341 = vsel %vm1290, %v4339, %v4340
    %v4342 = vrot.slane %v4177, 2
    %v4343 = vrot.slane %v4193, 2
    %v4344 = vsel %vm1290, %v4342, %v4343
    %v4345 = vrot.slane %v4178, 2
    %v4346 = vrot.slane %v4194, 2
    %v4347 = vsel %vm1290, %v4345, %v4346
    %v4348 = vrot.slane %v4179, 2
    %v4349 = vrot.slane %v4195, 2
    %v4350 = vsel %vm1290, %v4348, %v4349
    %4367 = vrot.lane.b32.xlu0 %v4165, 64
    %v4368 = vpop.permute.xlu0 %4367
    %4369 = vrot.lane.b32.xlu0 %v4166, 64
    %v4370 = vpop.permute.xlu0 %4369
    %4371 = vrot.lane.b32.xlu0 %v4167, 64
    %v4372 = vpop.permute.xlu0 %4371
    %4373 = vrot.lane.b32.xlu0 %v4168, 64
    %v4374 = vpop.permute.xlu0 %4373
    %4375 = vrot.lane.b32.xlu0 %v4169, 64
    %v4376 = vpop.permute.xlu0 %4375
    %4377 = vrot.lane.b32.xlu0 %v4170, 64
    %v4378 = vpop.permute.xlu0 %4377
    %4379 = vrot.lane.b32.xlu0 %v4171, 64
    %v4380 = vpop.permute.xlu0 %4379
    %4381 = vrot.lane.b32.xlu0 %v4172, 64
    %v4382 = vpop.permute.xlu0 %4381
    %4383 = vrot.lane.b32.xlu0 %v4173, 64
    %v4384 = vpop.permute.xlu0 %4383
    %4385 = vrot.lane.b32.xlu0 %v4174, 64
    %v4386 = vpop.permute.xlu0 %4385
    %4387 = vrot.lane.b32.xlu0 %v4175, 64
    %v4388 = vpop.permute.xlu0 %4387
    %4389 = vrot.lane.b32.xlu0 %v4176, 64
    %v4390 = vpop.permute.xlu0 %4389
    %4391 = vrot.lane.b32.xlu0 %v4177, 64
    %v4392 = vpop.permute.xlu0 %4391
    %4393 = vrot.lane.b32.xlu0 %v4178, 64
    %v4394 = vpop.permute.xlu0 %4393
    %4395 = vrot.lane.b32.xlu0 %v4179, 64
    %v4396 = vpop.permute.xlu0 %4395
    %4397 = vrot.lane.b32.xlu0 %v4180, 64
    %v4398 = vpop.permute.xlu0 %4397
    %v4417 = vrot.slane %v4172, 1
    %v4418 = vrot.slane %v4188, 1
    %v4419 = vsel %vm1199, %v4417, %v4418
    %v4420 = vrot.slane %v4180, 1
    %v4421 = vrot.slane %v4196, 1
    %v4422 = vsel %vm1199, %v4420, %v4421
    %v4439 = vrot.slane %v4172, 2
    %v4440 = vrot.slane %v4188, 2
    %v4441 = vsel %vm1290, %v4439, %v4440
    %v4442 = vrot.slane %v4180, 2
    %v4443 = vrot.slane %v4196, 2
    %v4444 = vsel %vm1290, %v4442, %v4443
    %4445 = vrot.lane.b32.xlu0 %v4311, 64
    %v4446 = vpop.permute.xlu0 %4445
    %4447 = vrot.lane.b32.xlu0 %v4314, 64
    %v4448 = vpop.permute.xlu0 %4447
    %4449 = vrot.lane.b32.xlu0 %v4317, 64
    %v4450 = vpop.permute.xlu0 %4449
    %4451 = vrot.lane.b32.xlu0 %v4320, 64
    %v4452 = vpop.permute.xlu0 %4451
    %4453 = vrot.lane.b32.xlu0 %v4323, 64
    %v4454 = vpop.permute.xlu0 %4453
    %4455 = vrot.lane.b32.xlu0 %v4326, 64
    %v4456 = vpop.permute.xlu0 %4455
    %4457 = vrot.lane.b32.xlu0 %v4329, 64
    %v4458 = vpop.permute.xlu0 %4457
    %4459 = vrot.lane.b32.xlu0 %v4441, 64
    %v4460 = vpop.permute.xlu0 %4459
    %4461 = vrot.lane.b32.xlu0 %v4332, 64
    %v4462 = vpop.permute.xlu0 %4461
    %4463 = vrot.lane.b32.xlu0 %v4335, 64
    %v4464 = vpop.permute.xlu0 %4463
    %4465 = vrot.lane.b32.xlu0 %v4338, 64
    %v4466 = vpop.permute.xlu0 %4465
    %4467 = vrot.lane.b32.xlu0 %v4341, 64
    %v4468 = vpop.permute.xlu0 %4467
    %4469 = vrot.lane.b32.xlu0 %v4344, 64
    %v4470 = vpop.permute.xlu0 %4469
    %4471 = vrot.lane.b32.xlu0 %v4347, 64
    %v4472 = vpop.permute.xlu0 %4471
    %4473 = vrot.lane.b32.xlu0 %v4350, 64
    %v4474 = vpop.permute.xlu0 %4473
    %4475 = vrot.lane.b32.xlu0 %v4444, 64
    %v4476 = vpop.permute.xlu0 %4475
    %4493 = vrot.lane.b32.xlu0 %v4419, 64
    %v4494 = vpop.permute.xlu0 %4493
    %4495 = vrot.lane.b32.xlu0 %v4422, 64
    %v4496 = vpop.permute.xlu0 %4495
    %v4501 = vsel %vm86, %v4165, %v4268
    %v4502 = vsel %vm86, %v4166, %v4270
    %v4503 = vsel %vm86, %v4167, %v4272
    %v4504 = vsel %vm86, %v4168, %v4274
    %v4505 = vsel %vm86, %v4169, %v4276
    %v4506 = vsel %vm86, %v4170, %v4278
    %v4507 = vsel %vm86, %v4171, %v4280
    %v4508 = vsel %vm86, %v4173, %v4282
    %v4509 = vsel %vm86, %v4174, %v4284
    %v4510 = vsel %vm86, %v4175, %v4286
    %v4511 = vsel %vm86, %v4176, %v4288
    %v4512 = vsel %vm86, %v4177, %v4290
    %v4513 = vsel %vm86, %v4178, %v4292
    %v4514 = vsel %vm86, %v4179, %v4294
    %v4515 = vsel %vm86, %v1293, %v4368
    %v4516 = vsel %vm86, %v4311, %v4370
    %v4517 = vsel %vm86, %v4314, %v4372
    %v4518 = vsel %vm86, %v4317, %v4374
    %v4519 = vsel %vm86, %v4320, %v4376
    %v4520 = vsel %vm86, %v4323, %v4378
    %v4521 = vsel %vm86, %v4326, %v4380
    %v4522 = vsel %vm86, %v4329, %v4382
    %v4523 = vsel %vm86, %v1293, %v4384
    %v4524 = vsel %vm86, %v4332, %v4386
    %v4525 = vsel %vm86, %v4335, %v4388
    %v4526 = vsel %vm86, %v4338, %v4390
    %v4527 = vsel %vm86, %v4341, %v4392
    %v4528 = vsel %vm86, %v4344, %v4394
    %v4529 = vsel %vm86, %v4347, %v4396
    %v4530 = vsel %vm86, %v4350, %v4398
    %v4531 = vsel %vm86, %v4227, %v4446
    %v4532 = vsel %vm86, %v4230, %v4448
    %v4533 = vsel %vm86, %v4233, %v4450
    %v4534 = vsel %vm86, %v4236, %v4452
    %v4535 = vsel %vm86, %v4239, %v4454
    %v4536 = vsel %vm86, %v4242, %v4456
    %v4537 = vsel %vm86, %v4245, %v4458
    %v4538 = vsel %vm86, %v4419, %v4460
    %v4539 = vsel %vm86, %v4248, %v4462
    %v4540 = vsel %vm86, %v4251, %v4464
    %v4541 = vsel %vm86, %v4254, %v4466
    %v4542 = vsel %vm86, %v4257, %v4468
    %v4543 = vsel %vm86, %v4260, %v4470
    %v4544 = vsel %vm86, %v4263, %v4472
    %v4545 = vsel %vm86, %v4266, %v4474
    %v4546 = vsel %vm86, %v4422, %v4476
    %v4547 = vsel %vm86, %v4172, %v4494
    %v4548 = vsel %vm86, %v4180, %v4496
    %v4549 = vpack.c.bf16 %v4501, %v1487
    %v4550 = vpack.c.bf16 %v4516, %v4515
    %v4551 = vpack.c.bf16 %v4532, %v4531
    %v4552 = vpack.c.bf16 %v4503, %v4502
    %v4553 = vpack.c.bf16 %v4317, %v4314
    %v4554 = vpack.c.bf16 %v4518, %v4517
    %v4555 = vpack.c.bf16 %v4534, %v4533
    %v4556 = vpack.c.bf16 %v4505, %v4504
    %v4557 = vpack.c.bf16 %v4323, %v4320
    %v4558 = vpack.c.bf16 %v4520, %v4519
    %v4559 = vpack.c.bf16 %v4536, %v4535
    %v4560 = vpack.c.bf16 %v4507, %v4506
    %v4561 = vpack.c.bf16 %v4329, %v4326
    %v4562 = vpack.c.bf16 %v4522, %v4521
    %v4563 = vpack.c.bf16 %v4538, %v4537
    %v4564 = vpack.c.bf16 %v1487, %v4547
    %v4565 = vpack.c.bf16 %v1293, %v4441
    %v4566 = vpack.c.bf16 %v4508, %v1487
    %v4567 = vpack.c.bf16 %v4524, %v4523
    %v4568 = vpack.c.bf16 %v4540, %v4539
    %v4569 = vpack.c.bf16 %v4510, %v4509
    %v4570 = vpack.c.bf16 %v4338, %v4335
    %v4571 = vpack.c.bf16 %v4526, %v4525
    %v4572 = vpack.c.bf16 %v4542, %v4541
    %v4573 = vpack.c.bf16 %v4512, %v4511
    %v4574 = vpack.c.bf16 %v4344, %v4341
    %v4575 = vpack.c.bf16 %v4528, %v4527
    %v4576 = vpack.c.bf16 %v4544, %v4543
    %v4577 = vpack.c.bf16 %v4514, %v4513
    %v4578 = vpack.c.bf16 %v4350, %v4347
    %v4579 = vpack.c.bf16 %v4530, %v4529
    %v4580 = vpack.c.bf16 %v4546, %v4545
    %v4581 = vpack.c.bf16 %v1487, %v4548
    %v4582 = vpack.c.bf16 %v1293, %v4444
    %v4583 = vld [vmem:[%s19] sm:$0xf]
    %v4584 = vld [vmem:[%s19 + $0x4] sm:$0xf]
    %v4585 = vld [vmem:[%s19 + $0x8] sm:$0xf]
    %v4586 = vld [vmem:[%s19 + $0xc] sm:$0xf]
    %v4587 = vld [vmem:[%s19 + $0x10] sm:$0xf]
    %v4588 = vld [vmem:[%s19 + $0x14] sm:$0xf]
    %v4589 = vld [vmem:[%s19 + $0x18] sm:$0xf]
    %v4590 = vld [vmem:[%s19 + $0x1c] sm:$0xf]
    %v4591 = vld [vmem:[%s19 + $0x20] sm:$0xf]
    %v4592 = vld [vmem:[%s19 + $0x24] sm:$0xf]
    %v4593 = vld [vmem:[%s19 + $0x28] sm:$0xf]
    %v4594 = vld [vmem:[%s19 + $0x2c] sm:$0xf]
    %v4595 = vld [vmem:[%s19 + $0x30] sm:$0xf]
    %v4596 = vld [vmem:[%s19 + $0x34] sm:$0xf]
    %v4597 = vld [vmem:[%s19 + $0x38] sm:$0xf]
    %v4598 = vld [vmem:[%s19 + $0x3c] sm:$0xf]
    %v4599 = vld [vmem:[%s19 + $0x40] sm:$0xf]
    %v4600 = vld [vmem:[%s19 + $0x44] sm:$0xf]
    %v4601 = vld [vmem:[%s19 + $0x48] sm:$0xf]
    %v4602 = vld [vmem:[%s19 + $0x4c] sm:$0xf]
    %v4603 = vld [vmem:[%s19 + $0x50] sm:$0xf]
    %v4604 = vld [vmem:[%s19 + $0x54] sm:$0xf]
    %v4605 = vld [vmem:[%s19 + $0x58] sm:$0xf]
    %v4606 = vld [vmem:[%s19 + $0x5c] sm:$0xf]
    %v4607 = vld [vmem:[%s19 + $0x60] sm:$0xf]
    %v4608 = vld [vmem:[%s19 + $0x64] sm:$0xf]
    %v4609 = vld [vmem:[%s19 + $0x68] sm:$0xf]
    %v4610 = vld [vmem:[%s19 + $0x6c] sm:$0xf]
    %v4611 = vld [vmem:[%s19 + $0x70] sm:$0xf]
    %v4612 = vld [vmem:[%s19 + $0x74] sm:$0xf]
    %v4613 = vld [vmem:[%s19 + $0x78] sm:$0xf]
    %v4614 = vld [vmem:[%s19 + $0x7c] sm:$0xf]
    %v4615 = vld [vmem:[%s19 + $0x80] sm:$0xf]
    %v4616 = vld [vmem:[%s19 + $0x84] sm:$0xf]
    %v4617 = vld [vmem:[%s19 + $0x88] sm:$0xf]
    %v4618 = vld [vmem:[%s19 + $0x8c] sm:$0xf]
    %v4619 = vld [vmem:[%s19 + $0x90] sm:$0xf]
    %v4620 = vld [vmem:[%s19 + $0x94] sm:$0xf]
    %v4621 = vld [vmem:[%s19 + $0x98] sm:$0xf]
    %v4622 = vld [vmem:[%s19 + $0x9c] sm:$0xf]
    %v4623 = vld [vmem:[%s19 + $0xa0] sm:$0xf]
    %v4624 = vld [vmem:[%s19 + $0xa4] sm:$0xf]
    %v4625 = vld [vmem:[%s19 + $0xa8] sm:$0xf]
    %v4626 = vld [vmem:[%s19 + $0xac] sm:$0xf]
    %v4627 = vld [vmem:[%s19 + $0xb0] sm:$0xf]
    %v4628 = vld [vmem:[%s19 + $0xb4] sm:$0xf]
    %v4629 = vld [vmem:[%s19 + $0xb8] sm:$0xf]
    %v4630 = vld [vmem:[%s19 + $0xbc] sm:$0xf]
    %v4631 = vld [vmem:[%s19 + $0xc0] sm:$0xf]
    %v4632 = vld [vmem:[%s19 + $0xc4] sm:$0xf]
    %v4633 = vld [vmem:[%s19 + $0xc8] sm:$0xf]
    %v4634 = vld [vmem:[%s19 + $0xcc] sm:$0xf]
    %v4635 = vld [vmem:[%s19 + $0xd0] sm:$0xf]
    %v4636 = vld [vmem:[%s19 + $0xd4] sm:$0xf]
    %v4637 = vld [vmem:[%s19 + $0xd8] sm:$0xf]
    %v4638 = vld [vmem:[%s19 + $0xdc] sm:$0xf]
    %v4639 = vld [vmem:[%s19 + $0xe0] sm:$0xf]
    %v4640 = vld [vmem:[%s19 + $0xe4] sm:$0xf]
    %v4641 = vld [vmem:[%s19 + $0xe8] sm:$0xf]
    %v4642 = vld [vmem:[%s19 + $0xec] sm:$0xf]
    %v4643 = vld [vmem:[%s19 + $0xf0] sm:$0xf]
    %v4644 = vld [vmem:[%s19 + $0xf4] sm:$0xf]
    %v4645 = vld [vmem:[%s19 + $0xf8] sm:$0xf]
    %v4646 = vld [vmem:[%s19 + $0xfc] sm:$0xf]
    %v4647 = vld [vmem:[%s19 + $0x100] sm:$0xf]
    %v4648 = vld [vmem:[%s19 + $0x104] sm:$0xf]
    %v4649 = vld [vmem:[%s19 + $0x108] sm:$0xf]
    %v4650 = vld [vmem:[%s19 + $0x10c] sm:$0xf]
    %v4651 = vld [vmem:[%s19 + $0x110] sm:$0xf]
    %v4652 = vld [vmem:[%s19 + $0x114] sm:$0xf]
    %v4653 = vld [vmem:[%s19 + $0x118] sm:$0xf]
    %v4654 = vld [vmem:[%s19 + $0x11c] sm:$0xf]
    %v4727 = vunpack.c.l.b16 %v4583
    %v4728 = vunpack.c.l.b16 %v4584
    %v4729 = vunpack.c.l.b16 %v4585
    %v4730 = vunpack.c.l.b16 %v4586
    %v4731 = vunpack.c.l.b16 %v4587
    %v4732 = vunpack.c.l.b16 %v4588
    %v4733 = vunpack.c.l.b16 %v4589
    %v4734 = vunpack.c.l.b16 %v4590
    %v4735 = vunpack.c.l.b16 %v4591
    %v4736 = vunpack.c.l.b16 %v4592
    %v4737 = vunpack.c.l.b16 %v4593
    %v4738 = vunpack.c.l.b16 %v4594
    %v4739 = vunpack.c.l.b16 %v4595
    %v4740 = vunpack.c.l.b16 %v4596
    %v4741 = vunpack.c.l.b16 %v4597
    %v4742 = vunpack.c.l.b16 %v4598
    %v4743 = vunpack.c.l.b16 %v4599
    %v4744 = vunpack.c.l.b16 %v4600
    %v4745 = vunpack.c.l.b16 %v4601
    %v4746 = vunpack.c.l.b16 %v4602
    %v4747 = vunpack.c.l.b16 %v4603
    %v4748 = vunpack.c.l.b16 %v4604
    %v4749 = vunpack.c.l.b16 %v4605
    %v4750 = vunpack.c.l.b16 %v4606
    %v4751 = vunpack.c.l.b16 %v4607
    %v4752 = vunpack.c.l.b16 %v4608
    %v4753 = vunpack.c.l.b16 %v4609
    %v4754 = vunpack.c.l.b16 %v4610
    %v4755 = vunpack.c.l.b16 %v4611
    %v4756 = vunpack.c.l.b16 %v4612
    %v4757 = vunpack.c.l.b16 %v4613
    %v4758 = vunpack.c.l.b16 %v4614
    %v4759 = vunpack.c.l.b16 %v4615
    %v4760 = vunpack.c.l.b16 %v4616
    %v4761 = vunpack.c.l.b16 %v4617
    %v4762 = vunpack.c.l.b16 %v4618
    %v4763 = vunpack.c.l.b16 %v4619
    %v4764 = vunpack.c.l.b16 %v4620
    %v4765 = vunpack.c.l.b16 %v4621
    %v4766 = vunpack.c.l.b16 %v4622
    %v4767 = vunpack.c.l.b16 %v4623
    %v4768 = vunpack.c.l.b16 %v4624
    %v4769 = vunpack.c.l.b16 %v4625
    %v4770 = vunpack.c.l.b16 %v4626
    %v4771 = vunpack.c.l.b16 %v4627
    %v4772 = vunpack.c.l.b16 %v4628
    %v4773 = vunpack.c.l.b16 %v4629
    %v4774 = vunpack.c.l.b16 %v4630
    %v4775 = vunpack.c.l.b16 %v4631
    %v4776 = vunpack.c.l.b16 %v4632
    %v4777 = vunpack.c.l.b16 %v4633
    %v4778 = vunpack.c.l.b16 %v4634
    %v4779 = vunpack.c.l.b16 %v4635
    %v4780 = vunpack.c.l.b16 %v4636
    %v4781 = vunpack.c.l.b16 %v4637
    %v4782 = vunpack.c.l.b16 %v4638
    %v4783 = vunpack.c.l.b16 %v4639
    %v4784 = vunpack.c.l.b16 %v4640
    %v4785 = vunpack.c.l.b16 %v4641
    %v4786 = vunpack.c.l.b16 %v4642
    %v4787 = vunpack.c.l.b16 %v4643
    %v4788 = vunpack.c.l.b16 %v4644
    %v4789 = vunpack.c.l.b16 %v4645
    %v4790 = vunpack.c.l.b16 %v4646
    %v4791 = vunpack.c.l.b16 %v4647
    %v4792 = vunpack.c.l.b16 %v4648
    %v4793 = vunpack.c.l.b16 %v4649
    %v4794 = vunpack.c.l.b16 %v4650
    %v4795 = vunpack.c.l.b16 %v4651
    %v4796 = vunpack.c.l.b16 %v4652
    %v4797 = vunpack.c.l.b16 %v4653
    %v4798 = vunpack.c.l.b16 %v4654
    %v4799 = vpack.c.b16 %v4728, %v4727
    %v4800 = vpack.c.b16 %v4730, %v4729
    %v4801 = vpack.c.b16 %v4732, %v4731
    %v4802 = vpack.c.b16 %v4734, %v4733
    %v4803 = vpack.c.b16 %v4736, %v4735
    %v4804 = vpack.c.b16 %v4738, %v4737
    %v4805 = vpack.c.b16 %v4740, %v4739
    %v4806 = vpack.c.b16 %v4742, %v4741
    %v4807 = vpack.c.b16 %v4744, %v4743
    %v4808 = vpack.c.b16 %v4746, %v4745
    %v4809 = vpack.c.b16 %v4748, %v4747
    %v4810 = vpack.c.b16 %v4750, %v4749
    %v4811 = vpack.c.b16 %v4752, %v4751
    %v4812 = vpack.c.b16 %v4754, %v4753
    %v4813 = vpack.c.b16 %v4756, %v4755
    %v4814 = vpack.c.b16 %v4758, %v4757
    %v4815 = vpack.c.b16 %v4760, %v4759
    %v4816 = vpack.c.b16 %v4762, %v4761
    %v4817 = vpack.c.b16 %v4764, %v4763
    %v4818 = vpack.c.b16 %v4766, %v4765
    %v4819 = vpack.c.b16 %v4768, %v4767
    %v4820 = vpack.c.b16 %v4770, %v4769
    %v4821 = vpack.c.b16 %v4772, %v4771
    %v4822 = vpack.c.b16 %v4774, %v4773
    %v4823 = vpack.c.b16 %v4776, %v4775
    %v4824 = vpack.c.b16 %v4778, %v4777
    %v4825 = vpack.c.b16 %v4780, %v4779
    %v4826 = vpack.c.b16 %v4782, %v4781
    %v4827 = vpack.c.b16 %v4784, %v4783
    %v4828 = vpack.c.b16 %v4786, %v4785
    %v4829 = vpack.c.b16 %v4788, %v4787
    %v4830 = vpack.c.b16 %v4790, %v4789
    %v4831 = vpack.c.b16 %v4792, %v4791
    %v4832 = vpack.c.b16 %v4794, %v4793
    %v4833 = vpack.c.b16 %v4796, %v4795
    %v4834 = vpack.c.b16 %v4798, %v4797
    %v4872 = vsel %vm86, %v4553, 0
    %v4875 = vsel %vm86, %v4557, 0
    %v4878 = vsel %vm86, %v4561, 0
    %v4881 = vsel %vm86, %v4565, 0
    %v4884 = vsel %vm86, %v4570, 0
    %v4887 = vsel %vm86, %v4574, 0
    %v4890 = vsel %vm86, %v4578, 0
    %v4893 = vsel %vm86, %v4582, 0
    %4895 = vmatpush.bf16.msra.mxu0 %v4806
    %4896 = vmatpush.bf16.msra.mxu0 %v4805
    %4897 = vmatpush.bf16.msra.mxu0 %v4804
    %4898 = vmatpush.bf16.msra.mxu0 %v4803
    %4899 = vmatpush.bf16.msra.mxu0 %v4802
    %4900 = vmatpush.bf16.msra.mxu0 %v4801
    %4901 = vmatpush.bf16.msra.mxu0 %v4800
    %4902 = vmatpush.bf16.msra.mxu0 %v4799
    %4903 = vmatmul.bf16.gmra.mxu0 %v4549
    %v4904 = vpop.f32.mrf.mxu0
    %v4905 = vadd.f32 0.0, %v4904
    %v4906 = vpop.f32.mrf.mxu0
    %v4907 = vadd.f32 0.0, %v4906
    %4908 = vmatmul.bf16.gmra.mxu0 %v4552
    %v4909 = vpop.f32.mrf.mxu0
    %v4910 = vadd.f32 0.0, %v4909
    %v4911 = vpop.f32.mrf.mxu0
    %v4912 = vadd.f32 0.0, %v4911
    %4913 = vmatmul.bf16.gmra.mxu0 %v4556
    %v4914 = vpop.f32.mrf.mxu0
    %v4915 = vadd.f32 0.0, %v4914
    %v4916 = vpop.f32.mrf.mxu0
    %v4917 = vadd.f32 0.0, %v4916
    %4918 = vmatmul.bf16.gmra.mxu0 %v4560
    %v4919 = vpop.f32.mrf.mxu0
    %v4920 = vadd.f32 0.0, %v4919
    %v4921 = vpop.f32.mrf.mxu0
    %v4922 = vadd.f32 0.0, %v4921
    %4923 = vmatmul.bf16.gmra.mxu0 %v4566
    %v4924 = vpop.f32.mrf.mxu0
    %v4925 = vadd.f32 0.0, %v4924
    %v4926 = vpop.f32.mrf.mxu0
    %v4927 = vadd.f32 0.0, %v4926
    %4928 = vmatmul.bf16.gmra.mxu0 %v4569
    %v4929 = vpop.f32.mrf.mxu0
    %v4930 = vadd.f32 0.0, %v4929
    %v4931 = vpop.f32.mrf.mxu0
    %v4932 = vadd.f32 0.0, %v4931
    %4933 = vmatmul.bf16.gmra.mxu0 %v4573
    %v4934 = vpop.f32.mrf.mxu0
    %v4935 = vadd.f32 0.0, %v4934
    %v4936 = vpop.f32.mrf.mxu0
    %v4937 = vadd.f32 0.0, %v4936
    %4938 = vmatmul.bf16.gmra.mxu0 %v4577
    %v4939 = vpop.f32.mrf.mxu0
    %v4940 = vadd.f32 0.0, %v4939
    %v4941 = vpop.f32.mrf.mxu0
    %v4942 = vadd.f32 0.0, %v4941
    %4943 = vdwg.mxu0
    %4944 = vmatpush.bf16.msra.mxu0 %v4814
    %4945 = vmatpush.bf16.msra.mxu0 %v4813
    %4946 = vmatpush.bf16.msra.mxu0 %v4812
    %4947 = vmatpush.bf16.msra.mxu0 %v4811
    %4948 = vmatpush.bf16.msra.mxu0 %v4810
    %4949 = vmatpush.bf16.msra.mxu0 %v4809
    %4950 = vmatpush.bf16.msra.mxu0 %v4808
    %4951 = vmatpush.bf16.msra.mxu0 %v4807
    %4952 = vmatmul.bf16.gmra.mxu0 %v4550
    %v4953 = vpop.f32.mrf.mxu0
    %v4954 = vadd.f32 %v4905, %v4953
    %v4955 = vpop.f32.mrf.mxu0
    %v4956 = vadd.f32 %v4907, %v4955
    %4957 = vmatmul.bf16.gmra.mxu0 %v4554
    %v4958 = vpop.f32.mrf.mxu0
    %v4959 = vadd.f32 %v4910, %v4958
    %v4960 = vpop.f32.mrf.mxu0
    %v4961 = vadd.f32 %v4912, %v4960
    %4962 = vmatmul.bf16.gmra.mxu0 %v4558
    %v4963 = vpop.f32.mrf.mxu0
    %v4964 = vadd.f32 %v4915, %v4963
    %v4965 = vpop.f32.mrf.mxu0
    %v4966 = vadd.f32 %v4917, %v4965
    %4967 = vmatmul.bf16.gmra.mxu0 %v4562
    %v4968 = vpop.f32.mrf.mxu0
    %v4969 = vadd.f32 %v4920, %v4968
    %v4970 = vpop.f32.mrf.mxu0
    %v4971 = vadd.f32 %v4922, %v4970
    %4972 = vmatmul.bf16.gmra.mxu0 %v4567
    %v4973 = vpop.f32.mrf.mxu0
    %v4974 = vadd.f32 %v4925, %v4973
    %v4975 = vpop.f32.mrf.mxu0
    %v4976 = vadd.f32 %v4927, %v4975
    %4977 = vmatmul.bf16.gmra.mxu0 %v4571
    %v4978 = vpop.f32.mrf.mxu0
    %v4979 = vadd.f32 %v4930, %v4978
    %v4980 = vpop.f32.mrf.mxu0
    %v4981 = vadd.f32 %v4932, %v4980
    %4982 = vmatmul.bf16.gmra.mxu0 %v4575
    %v4983 = vpop.f32.mrf.mxu0
    %v4984 = vadd.f32 %v4935, %v4983
    %v4985 = vpop.f32.mrf.mxu0
    %v4986 = vadd.f32 %v4937, %v4985
    %4987 = vmatmul.bf16.gmra.mxu0 %v4579
    %v4988 = vpop.f32.mrf.mxu0
    %v4989 = vadd.f32 %v4940, %v4988
    %v4990 = vpop.f32.mrf.mxu0
    %v4991 = vadd.f32 %v4942, %v4990
    %4992 = vdwg.mxu0
    %4993 = vmatpush.bf16.msra.mxu0 %v4822
    %4994 = vmatpush.bf16.msra.mxu0 %v4821
    %4995 = vmatpush.bf16.msra.mxu0 %v4820
    %4996 = vmatpush.bf16.msra.mxu0 %v4819
    %4997 = vmatpush.bf16.msra.mxu0 %v4818
    %4998 = vmatpush.bf16.msra.mxu0 %v4817
    %4999 = vmatpush.bf16.msra.mxu0 %v4816
    %5000 = vmatpush.bf16.msra.mxu0 %v4815
    %5001 = vmatmul.bf16.gmra.mxu0 %v4551
    %v5002 = vpop.f32.mrf.mxu0
    %v5003 = vadd.f32 %v4954, %v5002
    %v5004 = vpop.f32.mrf.mxu0
    %v5005 = vadd.f32 %v4956, %v5004
    %5006 = vmatmul.bf16.gmra.mxu0 %v4555
    %v5007 = vpop.f32.mrf.mxu0
    %v5008 = vadd.f32 %v4959, %v5007
    %v5009 = vpop.f32.mrf.mxu0
    %v5010 = vadd.f32 %v4961, %v5009
    %5011 = vmatmul.bf16.gmra.mxu0 %v4559
    %v5012 = vpop.f32.mrf.mxu0
    %v5013 = vadd.f32 %v4964, %v5012
    %v5014 = vpop.f32.mrf.mxu0
    %v5015 = vadd.f32 %v4966, %v5014
    %5016 = vmatmul.bf16.gmra.mxu0 %v4563
    %v5017 = vpop.f32.mrf.mxu0
    %v5018 = vadd.f32 %v4969, %v5017
    %v5019 = vpop.f32.mrf.mxu0
    %v5020 = vadd.f32 %v4971, %v5019
    %5021 = vmatmul.bf16.gmra.mxu0 %v4568
    %v5022 = vpop.f32.mrf.mxu0
    %v5023 = vadd.f32 %v4974, %v5022
    %v5024 = vpop.f32.mrf.mxu0
    %v5025 = vadd.f32 %v4976, %v5024
    %5026 = vmatmul.bf16.gmra.mxu0 %v4572
    %v5027 = vpop.f32.mrf.mxu0
    %v5028 = vadd.f32 %v4979, %v5027
    %v5029 = vpop.f32.mrf.mxu0
    %v5030 = vadd.f32 %v4981, %v5029
    %5031 = vmatmul.bf16.gmra.mxu0 %v4576
    %v5032 = vpop.f32.mrf.mxu0
    %v5033 = vadd.f32 %v4984, %v5032
    %v5034 = vpop.f32.mrf.mxu0
    %v5035 = vadd.f32 %v4986, %v5034
    %5036 = vmatmul.bf16.gmra.mxu0 %v4580
    %v5037 = vpop.f32.mrf.mxu0
    %v5038 = vadd.f32 %v4989, %v5037
    %v5039 = vpop.f32.mrf.mxu0
    %v5040 = vadd.f32 %v4991, %v5039
    %5041 = vdwg.mxu0
    %5042 = vmatpush.bf16.msra.mxu0 %v4830
    %5043 = vmatpush.bf16.msra.mxu0 %v4829
    %5044 = vmatpush.bf16.msra.mxu0 %v4828
    %5045 = vmatpush.bf16.msra.mxu0 %v4827
    %5046 = vmatpush.bf16.msra.mxu0 %v4826
    %5047 = vmatpush.bf16.msra.mxu0 %v4825
    %5048 = vmatpush.bf16.msra.mxu0 %v4824
    %5049 = vmatpush.bf16.msra.mxu0 %v4823
    %5050 = vmatmul.bf16.gmra.mxu0 %v4552
    %v5051 = vpop.f32.mrf.mxu0
    %v5052 = vadd.f32 %v5003, %v5051
    %v5053 = vpop.f32.mrf.mxu0
    %v5054 = vadd.f32 %v5005, %v5053
    %5055 = vmatmul.bf16.gmra.mxu0 %v4556
    %v5056 = vpop.f32.mrf.mxu0
    %v5057 = vadd.f32 %v5008, %v5056
    %v5058 = vpop.f32.mrf.mxu0
    %v5059 = vadd.f32 %v5010, %v5058
    %5060 = vmatmul.bf16.gmra.mxu0 %v4560
    %v5061 = vpop.f32.mrf.mxu0
    %v5062 = vadd.f32 %v5013, %v5061
    %v5063 = vpop.f32.mrf.mxu0
    %v5064 = vadd.f32 %v5015, %v5063
    %5065 = vmatmul.bf16.gmra.mxu0 %v4564
    %v5066 = vpop.f32.mrf.mxu0
    %v5067 = vadd.f32 %v5018, %v5066
    %v5068 = vpop.f32.mrf.mxu0
    %v5069 = vadd.f32 %v5020, %v5068
    %5070 = vmatmul.bf16.gmra.mxu0 %v4569
    %v5071 = vpop.f32.mrf.mxu0
    %v5072 = vadd.f32 %v5023, %v5071
    %v5073 = vpop.f32.mrf.mxu0
    %v5074 = vadd.f32 %v5025, %v5073
    %5075 = vmatmul.bf16.gmra.mxu0 %v4573
    %v5076 = vpop.f32.mrf.mxu0
    %v5077 = vadd.f32 %v5028, %v5076
    %v5078 = vpop.f32.mrf.mxu0
    %v5079 = vadd.f32 %v5030, %v5078
    %5080 = vmatmul.bf16.gmra.mxu0 %v4577
    %v5081 = vpop.f32.mrf.mxu0
    %v5082 = vadd.f32 %v5033, %v5081
    %v5083 = vpop.f32.mrf.mxu0
    %v5084 = vadd.f32 %v5035, %v5083
    %5085 = vmatmul.bf16.gmra.mxu0 %v4581
    %v5086 = vpop.f32.mrf.mxu0
    %v5087 = vadd.f32 %v5038, %v5086
    %v5088 = vpop.f32.mrf.mxu0
    %v5089 = vadd.f32 %v5040, %v5088
    %5090 = vdwg.mxu0
    %5091 = vmatpush.bf16.msra.mxu0 0
    %5092 = vmatpush.bf16.msra.mxu0 0
    %5093 = vmatpush.bf16.msra.mxu0 0
    %5094 = vmatpush.bf16.msra.mxu0 0
    %5095 = vmatpush.bf16.msra.mxu0 %v4834
    %5096 = vmatpush.bf16.msra.mxu0 %v4833
    %5097 = vmatpush.bf16.msra.mxu0 %v4832
    %5098 = vmatpush.bf16.msra.mxu0 %v4831
    %5099 = vmatmul.bf16.gmra.mxu0 %v4872
    %v5100 = vpop.f32.mrf.mxu0
    %v5101 = vadd.f32 %v5052, %v5100
    %v5102 = vpop.f32.mrf.mxu0
    %v5103 = vadd.f32 %v5054, %v5102
    %5104 = vmatmul.bf16.gmra.mxu0 %v4875
    %v5105 = vpop.f32.mrf.mxu0
    %v5106 = vadd.f32 %v5057, %v5105
    %v5107 = vpop.f32.mrf.mxu0
    %v5108 = vadd.f32 %v5059, %v5107
    %5109 = vmatmul.bf16.gmra.mxu0 %v4878
    %v5110 = vpop.f32.mrf.mxu0
    %v5111 = vadd.f32 %v5062, %v5110
    %v5112 = vpop.f32.mrf.mxu0
    %v5113 = vadd.f32 %v5064, %v5112
    %5114 = vmatmul.bf16.gmra.mxu0 %v4881
    %v5115 = vpop.f32.mrf.mxu0
    %v5116 = vadd.f32 %v5067, %v5115
    %v5117 = vpop.f32.mrf.mxu0
    %v5118 = vadd.f32 %v5069, %v5117
    %5119 = vmatmul.bf16.gmra.mxu0 %v4884
    %v5120 = vpop.f32.mrf.mxu0
    %v5121 = vadd.f32 %v5072, %v5120
    %v5122 = vpop.f32.mrf.mxu0
    %v5123 = vadd.f32 %v5074, %v5122
    %5124 = vmatmul.bf16.gmra.mxu0 %v4887
    %v5125 = vpop.f32.mrf.mxu0
    %v5126 = vadd.f32 %v5077, %v5125
    %v5127 = vpop.f32.mrf.mxu0
    %v5128 = vadd.f32 %v5079, %v5127
    %5129 = vmatmul.bf16.gmra.mxu0 %v4890
    %v5130 = vpop.f32.mrf.mxu0
    %v5131 = vadd.f32 %v5082, %v5130
    %v5132 = vpop.f32.mrf.mxu0
    %v5133 = vadd.f32 %v5084, %v5132
    %5134 = vmatmul.bf16.gmra.mxu0 %v4893
    %v5135 = vpop.f32.mrf.mxu0
    %v5136 = vadd.f32 %v5087, %v5135
    %v5137 = vpop.f32.mrf.mxu0
    %v5138 = vadd.f32 %v5089, %v5137
    %5139 = vdwg.mxu0
    %v5140 = vld [vmem:[%s20] sm:$0x1]
    %v5142 = vperm.slane %v5140, 0
    %v5144 = vadd.f32 %v5101, %v5142
    %v5145 = vadd.f32 %v5103, %v5142
    %v5146 = vadd.f32 %v5106, %v5142
    %v5147 = vadd.f32 %v5108, %v5142
    %v5148 = vadd.f32 %v5111, %v5142
    %v5149 = vadd.f32 %v5113, %v5142
    %v5150 = vadd.f32 %v5116, %v5142
    %v5151 = vadd.f32 %v5118, %v5142
    %v5152 = vadd.f32 %v5121, %v5142
    %v5153 = vadd.f32 %v5123, %v5142
    %v5154 = vadd.f32 %v5126, %v5142
    %v5155 = vadd.f32 %v5128, %v5142
    %v5156 = vadd.f32 %v5131, %v5142
    %v5157 = vadd.f32 %v5133, %v5142
    %v5158 = vadd.f32 %v5136, %v5142
    %v5159 = vadd.f32 %v5138, %v5142
    %v5160 = vadd.f32 %v70, %v5144
    %v5161 = vadd.f32 %v71, %v5145
    %v5162 = vadd.f32 %v72, %v5146
    %v5163 = vadd.f32 %v73, %v5147
    %v5164 = vadd.f32 %v74, %v5148
    %v5165 = vadd.f32 %v75, %v5149
    %v5166 = vadd.f32 %v76, %v5150
    %v5167 = vadd.f32 %v77, %v5151
    %v5168 = vadd.f32 %v78, %v5152
    %v5169 = vadd.f32 %v79, %v5153
    %v5170 = vadd.f32 %v80, %v5154
    %v5171 = vadd.f32 %v81, %v5155
    %v5172 = vadd.f32 %v82, %v5156
    %v5173 = vadd.f32 %v83, %v5157
    %v5174 = vadd.f32 %v84, %v5158
    %v5175 = vadd.f32 %v85, %v5159
    %5176 = vst.msk [vmem:[#allocation2] sm:$0xff] %vm86, %v5160
    %5177 = vst.msk [vmem:[#allocation2 + $0x8] sm:$0xff] %vm86, %v5161
    %5178 = vst.msk [vmem:[#allocation2 + $0x10] sm:$0xff] %vm86, %v5162
    %5179 = vst.msk [vmem:[#allocation2 + $0x18] sm:$0xff] %vm86, %v5163
    %5180 = vst.msk [vmem:[#allocation2 + $0x20] sm:$0xff] %vm86, %v5164
    %5181 = vst.msk [vmem:[#allocation2 + $0x28] sm:$0xff] %vm86, %v5165
    %5182 = vst.msk [vmem:[#allocation2 + $0x30] sm:$0xff] %vm86, %v5166
    %5183 = vst.msk [vmem:[#allocation2 + $0x38] sm:$0xff] %vm86, %v5167
    %5184 = vst.msk [vmem:[#allocation2 + $0x40] sm:$0xff] %vm86, %v5168
    %5185 = vst.msk [vmem:[#allocation2 + $0x48] sm:$0xff] %vm86, %v5169
    %5186 = vst.msk [vmem:[#allocation2 + $0x50] sm:$0xff] %vm86, %v5170
    %5187 = vst.msk [vmem:[#allocation2 + $0x58] sm:$0xff] %vm86, %v5171
    %5188 = vst.msk [vmem:[#allocation2 + $0x60] sm:$0xff] %vm86, %v5172
    %5189 = vst.msk [vmem:[#allocation2 + $0x68] sm:$0xff] %vm86, %v5173
    %5190 = vst.msk [vmem:[#allocation2 + $0x70] sm:$0xff] %vm86, %v5174
    %5191 = vst.msk [vmem:[#allocation2 + $0x78] sm:$0xff] %vm86, %v5175
    // Predicated region
    $region86: #{tpu_custom_call.1} parent=1 // pred_check
      _
    $region87: #{tpu_custom_call.1} parent=1 // pred_check_branch
      %5193 = sbr.rel (0) target = $region89
    $region88: #{tpu_custom_call.1} parent=1 // pred_region
      %5195 = vsyncadd [#allocation3], 0
      %s5196 = sshll.u32 [#allocation2], 4
      %s5197 = int_to_ptr.vmem [resolvable:$true] %s5196
      %s5198 = sshll.u32 %s21, 4
      %s5199 = int_to_ptr.hbm [resolvable:$true] %s5198
      %5204 = dma.vmem_to_hbm [thread:$0]  %s5197, 2048, %s5199, [#allocation3], 128, 128, 8
    $region89: #{tpu_custom_call.1} parent=1 // pred_fallthru
      _
    // Predicated region
    $region90: #{tpu_custom_call.1} parent=1 // pred_check
      _
    $region91: #{tpu_custom_call.1} parent=1 // pred_check_branch
      %5206 = sbr.rel (0) target = $region93
    $region92: #{tpu_custom_call.1} parent=1 // pred_region
      %5208 = dma.done [#allocation3], 2048
    $region93: #{tpu_custom_call.1} parent=1 // pred_fallthru
      _
    %5209 = vsyncpa [#allocation3], 1

</llo_original>
